<compile_context>
chip_gen: v5e
topology: v5e:2x2
jax: 0.10.0
libtpu: 0.0.40
codegen_flags: <defaults>
</compile_context>

<pallas_src>
import math
import functools
import numpy as np

import jax
import jax.numpy as jnp
from jax import lax
from jax.experimental import pallas as pl
from jax.experimental.pallas import tpu as pltpu


# ----------------------------------------------------------------------------
# Tiling helpers
# ----------------------------------------------------------------------------

_MN_PREFS = (512, 256, 128)     # second-minor / minor matmul tiles
_K_PREFS = (512, 256, 128)      # contraction tiles


def _round_up(x, m):
    return ((x + m - 1) // m) * m


def _pick_tile(dim, prefs, align=128):
    """Largest preferred tile that divides `dim`; else a 128-multiple divisor;
    else the full dim (always (8,128)-legal since a full-extent block is allowed)."""
    for p in prefs:
        if dim >= p and dim % p == 0:
            return p
    if dim > prefs[0]:
        for t in range(prefs[0], align - 1, -align):
            if dim % t == 0:
                return t
    return dim


def _maybe_vmem_limit(bytes_needed):
    """Raise the scoped-VMEM limit only when the working set exceeds the 32 MiB
    default; cap below the smallest physical VMEM (64 MiB on v7x)."""
    default = 32 * 1024 * 1024
    if bytes_needed <= default:
        return None
    return min(int(bytes_needed), 60 * 1024 * 1024)


# ----------------------------------------------------------------------------
# Pallas kernels
# ----------------------------------------------------------------------------

def _linear_kernel(x_ref, w_ref, b_ref, o_ref, acc_ref, *, activation):
    """Tiled o = act(x @ w + b). Grid = (M/tm, N/tn, K/tk); K is the reduction."""
    k = pl.program_id(2)

    @pl.when(k == 0)
    def _():
        acc_ref[...] = jnp.zeros_like(acc_ref)

    acc_ref[...] += jnp.dot(x_ref[...], w_ref[...],
                            preferred_element_type=jnp.float32)

    @pl.when(k == pl.num_programs(2) - 1)
    def _():
        y = acc_ref[...] + b_ref[...]
        if activation == "relu":
            y = jnp.maximum(y, 0.0)
        o_ref[...] = y.astype(o_ref.dtype)


def _linear_res_ln_kernel(x_ref, w_ref, b_ref, r_ref, g_ref, bt_ref,
                          o_ref, acc_ref):
    """o = LayerNorm(x @ w + b + residual).

    N is kept un-tiled so the full output row is resident for the LayerNorm in the
    k==last epilogue (fused bias + residual + LN, no extra HBM pass).
    """
    k = pl.program_id(1)

    @pl.when(k == 0)
    def _():
        acc_ref[...] = jnp.zeros_like(acc_ref)

    acc_ref[...] += jnp.dot(x_ref[...], w_ref[...],
                            preferred_element_type=jnp.float32)

    @pl.when(k == pl.num_programs(1) - 1)
    def _():
        y = acc_ref[...] + b_ref[...] + r_ref[...].astype(jnp.float32)
        mean = jnp.mean(y, axis=-1, keepdims=True)
        var = jnp.mean((y - mean) ** 2, axis=-1, keepdims=True)
        o_ref[...] = ((y - mean) * lax.rsqrt(var + 1e-5) * g_ref[...]
                      + bt_ref[...]).astype(o_ref.dtype)


def _attn_block_kernel(*refs, n_heads, scale, has_mask):
    """Fused per-batch attention block: QKV projections (block-diagonal bf16 weight,
    lane-dense matmuls) -> per-head masked softmax(QK^T)V -> fused output projection
    (sum of per-head row-blocks of Wo) -> + residual -> LayerNorm. Lane-dense (Sq, D)
    bf16 output store."""
    if has_mask:
        (q_ref, k_ref, v_ref, r_ref, wqkv_ref, wo_ref, bo_ref,
         g_ref, bt_ref, m_ref, o_ref) = refs
    else:
        (q_ref, k_ref, v_ref, r_ref, wqkv_ref, wo_ref, bo_ref,
         g_ref, bt_ref, o_ref) = refs
        m_ref = None

    xq = q_ref[0]                      # (Sq, D) bf16
    xk = k_ref[0]                      # (Sk, D) bf16
    xv = v_ref[0]                      # (Sk, D) bf16
    sq, d = xq.shape
    dh = d // n_heads

    # 1/sqrt(Dh) folded into q: one multiply over the small (Sq, D) tile instead of
    # the full (Sq, Sk) score matrix.  Masked value matches the reference exactly
    # (masked_fill(-1e20) happens before the /sqrt(Dh) there).
    q = (jnp.dot(xq, wqkv_ref[0], preferred_element_type=jnp.float32)
         * scale).astype(jnp.bfloat16)
    k = jnp.dot(xk, wqkv_ref[1], preferred_element_type=jnp.float32
                ).astype(jnp.bfloat16)
    v = jnp.dot(xv, wqkv_ref[2], preferred_element_type=jnp.float32
                ).astype(jnp.bfloat16)

    if has_mask:
        m = m_ref[0, 0]                                  # (Sq, Sk)
        masked_val = jnp.float32(-1e20 * scale)

    acc = jnp.zeros((sq, d), jnp.float32)
    # TODO(synk): for long sequences (Sq,Sk >~ 1-2k, esp. v7x's 64 MiB VMEM) replace
    # this with a flash-style online-softmax loop over Sk tiles with heads on a grid
    # axis; at these shapes the (Sq, Sk) scores fit comfortably in VMEM.
    for h in range(n_heads):
        sl = slice(h * dh, (h + 1) * dh)
        s = lax.dot_general(q[:, sl], k[:, sl], (((1,), (1,)), ((), ())),
                            preferred_element_type=jnp.float32)   # (Sq, Sk)
        if has_mask:
            s = jnp.where(m == 0, masked_val, s)
        s = s - jnp.max(s, axis=-1, keepdims=True)                # stable softmax
        p = jnp.exp(s)
        p = p * pl.reciprocal(jnp.sum(p, axis=-1, keepdims=True), approx=True)
        oh = jnp.dot(p.astype(jnp.bfloat16), v[:, sl],
                     preferred_element_type=jnp.float32)          # (Sq, Dh)
        # Fused out-proj: concat(heads) @ Wo == sum_h oh @ Wo[h]  (Wo head-major)
        acc = acc + jnp.dot(oh.astype(jnp.bfloat16), wo_ref[h],
                            preferred_element_type=jnp.float32)   # (Sq, D)

    y = acc + bo_ref[...] + r_ref[0].astype(jnp.float32)          # + residual
    mean = jnp.mean(y, axis=-1, keepdims=True)
    var = jnp.mean((y - mean) ** 2, axis=-1, keepdims=True)
    out = (y - mean) * lax.rsqrt(var + 1e-5) * g_ref[...] + bt_ref[...]
    o_ref[...] = out[None, :, :].astype(o_ref.dtype)


# ----------------------------------------------------------------------------
# Pallas call wrappers
# ----------------------------------------------------------------------------

def pallas_linear(x2d, w, b, activation=None, out_dtype=jnp.bfloat16):
    """act(x @ w + b) with bf16 operands, f32 accumulator, tiled K-reduction."""
    M, K = x2d.shape
    N = w.shape[1]
    tm = min(_MN_PREFS[0], _round_up(M, 8))
    Mp = _round_up(M, tm)
    if Mp != M:                                   # pad rows instead of a full-M block
        x2d = jnp.pad(x2d, ((0, Mp - M), (0, 0)))
    tn = _pick_tile(N, _MN_PREFS)
    tk = _pick_tile(K, _K_PREFS)
    grid = (Mp // tm, N // tn, K // tk)
    out = pl.pallas_call(
        functools.partial(_linear_kernel, activation=activation),
        out_shape=jax.ShapeDtypeStruct((Mp, N), out_dtype),
        grid=grid,
        in_specs=[
            pl.BlockSpec((tm, tk), lambda i, j, k: (i, k)),
            pl.BlockSpec((tk, tn), lambda i, j, k: (k, j)),
            pl.BlockSpec((1, tn), lambda i, j, k: (0, j)),   # only the needed N-slice
        ],
        out_specs=pl.BlockSpec((tm, tn), lambda i, j, k: (i, j)),
        scratch_shapes=[pltpu.VMEM((tm, tn), jnp.float32)],
        compiler_params=pltpu.CompilerParams(
            dimension_semantics=("parallel", "parallel", "arbitrary")),
    )(x2d, w, b.reshape(1, N))
    return out if Mp == M else out[:M]


def pallas_linear_res_layernorm(x2d, w, b, resid2d, gamma, beta):
    """LayerNorm(x @ w + b + residual) with the LN fused into the matmul epilogue."""
    M, K = x2d.shape
    N = w.shape[1]
    tm = min(_MN_PREFS[0], _round_up(M, 8))
    Mp = _round_up(M, tm)
    if Mp != M:
        x2d = jnp.pad(x2d, ((0, Mp - M), (0, 0)))
        resid2d = jnp.pad(resid2d, ((0, Mp - M), (0, 0)))
    tk = _pick_tile(K, _K_PREFS)
    grid = (Mp // tm, K // tk)
    block_bytes = 2 * (tm * tk * 2 + tk * N * 2 + tm * N * 2 + tm * N * 2) + tm * N * 4
    out = pl.pallas_call(
        _linear_res_ln_kernel,
        out_shape=jax.ShapeDtypeStruct((Mp, N), jnp.bfloat16),
        grid=grid,
        in_specs=[
            pl.BlockSpec((tm, tk), lambda i, k: (i, k)),
            pl.BlockSpec((tk, N), lambda i, k: (k, 0)),
            pl.BlockSpec((1, N), lambda i, k: (0, 0)),
            pl.BlockSpec((tm, N), lambda i, k: (i, 0)),      # residual (bf16)
            pl.BlockSpec((1, N), lambda i, k: (0, 0)),
            pl.BlockSpec((1, N), lambda i, k: (0, 0)),
        ],
        out_specs=pl.BlockSpec((tm, N), lambda i, k: (i, 0)),
        scratch_shapes=[pltpu.VMEM((tm, N), jnp.float32)],
        compiler_params=pltpu.CompilerParams(
            dimension_semantics=("parallel", "arbitrary"),
            vmem_limit_bytes=_maybe_vmem_limit(block_bytes)),
    )(x2d, w, b.reshape(1, N), resid2d, gamma.reshape(1, N), beta.reshape(1, N))
    return out if Mp == M else out[:M]


def attention_block(key_in, query_in, value_in, residual, p, gamma, beta,
                    mask=None):
    """LayerNorm(MultiHeadAttention(key, query, value, mask) + residual), fused."""
    B, Sk, D = key_in.shape
    Sq = query_in.shape[1]
    H = p["wo_h"].shape[0]
    Dh = D // H
    scale = 1.0 / math.sqrt(Dh)

    has_mask = mask is not None
    in_specs = [
        pl.BlockSpec((1, Sq, D), lambda b: (b, 0, 0)),          # query
        pl.BlockSpec((1, Sk, D), lambda b: (b, 0, 0)),          # key
        pl.BlockSpec((1, Sk, D), lambda b: (b, 0, 0)),          # value
        pl.BlockSpec((1, Sq, D), lambda b: (b, 0, 0)),          # residual
        pl.BlockSpec((3, D, D), lambda b: (0, 0, 0)),           # wq/wk/wv (blockdiag)
        pl.BlockSpec((H, Dh, D), lambda b: (0, 0, 0)),          # wo, head-major
        pl.BlockSpec((1, D), lambda b: (0, 0)),                 # bo
        pl.BlockSpec((1, D), lambda b: (0, 0)),                 # gamma
        pl.BlockSpec((1, D), lambda b: (0, 0)),                 # beta
    ]
    args = [query_in, key_in, value_in, residual, p["wqkv"], p["wo_h"],
            p["bo"].reshape(1, D), gamma.reshape(1, D), beta.reshape(1, D)]
    if has_mask:
        if mask.shape[0] == 1:
            # Shared mask: block index constant across b -> DMA'd exactly once.
            in_specs.append(pl.BlockSpec((1, 1, Sq, Sk), lambda b: (0, 0, 0, 0)))
        else:
            in_specs.append(pl.BlockSpec((1, 1, Sq, Sk), lambda b: (b, 0, 0, 0)))
        args.append(mask)

    # VMEM budget: double-buffered input/output blocks + in-kernel f32 intermediates.
    block_bytes = (4 * Sq * D * 2 + 2 * Sk * D * 2 + 3 * D * D * 2 + H * Dh * D * 2
                   + Sq * D * 2 + (Sq * Sk * 4 if has_mask else 0))
    interm = 3 * max(Sq, Sk) * D * 4 + 2 * Sq * Sk * 4 + Sq * D * 4
    limit = _maybe_vmem_limit(2 * block_bytes + interm)

    return pl.pallas_call(
        functools.partial(_attn_block_kernel, n_heads=H, scale=scale,
                          has_mask=has_mask),
        out_shape=jax.ShapeDtypeStruct((B, Sq, D), jnp.bfloat16),
        grid=(B,),
        in_specs=in_specs,
        out_specs=pl.BlockSpec((1, Sq, D), lambda b: (b, 0, 0)),
        compiler_params=pltpu.CompilerParams(
            dimension_semantics=("parallel",), vmem_limit_bytes=limit),
    )(*args)


# ----------------------------------------------------------------------------
# Module-level forward functions (glue in plain JAX, compute in Pallas)
# ----------------------------------------------------------------------------

def encode_layer(key_in, query_in, value_in, p):
    B, S, D = query_in.shape
    # Fused: QKV proj + attention + out-proj + (attn + value_in) + LayerNorm.
    # (Reference EncodeLayer adds the `value` argument as the residual.)
    norm1 = attention_block(key_in, query_in, value_in, residual=value_in,
                            p=p["attn"], gamma=p["g1"], beta=p["b1"], mask=None)
    # FFN1 with fused bias + ReLU epilogue.
    h = pallas_linear(norm1.reshape(B * S, D), p["w_ff1"], p["b_ff1"],
                      activation="relu")
    # FFN2 with fused bias + residual(norm1) + LayerNorm epilogue.
    norm2 = pallas_linear_res_layernorm(h, p["w_ff2"], p["b_ff2"],
                                        norm1.reshape(B * S, D),
                                        p["g2"], p["b2"])
    return norm2.reshape(B, S, D)          # dropout = identity (eval)


def decode_block(enc_out, x, mask, p):
    # Self-attention + residual(x) + LayerNorm, fully fused (dropout = identity).
    query = attention_block(x, x, x, residual=x, p=p["self_attn"],
                            gamma=p["ng"], beta=p["nb"], mask=mask)
    return encode_layer(enc_out, query, enc_out, p["enc"])


@jax.jit
def transformer_decoder(tokens, enc_out, mask, params):
    B, S = tokens.shape
    D = params["word_emb"].shape[1]
    V = params["lin_w"].shape[1]
    # TODO(synk): embedding lookup is a gather; kept as plain-JAX glue (jnp.take).
    # sqrt(D) is pre-folded into the table; positional-embedding add fused here.
    x = jnp.take(params["word_emb"], tokens, axis=0) + params["pe"][:, :S, :]
    x = x.astype(jnp.bfloat16)
    enc = enc_out.astype(jnp.bfloat16)
    # top-level dropout = identity (eval)
    for layer in params["layers"]:
        x = decode_block(enc, x, mask, layer)
    logits = pallas_linear(x.reshape(B * S, D), params["lin_w"], params["lin_b"],
                           out_dtype=jnp.float32)
    return logits.reshape(B, S, V)


# ----------------------------------------------------------------------------
# Deterministic parameter construction (weights pre-cast to bf16 once)
# ----------------------------------------------------------------------------

def make_positional_encoding(seq_len, d):
    pe = np.zeros((seq_len, d), dtype=np.float32)
    for pos in range(seq_len):
        for i in range(0, d, 2):
            pe[pos, i] = math.sin(pos / (10000 ** (2 * i / d)))
            if i + 1 < d:
                pe[pos, i + 1] = math.cos(pos / (10000 ** (2 * (i + 1) / d)))
    return jnp.asarray(pe)[None]  # (1, seq_len, d)


def init_mha(key, D, H):
    Dh = D // H
    k1, k2, k3, k4, k5 = jax.random.split(key, 5)
    sc = 0.05
    wq = sc * jax.random.normal(k1, (Dh, Dh), jnp.float32)
    wk = sc * jax.random.normal(k2, (Dh, Dh), jnp.float32)
    wv = sc * jax.random.normal(k3, (Dh, Dh), jnp.float32)
    wo = sc * jax.random.normal(k4, (D, D), jnp.float32)
    bo = sc * jax.random.normal(k5, (D,), jnp.float32)
    eye = jnp.eye(H, dtype=jnp.float32)
    # Shared per-head (Dh,Dh) projections == one block-diagonal (D,D) matmul.
    # Built ONCE here (bf16), never per forward.
    wqkv = jnp.stack([jnp.kron(eye, wq), jnp.kron(eye, wk), jnp.kron(eye, wv)], 0)
    return {
        "wqkv": wqkv.astype(jnp.bfloat16),                 # (3, D, D)
        "wo_h": wo.reshape(H, Dh, D).astype(jnp.bfloat16), # head-major out-proj
        "bo": bo,                                          # f32 (tiny)
    }


def init_decode_block(key, D, H, EF):
    ks = jax.random.split(key, 6)
    sc = 0.05
    return {
        "self_attn": init_mha(ks[0], D, H),
        "ng": jnp.ones((D,), jnp.float32),
        "nb": jnp.zeros((D,), jnp.float32),
        "enc": {
            "attn": init_mha(ks[1], D, H),
            "g1": jnp.ones((D,), jnp.float32),
            "b1": jnp.zeros((D,), jnp.float32),
            "g2": jnp.ones((D,), jnp.float32),
            "b2": jnp.zeros((D,), jnp.float32),
            "w_ff1": (sc * jax.random.normal(ks[2], (D, EF * D), jnp.float32)
                      ).astype(jnp.bfloat16),
            "b_ff1": sc * jax.random.normal(ks[3], (EF * D,), jnp.float32),
            "w_ff2": (sc * jax.random.normal(ks[4], (EF * D, D), jnp.float32)
                      ).astype(jnp.bfloat16),
            "b_ff2": sc * jax.random.normal(ks[5], (D,), jnp.float32),
        },
    }


def init_decoder(key, V, D, seq_len, num_layers, EF, H):
    ks = jax.random.split(key, num_layers + 3)
    sc = 0.05
    return {
        # sqrt(D) embedding scale folded into the table at init.
        "word_emb": (sc * math.sqrt(D)
                     * jax.random.normal(ks[0], (V, D), jnp.float32)),
        "pe": make_positional_encoding(seq_len, D),
        "layers": [init_decode_block(ks[1 + i], D, H, EF) for i in range(num_layers)],
        "lin_w": (sc * jax.random.normal(ks[-2], (D, V), jnp.float32)
                  ).astype(jnp.bfloat16),
        "lin_b": sc * jax.random.normal(ks[-1], (V,), jnp.float32),
    }


# ----------------------------------------------------------------------------
# Main
# ----------------------------------------------------------------------------

if __name__ == "__main__":
    B, S, D, H, V = 2, 8, 32, 8, 64
    NUM_LAYERS, EF = 2, 4

    root = jax.random.PRNGKey(0)
    k_params, k_tok, k_enc = jax.random.split(root, 3)

    params = init_decoder(k_params, V, D, S, NUM_LAYERS, EF, H)
    tokens = jax.random.randint(k_tok, (B, S), 0, V)                  # int ids
    enc_out = jax.random.normal(k_enc, (B, S, D), jnp.float32)
    # Shared causal mask (1,1,S,S) — NOT replicated per batch element.
    mask = jnp.tril(jnp.ones((S, S), jnp.float32))[None, None]

    logits = transformer_decoder(tokens, enc_out, mask, params)
    jax.block_until_ready(logits)
    assert logits.shape == (B, S, V), logits.shape
    assert bool(jnp.all(jnp.isfinite(logits)))
    print("KERNEL_OK")
</pallas_src>

<mosaic_0001>
module attributes {stable_mosaic.version = 11 : i64} {
  func.func @_linear_kernel(%arg0: i32, %arg1: i32, %arg2: i32, %arg3: memref<16x32xbf16, #tpu.memory_space<vmem>>, %arg4: memref<32x128xbf16, #tpu.memory_space<vmem>>, %arg5: memref<1x128xf32, #tpu.memory_space<vmem>>, %arg6: memref<16x128xbf16, #tpu.memory_space<vmem>>, %arg7: memref<16x128xf32, #tpu.memory_space<vmem>>) attributes {dimension_semantics = [#tpu.dimension_semantics<parallel>, #tpu.dimension_semantics<parallel>, #tpu.dimension_semantics<arbitrary>], iteration_bounds = array<i64: 1, 1, 1>, scalar_prefetch = 0 : i64, scratch_operands = 1 : i64, tpu.core_type = #tpu.core_type<tc>, window_params = [{transform_indices = @transform_0, window_bounds = array<i64: 16, 32>}, {transform_indices = @transform_1, window_bounds = array<i64: 32, 128>}, {transform_indices = @transform_2, window_bounds = array<i64: 1, 128>}, {transform_indices = @transform_3, window_bounds = array<i64: 16, 128>}]} {
    %c0_i32 = arith.constant 0 : i32
    %0 = arith.cmpi eq, %arg2, %c0_i32 : i32
    %1 = arith.extui %0 : i1 to i32
    %c0_i32_0 = arith.constant 0 : i32
    %2 = arith.cmpi ne, %1, %c0_i32_0 : i32
    scf.if %2 {
      %cst_10 = arith.constant 0.000000e+00 : f32
      %12 = vector.broadcast %cst_10 : f32 to vector<16x128xf32>
      %c0_11 = arith.constant 0 : index
      %c0_12 = arith.constant 0 : index
      %13 = vector.load %arg7[%c0_11, %c0_12] : memref<16x128xf32, #tpu.memory_space<vmem>>, vector<16x128xf32>
      tpu.vector_store %arg7[%c0_11, %c0_12], %12 {strides = array<i32>} : memref<16x128xf32, #tpu.memory_space<vmem>>, vector<16x128xf32>,
    } else {
    }
    %c0 = arith.constant 0 : index
    %c0_1 = arith.constant 0 : index
    %3 = vector.load %arg7[%c0, %c0_1] : memref<16x128xf32, #tpu.memory_space<vmem>>, vector<16x128xf32>
    %c0_2 = arith.constant 0 : index
    %c0_3 = arith.constant 0 : index
    %4 = vector.load %arg3[%c0_2, %c0_3] : memref<16x32xbf16, #tpu.memory_space<vmem>>, vector<16x32xbf16>
    %c0_4 = arith.constant 0 : index
    %c0_5 = arith.constant 0 : index
    %5 = vector.load %arg4[%c0_4, %c0_5] : memref<32x128xbf16, #tpu.memory_space<vmem>>, vector<32x128xbf16>
    %cst = arith.constant dense<0.000000e+00> : vector<16x128xf32>
    %6 = tpu.matmul %4, %5, %cst {dimension_numbers = #tpu.dot_dimension_numbers<[1], [0], [0], [1], [0, 0, 1, 1], [], []>} : vector<16x32xbf16>, vector<32x128xbf16>, vector<16x128xf32> -> vector<16x128xf32>
    %7 = arith.addf %3, %6 : vector<16x128xf32>
    %c0_6 = arith.constant 0 : index
    %c0_7 = arith.constant 0 : index
    %8 = vector.load %arg7[%c0_6, %c0_7] : memref<16x128xf32, #tpu.memory_space<vmem>>, vector<16x128xf32>
    tpu.vector_store %arg7[%c0_6, %c0_7], %7 {strides = array<i32>} : memref<16x128xf32, #tpu.memory_space<vmem>>, vector<16x128xf32>,
    %c0_i32_8 = arith.constant 0 : i32
    %9 = arith.cmpi eq, %arg2, %c0_i32_8 : i32
    %10 = arith.extui %9 : i1 to i32
    %c0_i32_9 = arith.constant 0 : i32
    %11 = arith.cmpi ne, %10, %c0_i32_9 : i32
    scf.if %11 {
      %c0_10 = arith.constant 0 : index
      %c0_11 = arith.constant 0 : index
      %12 = vector.load %arg7[%c0_10, %c0_11] : memref<16x128xf32, #tpu.memory_space<vmem>>, vector<16x128xf32>
      %c0_12 = arith.constant 0 : index
      %c0_13 = arith.constant 0 : index
      %13 = vector.load %arg5[%c0_12, %c0_13] : memref<1x128xf32, #tpu.memory_space<vmem>>, vector<1x128xf32>
      %14 = vector.broadcast %13 : vector<1x128xf32> to vector<16x128xf32>
      %15 = arith.addf %12, %14 : vector<16x128xf32>
      %cst_14 = arith.constant 0.000000e+00 : f32
      %16 = vector.broadcast %cst_14 : f32 to vector<16x128xf32>
      %17 = arith.maximumf %15, %16 : vector<16x128xf32>
      %18 = arith.truncf %17 : vector<16x128xf32> to vector<16x128xbf16>
      %c0_15 = arith.constant 0 : index
      %c0_16 = arith.constant 0 : index
      %19 = vector.load %arg6[%c0_15, %c0_16] : memref<16x128xbf16, #tpu.memory_space<vmem>>, vector<16x128xbf16>
      tpu.vector_store %arg6[%c0_15, %c0_16], %18 {strides = array<i32>} : memref<16x128xbf16, #tpu.memory_space<vmem>>, vector<16x128xbf16>,
    } else {
    }
    return
  }
  func.func @transform_0(%arg0: i32, %arg1: i32, %arg2: i32) -> (i32, i32) {
    %c0_i32 = arith.constant 0 : i32
    return %arg0, %arg2 : i32, i32
  }
  func.func @transform_1(%arg0: i32, %arg1: i32, %arg2: i32) -> (i32, i32) {
    %c0_i32 = arith.constant 0 : i32
    return %arg2, %arg1 : i32, i32
  }
  func.func @transform_2(%arg0: i32, %arg1: i32, %arg2: i32) -> (i32, i32) {
    %c0_i32 = arith.constant 0 : i32
    %c0_i32_0 = arith.constant 0 : i32
    return %c0_i32, %arg1 : i32, i32
  }
  func.func @transform_3(%arg0: i32, %arg1: i32, %arg2: i32) -> (i32, i32) {
    %c0_i32 = arith.constant 0 : i32
    return %arg0, %arg1 : i32, i32
  }
}

module attributes {stable_mosaic.version = 11 : i64} {
  func.func @_attn_block_kernel(%arg0: i32, %arg1: memref<1x8x32xbf16, #tpu.memory_space<vmem>>, %arg2: memref<1x8x32xbf16, #tpu.memory_space<vmem>>, %arg3: memref<1x8x32xbf16, #tpu.memory_space<vmem>>, %arg4: memref<1x8x32xbf16, #tpu.memory_space<vmem>>, %arg5: memref<3x32x32xbf16, #tpu.memory_space<vmem>>, %arg6: memref<8x4x32xbf16, #tpu.memory_space<vmem>>, %arg7: memref<1x32xf32, #tpu.memory_space<vmem>>, %arg8: memref<1x32xf32, #tpu.memory_space<vmem>>, %arg9: memref<1x32xf32, #tpu.memory_space<vmem>>, %arg10: memref<1x8x32xbf16, #tpu.memory_space<vmem>>) attributes {dimension_semantics = [#tpu.dimension_semantics<parallel>], iteration_bounds = array<i64: 2>, scalar_prefetch = 0 : i64, scratch_operands = 0 : i64, tpu.core_type = #tpu.core_type<tc>, window_params = [{transform_indices = @transform_0, window_bounds = array<i64: 1, 8, 32>}, {transform_indices = @transform_1, window_bounds = array<i64: 1, 8, 32>}, {transform_indices = @transform_2, window_bounds = array<i64: 1, 8, 32>}, {transform_indices = @transform_3, window_bounds = array<i64: 1, 8, 32>}, {pipeline_mode = #tpu.pipeline_mode<synchronous>, transform_indices = @transform_4, window_bounds = array<i64: 3, 32, 32>}, {pipeline_mode = #tpu.pipeline_mode<synchronous>, transform_indices = @transform_5, window_bounds = array<i64: 8, 4, 32>}, {pipeline_mode = #tpu.pipeline_mode<synchronous>, transform_indices = @transform_6, window_bounds = array<i64: 1, 32>}, {pipeline_mode = #tpu.pipeline_mode<synchronous>, transform_indices = @transform_7, window_bounds = array<i64: 1, 32>}, {pipeline_mode = #tpu.pipeline_mode<synchronous>, transform_indices = @transform_8, window_bounds = array<i64: 1, 32>}, {transform_indices = @transform_9, window_bounds = array<i64: 1, 8, 32>}]} {
    %c0 = arith.constant 0 : index
    %c0_0 = arith.constant 0 : index
    %c0_1 = arith.constant 0 : index
    %0 = vector.load %arg1[%c0, %c0_0, %c0_1] : memref<1x8x32xbf16, #tpu.memory_space<vmem>>, vector<1x8x32xbf16>
    %1 = vector.shape_cast %0 : vector<1x8x32xbf16> to vector<8x32xbf16>
    %c0_2 = arith.constant 0 : index
    %c0_3 = arith.constant 0 : index
    %c0_4 = arith.constant 0 : index
    %2 = vector.load %arg2[%c0_2, %c0_3, %c0_4] : memref<1x8x32xbf16, #tpu.memory_space<vmem>>, vector<1x8x32xbf16>
    %3 = vector.shape_cast %2 : vector<1x8x32xbf16> to vector<8x32xbf16>
    %c0_5 = arith.constant 0 : index
    %c0_6 = arith.constant 0 : index
    %c0_7 = arith.constant 0 : index
    %4 = vector.load %arg3[%c0_5, %c0_6, %c0_7] : memref<1x8x32xbf16, #tpu.memory_space<vmem>>, vector<1x8x32xbf16>
    %5 = vector.shape_cast %4 : vector<1x8x32xbf16> to vector<8x32xbf16>
    %c0_8 = arith.constant 0 : index
    %c0_9 = arith.constant 0 : index
    %c0_10 = arith.constant 0 : index
    %6 = vector.load %arg5[%c0_8, %c0_9, %c0_10] : memref<3x32x32xbf16, #tpu.memory_space<vmem>>, vector<1x32x32xbf16>
    %7 = vector.shape_cast %6 : vector<1x32x32xbf16> to vector<32x32xbf16>
    %cst = arith.constant dense<0.000000e+00> : vector<8x32xf32>
    %8 = tpu.matmul %1, %7, %cst {dimension_numbers = #tpu.dot_dimension_numbers<[1], [0], [0], [1], [0, 0, 1, 1], [], []>} : vector<8x32xbf16>, vector<32x32xbf16>, vector<8x32xf32> -> vector<8x32xf32>
    %cst_11 = arith.constant 5.000000e-01 : f32
    %9 = vector.broadcast %cst_11 : f32 to vector<8x32xf32>
    %10 = arith.mulf %8, %9 : vector<8x32xf32>
    %11 = arith.truncf %10 : vector<8x32xf32> to vector<8x32xbf16>
    %c1 = arith.constant 1 : index
    %c0_12 = arith.constant 0 : index
    %c0_13 = arith.constant 0 : index
    %12 = vector.load %arg5[%c1, %c0_12, %c0_13] : memref<3x32x32xbf16, #tpu.memory_space<vmem>>, vector<1x32x32xbf16>
    %13 = vector.shape_cast %12 : vector<1x32x32xbf16> to vector<32x32xbf16>
    %cst_14 = arith.constant dense<0.000000e+00> : vector<8x32xf32>
    %14 = tpu.matmul %3, %13, %cst_14 {dimension_numbers = #tpu.dot_dimension_numbers<[1], [0], [0], [1], [0, 0, 1, 1], [], []>} : vector<8x32xbf16>, vector<32x32xbf16>, vector<8x32xf32> -> vector<8x32xf32>
    %15 = arith.truncf %14 : vector<8x32xf32> to vector<8x32xbf16>
    %c2 = arith.constant 2 : index
    %c0_15 = arith.constant 0 : index
    %c0_16 = arith.constant 0 : index
    %16 = vector.load %arg5[%c2, %c0_15, %c0_16] : memref<3x32x32xbf16, #tpu.memory_space<vmem>>, vector<1x32x32xbf16>
    %17 = vector.shape_cast %16 : vector<1x32x32xbf16> to vector<32x32xbf16>
    %cst_17 = arith.constant dense<0.000000e+00> : vector<8x32xf32>
    %18 = tpu.matmul %5, %17, %cst_17 {dimension_numbers = #tpu.dot_dimension_numbers<[1], [0], [0], [1], [0, 0, 1, 1], [], []>} : vector<8x32xbf16>, vector<32x32xbf16>, vector<8x32xf32> -> vector<8x32xf32>
    %19 = arith.truncf %18 : vector<8x32xf32> to vector<8x32xbf16>
    %cst_18 = arith.constant 0.000000e+00 : f32
    %20 = vector.broadcast %cst_18 : f32 to vector<8x32xf32>
    %21 = vector.extract_strided_slice %11 {offsets = [0, 0], sizes = [8, 4], strides = [1, 1]} : vector<8x32xbf16> to vector<8x4xbf16>
    %22 = vector.extract_strided_slice %15 {offsets = [0, 0], sizes = [8, 4], strides = [1, 1]} : vector<8x32xbf16> to vector<8x4xbf16>
    %cst_19 = arith.constant dense<0.000000e+00> : vector<8x8xf32>
    %23 = tpu.matmul %21, %22, %cst_19 {dimension_numbers = #tpu.dot_dimension_numbers<[1], [1], [0], [0], [0, 0, 1, 0], [], []>} : vector<8x4xbf16>, vector<8x4xbf16>, vector<8x8xf32> -> vector<8x8xf32>
    %cst_20 = arith.constant dense<0xFF800000> : vector<8xf32>
    %24 = vector.multi_reduction <maximumf>, %23, %cst_20 [1] : vector<8x8xf32> to vector<8xf32>
    %25 = vector.shape_cast %24 : vector<8xf32> to vector<8x1xf32>
    %26 = vector.broadcast %25 : vector<8x1xf32> to vector<8x8xf32>
    %27 = arith.subf %23, %26 : vector<8x8xf32>
    %28 = math.exp %27 : vector<8x8xf32>
    %cst_21 = arith.constant dense<0.000000e+00> : vector<8xf32>
    %29 = vector.multi_reduction <add>, %28, %cst_21 [1] : vector<8x8xf32> to vector<8xf32>
    %30 = vector.shape_cast %29 : vector<8xf32> to vector<8x1xf32>
    %31 = tpu.reciprocal %30 {approx = true} : vector<8x1xf32> -> vector<8x1xf32>
    %32 = vector.broadcast %31 : vector<8x1xf32> to vector<8x8xf32>
    %33 = arith.mulf %28, %32 : vector<8x8xf32>
    %34 = arith.truncf %33 : vector<8x8xf32> to vector<8x8xbf16>
    %35 = vector.extract_strided_slice %19 {offsets = [0, 0], sizes = [8, 4], strides = [1, 1]} : vector<8x32xbf16> to vector<8x4xbf16>
    %cst_22 = arith.constant dense<0.000000e+00> : vector<8x4xf32>
    %36 = tpu.matmul %34, %35, %cst_22 {dimension_numbers = #tpu.dot_dimension_numbers<[1], [0], [0], [1], [0, 0, 1, 1], [], []>} : vector<8x8xbf16>, vector<8x4xbf16>, vector<8x4xf32> -> vector<8x4xf32>
    %37 = arith.truncf %36 : vector<8x4xf32> to vector<8x4xbf16>
    %c0_23 = arith.constant 0 : index
    %c0_24 = arith.constant 0 : index
    %c0_25 = arith.constant 0 : index
    %38 = vector.load %arg6[%c0_23, %c0_24, %c0_25] : memref<8x4x32xbf16, #tpu.memory_space<vmem>>, vector<1x4x32xbf16>
    %39 = vector.shape_cast %38 : vector<1x4x32xbf16> to vector<4x32xbf16>
    %cst_26 = arith.constant dense<0.000000e+00> : vector<8x32xf32>
    %40 = tpu.matmul %37, %39, %cst_26 {dimension_numbers = #tpu.dot_dimension_numbers<[1], [0], [0], [1], [0, 0, 1, 1], [], []>} : vector<8x4xbf16>, vector<4x32xbf16>, vector<8x32xf32> -> vector<8x32xf32>
    %41 = arith.addf %20, %40 : vector<8x32xf32>
    %42 = vector.extract_strided_slice %11 {offsets = [0, 4], sizes = [8, 4], strides = [1, 1]} : vector<8x32xbf16> to vector<8x4xbf16>
    %43 = vector.extract_strided_slice %15 {offsets = [0, 4], sizes = [8, 4], strides = [1, 1]} : vector<8x32xbf16> to vector<8x4xbf16>
    %cst_27 = arith.constant dense<0.000000e+00> : vector<8x8xf32>
    %44 = tpu.matmul %42, %43, %cst_27 {dimension_numbers = #tpu.dot_dimension_numbers<[1], [1], [0], [0], [0, 0, 1, 0], [], []>} : vector<8x4xbf16>, vector<8x4xbf16>, vector<8x8xf32> -> vector<8x8xf32>
    %cst_28 = arith.constant dense<0xFF800000> : vector<8xf32>
    %45 = vector.multi_reduction <maximumf>, %44, %cst_28 [1] : vector<8x8xf32> to vector<8xf32>
    %46 = vector.shape_cast %45 : vector<8xf32> to vector<8x1xf32>
    %47 = vector.broadcast %46 : vector<8x1xf32> to vector<8x8xf32>
    %48 = arith.subf %44, %47 : vector<8x8xf32>
    %49 = math.exp %48 : vector<8x8xf32>
    %cst_29 = arith.constant dense<0.000000e+00> : vector<8xf32>
    %50 = vector.multi_reduction <add>, %49, %cst_29 [1] : vector<8x8xf32> to vector<8xf32>
    %51 = vector.shape_cast %50 : vector<8xf32> to vector<8x1xf32>
    %52 = tpu.reciprocal %51 {approx = true} : vector<8x1xf32> -> vector<8x1xf32>
    %53 = vector.broadcast %52 : vector<8x1xf32> to vector<8x8xf32>
    %54 = arith.mulf %49, %53 : vector<8x8xf32>
    %55 = arith.truncf %54 : vector<8x8xf32> to vector<8x8xbf16>
    %56 = vector.extract_strided_slice %19 {offsets = [0, 4], sizes = [8, 4], strides = [1, 1]} : vector<8x32xbf16> to vector<8x4xbf16>
    %cst_30 = arith.constant dense<0.000000e+00> : vector<8x4xf32>
    %57 = tpu.matmul %55, %56, %cst_30 {dimension_numbers = #tpu.dot_dimension_numbers<[1], [0], [0], [1], [0, 0, 1, 1], [], []>} : vector<8x8xbf16>, vector<8x4xbf16>, vector<8x4xf32> -> vector<8x4xf32>
    %58 = arith.truncf %57 : vector<8x4xf32> to vector<8x4xbf16>
    %c1_31 = arith.constant 1 : index
    %c0_32 = arith.constant 0 : index
    %c0_33 = arith.constant 0 : index
    %59 = vector.load %arg6[%c1_31, %c0_32, %c0_33] : memref<8x4x32xbf16, #tpu.memory_space<vmem>>, vector<1x4x32xbf16>
    %60 = vector.shape_cast %59 : vector<1x4x32xbf16> to vector<4x32xbf16>
    %cst_34 = arith.constant dense<0.000000e+00> : vector<8x32xf32>
    %61 = tpu.matmul %58, %60, %cst_34 {dimension_numbers = #tpu.dot_dimension_numbers<[1], [0], [0], [1], [0, 0, 1, 1], [], []>} : vector<8x4xbf16>, vector<4x32xbf16>, vector<8x32xf32> -> vector<8x32xf32>
    %62 = arith.addf %41, %61 : vector<8x32xf32>
    %63 = vector.extract_strided_slice %11 {offsets = [0, 8], sizes = [8, 4], strides = [1, 1]} : vector<8x32xbf16> to vector<8x4xbf16>
    %64 = vector.extract_strided_slice %15 {offsets = [0, 8], sizes = [8, 4], strides = [1, 1]} : vector<8x32xbf16> to vector<8x4xbf16>
    %cst_35 = arith.constant dense<0.000000e+00> : vector<8x8xf32>
    %65 = tpu.matmul %63, %64, %cst_35 {dimension_numbers = #tpu.dot_dimension_numbers<[1], [1], [0], [0], [0, 0, 1, 0], [], []>} : vector<8x4xbf16>, vector<8x4xbf16>, vector<8x8xf32> -> vector<8x8xf32>
    %cst_36 = arith.constant dense<0xFF800000> : vector<8xf32>
    %66 = vector.multi_reduction <maximumf>, %65, %cst_36 [1] : vector<8x8xf32> to vector<8xf32>
    %67 = vector.shape_cast %66 : vector<8xf32> to vector<8x1xf32>
    %68 = vector.broadcast %67 : vector<8x1xf32> to vector<8x8xf32>
    %69 = arith.subf %65, %68 : vector<8x8xf32>
    %70 = math.exp %69 : vector<8x8xf32>
    %cst_37 = arith.constant dense<0.000000e+00> : vector<8xf32>
    %71 = vector.multi_reduction <add>, %70, %cst_37 [1] : vector<8x8xf32> to vector<8xf32>
    %72 = vector.shape_cast %71 : vector<8xf32> to vector<8x1xf32>
    %73 = tpu.reciprocal %72 {approx = true} : vector<8x1xf32> -> vector<8x1xf32>
    %74 = vector.broadcast %73 : vector<8x1xf32> to vector<8x8xf32>
    %75 = arith.mulf %70, %74 : vector<8x8xf32>
    %76 = arith.truncf %75 : vector<8x8xf32> to vector<8x8xbf16>
    %77 = vector.extract_strided_slice %19 {offsets = [0, 8], sizes = [8, 4], strides = [1, 1]} : vector<8x32xbf16> to vector<8x4xbf16>
    %cst_38 = arith.constant dense<0.000000e+00> : vector<8x4xf32>
    %78 = tpu.matmul %76, %77, %cst_38 {dimension_numbers = #tpu.dot_dimension_numbers<[1], [0], [0], [1], [0, 0, 1, 1], [], []>} : vector<8x8xbf16>, vector<8x4xbf16>, vector<8x4xf32> -> vector<8x4xf32>
    %79 = arith.truncf %78 : vector<8x4xf32> to vector<8x4xbf16>
    %c2_39 = arith.constant 2 : index
    %c0_40 = arith.constant 0 : index
    %c0_41 = arith.constant 0 : index
    %80 = vector.load %arg6[%c2_39, %c0_40, %c0_41] : memref<8x4x32xbf16, #tpu.memory_space<vmem>>, vector<1x4x32xbf16>
    %81 = vector.shape_cast %80 : vector<1x4x32xbf16> to vector<4x32xbf16>
    %cst_42 = arith.constant dense<0.000000e+00> : vector<8x32xf32>
    %82 = tpu.matmul %79, %81, %cst_42 {dimension_numbers = #tpu.dot_dimension_numbers<[1], [0], [0], [1], [0, 0, 1, 1], [], []>} : vector<8x4xbf16>, vector<4x32xbf16>, vector<8x32xf32> -> vector<8x32xf32>
    %83 = arith.addf %62, %82 : vector<8x32xf32>
    %84 = vector.extract_strided_slice %11 {offsets = [0, 12], sizes = [8, 4], strides = [1, 1]} : vector<8x32xbf16> to vector<8x4xbf16>
    %85 = vector.extract_strided_slice %15 {offsets = [0, 12], sizes = [8, 4], strides = [1, 1]} : vector<8x32xbf16> to vector<8x4xbf16>
    %cst_43 = arith.constant dense<0.000000e+00> : vector<8x8xf32>
    %86 = tpu.matmul %84, %85, %cst_43 {dimension_numbers = #tpu.dot_dimension_numbers<[1], [1], [0], [0], [0, 0, 1, 0], [], []>} : vector<8x4xbf16>, vector<8x4xbf16>, vector<8x8xf32> -> vector<8x8xf32>
    %cst_44 = arith.constant dense<0xFF800000> : vector<8xf32>
    %87 = vector.multi_reduction <maximumf>, %86, %cst_44 [1] : vector<8x8xf32> to vector<8xf32>
    %88 = vector.shape_cast %87 : vector<8xf32> to vector<8x1xf32>
    %89 = vector.broadcast %88 : vector<8x1xf32> to vector<8x8xf32>
    %90 = arith.subf %86, %89 : vector<8x8xf32>
    %91 = math.exp %90 : vector<8x8xf32>
    %cst_45 = arith.constant dense<0.000000e+00> : vector<8xf32>
    %92 = vector.multi_reduction <add>, %91, %cst_45 [1] : vector<8x8xf32> to vector<8xf32>
    %93 = vector.shape_cast %92 : vector<8xf32> to vector<8x1xf32>
    %94 = tpu.reciprocal %93 {approx = true} : vector<8x1xf32> -> vector<8x1xf32>
    %95 = vector.broadcast %94 : vector<8x1xf32> to vector<8x8xf32>
    %96 = arith.mulf %91, %95 : vector<8x8xf32>
    %97 = arith.truncf %96 : vector<8x8xf32> to vector<8x8xbf16>
    %98 = vector.extract_strided_slice %19 {offsets = [0, 12], sizes = [8, 4], strides = [1, 1]} : vector<8x32xbf16> to vector<8x4xbf16>
    %cst_46 = arith.constant dense<0.000000e+00> : vector<8x4xf32>
    %99 = tpu.matmul %97, %98, %cst_46 {dimension_numbers = #tpu.dot_dimension_numbers<[1], [0], [0], [1], [0, 0, 1, 1], [], []>} : vector<8x8xbf16>, vector<8x4xbf16>, vector<8x4xf32> -> vector<8x4xf32>
    %100 = arith.truncf %99 : vector<8x4xf32> to vector<8x4xbf16>
    %c3 = arith.constant 3 : index
    %c0_47 = arith.constant 0 : index
    %c0_48 = arith.constant 0 : index
    %101 = vector.load %arg6[%c3, %c0_47, %c0_48] : memref<8x4x32xbf16, #tpu.memory_space<vmem>>, vector<1x4x32xbf16>
    %102 = vector.shape_cast %101 : vector<1x4x32xbf16> to vector<4x32xbf16>
    %cst_49 = arith.constant dense<0.000000e+00> : vector<8x32xf32>
    %103 = tpu.matmul %100, %102, %cst_49 {dimension_numbers = #tpu.dot_dimension_numbers<[1], [0], [0], [1], [0, 0, 1, 1], [], []>} : vector<8x4xbf16>, vector<4x32xbf16>, vector<8x32xf32> -> vector<8x32xf32>
    %104 = arith.addf %83, %103 : vector<8x32xf32>
    %105 = vector.extract_strided_slice %11 {offsets = [0, 16], sizes = [8, 4], strides = [1, 1]} : vector<8x32xbf16> to vector<8x4xbf16>
    %106 = vector.extract_strided_slice %15 {offsets = [0, 16], sizes = [8, 4], strides = [1, 1]} : vector<8x32xbf16> to vector<8x4xbf16>
    %cst_50 = arith.constant dense<0.000000e+00> : vector<8x8xf32>
    %107 = tpu.matmul %105, %106, %cst_50 {dimension_numbers = #tpu.dot_dimension_numbers<[1], [1], [0], [0], [0, 0, 1, 0], [], []>} : vector<8x4xbf16>, vector<8x4xbf16>, vector<8x8xf32> -> vector<8x8xf32>
    %cst_51 = arith.constant dense<0xFF800000> : vector<8xf32>
    %108 = vector.multi_reduction <maximumf>, %107, %cst_51 [1] : vector<8x8xf32> to vector<8xf32>
    %109 = vector.shape_cast %108 : vector<8xf32> to vector<8x1xf32>
    %110 = vector.broadcast %109 : vector<8x1xf32> to vector<8x8xf32>
    %111 = arith.subf %107, %110 : vector<8x8xf32>
    %112 = math.exp %111 : vector<8x8xf32>
    %cst_52 = arith.constant dense<0.000000e+00> : vector<8xf32>
    %113 = vector.multi_reduction <add>, %112, %cst_52 [1] : vector<8x8xf32> to vector<8xf32>
    %114 = vector.shape_cast %113 : vector<8xf32> to vector<8x1xf32>
    %115 = tpu.reciprocal %114 {approx = true} : vector<8x1xf32> -> vector<8x1xf32>
    %116 = vector.broadcast %115 : vector<8x1xf32> to vector<8x8xf32>
    %117 = arith.mulf %112, %116 : vector<8x8xf32>
    %118 = arith.truncf %117 : vector<8x8xf32> to vector<8x8xbf16>
    %119 = vector.extract_strided_slice %19 {offsets = [0, 16], sizes = [8, 4], strides = [1, 1]} : vector<8x32xbf16> to vector<8x4xbf16>
    %cst_53 = arith.constant dense<0.000000e+00> : vector<8x4xf32>
    %120 = tpu.matmul %118, %119, %cst_53 {dimension_numbers = #tpu.dot_dimension_numbers<[1], [0], [0], [1], [0, 0, 1, 1], [], []>} : vector<8x8xbf16>, vector<8x4xbf16>, vector<8x4xf32> -> vector<8x4xf32>
    %121 = arith.truncf %120 : vector<8x4xf32> to vector<8x4xbf16>
    %c4 = arith.constant 4 : index
    %c0_54 = arith.constant 0 : index
    %c0_55 = arith.constant 0 : index
    %122 = vector.load %arg6[%c4, %c0_54, %c0_55] : memref<8x4x32xbf16, #tpu.memory_space<vmem>>, vector<1x4x32xbf16>
    %123 = vector.shape_cast %122 : vector<1x4x32xbf16> to vector<4x32xbf16>
    %cst_56 = arith.constant dense<0.000000e+00> : vector<8x32xf32>
    %124 = tpu.matmul %121, %123, %cst_56 {dimension_numbers = #tpu.dot_dimension_numbers<[1], [0], [0], [1], [0, 0, 1, 1], [], []>} : vector<8x4xbf16>, vector<4x32xbf16>, vector<8x32xf32> -> vector<8x32xf32>
    %125 = arith.addf %104, %124 : vector<8x32xf32>
    %126 = vector.extract_strided_slice %11 {offsets = [0, 20], sizes = [8, 4], strides = [1, 1]} : vector<8x32xbf16> to vector<8x4xbf16>
    %127 = vector.extract_strided_slice %15 {offsets = [0, 20], sizes = [8, 4], strides = [1, 1]} : vector<8x32xbf16> to vector<8x4xbf16>
    %cst_57 = arith.constant dense<0.000000e+00> : vector<8x8xf32>
    %128 = tpu.matmul %126, %127, %cst_57 {dimension_numbers = #tpu.dot_dimension_numbers<[1], [1], [0], [0], [0, 0, 1, 0], [], []>} : vector<8x4xbf16>, vector<8x4xbf16>, vector<8x8xf32> -> vector<8x8xf32>
    %cst_58 = arith.constant dense<0xFF800000> : vector<8xf32>
    %129 = vector.multi_reduction <maximumf>, %128, %cst_58 [1] : vector<8x8xf32> to vector<8xf32>
    %130 = vector.shape_cast %129 : vector<8xf32> to vector<8x1xf32>
    %131 = vector.broadcast %130 : vector<8x1xf32> to vector<8x8xf32>
    %132 = arith.subf %128, %131 : vector<8x8xf32>
    %133 = math.exp %132 : vector<8x8xf32>
    %cst_59 = arith.constant dense<0.000000e+00> : vector<8xf32>
    %134 = vector.multi_reduction <add>, %133, %cst_59 [1] : vector<8x8xf32> to vector<8xf32>
    %135 = vector.shape_cast %134 : vector<8xf32> to vector<8x1xf32>
    %136 = tpu.reciprocal %135 {approx = true} : vector<8x1xf32> -> vector<8x1xf32>
    %137 = vector.broadcast %136 : vector<8x1xf32> to vector<8x8xf32>
    %138 = arith.mulf %133, %137 : vector<8x8xf32>
    %139 = arith.truncf %138 : vector<8x8xf32> to vector<8x8xbf16>
    %140 = vector.extract_strided_slice %19 {offsets = [0, 20], sizes = [8, 4], strides = [1, 1]} : vector<8x32xbf16> to vector<8x4xbf16>
    %cst_60 = arith.constant dense<0.000000e+00> : vector<8x4xf32>
    %141 = tpu.matmul %139, %140, %cst_60 {dimension_numbers = #tpu.dot_dimension_numbers<[1], [0], [0], [1], [0, 0, 1, 1], [], []>} : vector<8x8xbf16>, vector<8x4xbf16>, vector<8x4xf32> -> vector<8x4xf32>
    %142 = arith.truncf %141 : vector<8x4xf32> to vector<8x4xbf16>
    %c5 = arith.constant 5 : index
    %c0_61 = arith.constant 0 : index
    %c0_62 = arith.constant 0 : index
    %143 = vector.load %arg6[%c5, %c0_61, %c0_62] : memref<8x4x32xbf16, #tpu.memory_space<vmem>>, vector<1x4x32xbf16>
    %144 = vector.shape_cast %143 : vector<1x4x32xbf16> to vector<4x32xbf16>
    %cst_63 = arith.constant dense<0.000000e+00> : vector<8x32xf32>
    %145 = tpu.matmul %142, %144, %cst_63 {dimension_numbers = #tpu.dot_dimension_numbers<[1], [0], [0], [1], [0, 0, 1, 1], [], []>} : vector<8x4xbf16>, vector<4x32xbf16>, vector<8x32xf32> -> vector<8x32xf32>
    %146 = arith.addf %125, %145 : vector<8x32xf32>
    %147 = vector.extract_strided_slice %11 {offsets = [0, 24], sizes = [8, 4], strides = [1, 1]} : vector<8x32xbf16> to vector<8x4xbf16>
    %148 = vector.extract_strided_slice %15 {offsets = [0, 24], sizes = [8, 4], strides = [1, 1]} : vector<8x32xbf16> to vector<8x4xbf16>
    %cst_64 = arith.constant dense<0.000000e+00> : vector<8x8xf32>
    %149 = tpu.matmul %147, %148, %cst_64 {dimension_numbers = #tpu.dot_dimension_numbers<[1], [1], [0], [0], [0, 0, 1, 0], [], []>} : vector<8x4xbf16>, vector<8x4xbf16>, vector<8x8xf32> -> vector<8x8xf32>
    %cst_65 = arith.constant dense<0xFF800000> : vector<8xf32>
    %150 = vector.multi_reduction <maximumf>, %149, %cst_65 [1] : vector<8x8xf32> to vector<8xf32>
    %151 = vector.shape_cast %150 : vector<8xf32> to vector<8x1xf32>
    %152 = vector.broadcast %151 : vector<8x1xf32> to vector<8x8xf32>
    %153 = arith.subf %149, %152 : vector<8x8xf32>
    %154 = math.exp %153 : vector<8x8xf32>
    %cst_66 = arith.constant dense<0.000000e+00> : vector<8xf32>
    %155 = vector.multi_reduction <add>, %154, %cst_66 [1] : vector<8x8xf32> to vector<8xf32>
    %156 = vector.shape_cast %155 : vector<8xf32> to vector<8x1xf32>
    %157 = tpu.reciprocal %156 {approx = true} : vector<8x1xf32> -> vector<8x1xf32>
    %158 = vector.broadcast %157 : vector<8x1xf32> to vector<8x8xf32>
    %159 = arith.mulf %154, %158 : vector<8x8xf32>
    %160 = arith.truncf %159 : vector<8x8xf32> to vector<8x8xbf16>
    %161 = vector.extract_strided_slice %19 {offsets = [0, 24], sizes = [8, 4], strides = [1, 1]} : vector<8x32xbf16> to vector<8x4xbf16>
    %cst_67 = arith.constant dense<0.000000e+00> : vector<8x4xf32>
    %162 = tpu.matmul %160, %161, %cst_67 {dimension_numbers = #tpu.dot_dimension_numbers<[1], [0], [0], [1], [0, 0, 1, 1], [], []>} : vector<8x8xbf16>, vector<8x4xbf16>, vector<8x4xf32> -> vector<8x4xf32>
    %163 = arith.truncf %162 : vector<8x4xf32> to vector<8x4xbf16>
    %c6 = arith.constant 6 : index
    %c0_68 = arith.constant 0 : index
    %c0_69 = arith.constant 0 : index
    %164 = vector.load %arg6[%c6, %c0_68, %c0_69] : memref<8x4x32xbf16, #tpu.memory_space<vmem>>, vector<1x4x32xbf16>
    %165 = vector.shape_cast %164 : vector<1x4x32xbf16> to vector<4x32xbf16>
    %cst_70 = arith.constant dense<0.000000e+00> : vector<8x32xf32>
    %166 = tpu.matmul %163, %165, %cst_70 {dimension_numbers = #tpu.dot_dimension_numbers<[1], [0], [0], [1], [0, 0, 1, 1], [], []>} : vector<8x4xbf16>, vector<4x32xbf16>, vector<8x32xf32> -> vector<8x32xf32>
    %167 = arith.addf %146, %166 : vector<8x32xf32>
    %168 = vector.extract_strided_slice %11 {offsets = [0, 28], sizes = [8, 4], strides = [1, 1]} : vector<8x32xbf16> to vector<8x4xbf16>
    %169 = vector.extract_strided_slice %15 {offsets = [0, 28], sizes = [8, 4], strides = [1, 1]} : vector<8x32xbf16> to vector<8x4xbf16>
    %cst_71 = arith.constant dense<0.000000e+00> : vector<8x8xf32>
    %170 = tpu.matmul %168, %169, %cst_71 {dimension_numbers = #tpu.dot_dimension_numbers<[1], [1], [0], [0], [0, 0, 1, 0], [], []>} : vector<8x4xbf16>, vector<8x4xbf16>, vector<8x8xf32> -> vector<8x8xf32>
    %cst_72 = arith.constant dense<0xFF800000> : vector<8xf32>
    %171 = vector.multi_reduction <maximumf>, %170, %cst_72 [1] : vector<8x8xf32> to vector<8xf32>
    %172 = vector.shape_cast %171 : vector<8xf32> to vector<8x1xf32>
    %173 = vector.broadcast %172 : vector<8x1xf32> to vector<8x8xf32>
    %174 = arith.subf %170, %173 : vector<8x8xf32>
    %175 = math.exp %174 : vector<8x8xf32>
    %cst_73 = arith.constant dense<0.000000e+00> : vector<8xf32>
    %176 = vector.multi_reduction <add>, %175, %cst_73 [1] : vector<8x8xf32> to vector<8xf32>
    %177 = vector.shape_cast %176 : vector<8xf32> to vector<8x1xf32>
    %178 = tpu.reciprocal %177 {approx = true} : vector<8x1xf32> -> vector<8x1xf32>
    %179 = vector.broadcast %178 : vector<8x1xf32> to vector<8x8xf32>
    %180 = arith.mulf %175, %179 : vector<8x8xf32>
    %181 = arith.truncf %180 : vector<8x8xf32> to vector<8x8xbf16>
    %182 = vector.extract_strided_slice %19 {offsets = [0, 28], sizes = [8, 4], strides = [1, 1]} : vector<8x32xbf16> to vector<8x4xbf16>
    %cst_74 = arith.constant dense<0.000000e+00> : vector<8x4xf32>
    %183 = tpu.matmul %181, %182, %cst_74 {dimension_numbers = #tpu.dot_dimension_numbers<[1], [0], [0], [1], [0, 0, 1, 1], [], []>} : vector<8x8xbf16>, vector<8x4xbf16>, vector<8x4xf32> -> vector<8x4xf32>
    %184 = arith.truncf %183 : vector<8x4xf32> to vector<8x4xbf16>
    %c7 = arith.constant 7 : index
    %c0_75 = arith.constant 0 : index
    %c0_76 = arith.constant 0 : index
    %185 = vector.load %arg6[%c7, %c0_75, %c0_76] : memref<8x4x32xbf16, #tpu.memory_space<vmem>>, vector<1x4x32xbf16>
    %186 = vector.shape_cast %185 : vector<1x4x32xbf16> to vector<4x32xbf16>
    %cst_77 = arith.constant dense<0.000000e+00> : vector<8x32xf32>
    %187 = tpu.matmul %184, %186, %cst_77 {dimension_numbers = #tpu.dot_dimension_numbers<[1], [0], [0], [1], [0, 0, 1, 1], [], []>} : vector<8x4xbf16>, vector<4x32xbf16>, vector<8x32xf32> -> vector<8x32xf32>
    %188 = arith.addf %167, %187 : vector<8x32xf32>
    %c0_78 = arith.constant 0 : index
    %c0_79 = arith.constant 0 : index
    %189 = vector.load %arg7[%c0_78, %c0_79] : memref<1x32xf32, #tpu.memory_space<vmem>>, vector<1x32xf32>
    %190 = vector.broadcast %189 : vector<1x32xf32> to vector<8x32xf32>
    %191 = arith.addf %188, %190 : vector<8x32xf32>
    %c0_80 = arith.constant 0 : index
    %c0_81 = arith.constant 0 : index
    %c0_82 = arith.constant 0 : index
    %192 = vector.load %arg4[%c0_80, %c0_81, %c0_82] : memref<1x8x32xbf16, #tpu.memory_space<vmem>>, vector<1x8x32xbf16>
    %193 = vector.shape_cast %192 : vector<1x8x32xbf16> to vector<8x32xbf16>
    %194 = arith.extf %193 : vector<8x32xbf16> to vector<8x32xf32>
    %195 = arith.addf %191, %194 : vector<8x32xf32>
    %cst_83 = arith.constant dense<0.000000e+00> : vector<8xf32>
    %196 = vector.multi_reduction <add>, %195, %cst_83 [1] : vector<8x32xf32> to vector<8xf32>
    %197 = vector.shape_cast %196 : vector<8xf32> to vector<8x1xf32>
    %cst_84 = arith.constant 3.200000e+01 : f32
    %198 = vector.broadcast %cst_84 : f32 to vector<8x1xf32>
    %199 = arith.divf %197, %198 : vector<8x1xf32>
    %200 = vector.broadcast %199 : vector<8x1xf32> to vector<8x32xf32>
    %201 = arith.subf %195, %200 : vector<8x32xf32>
    %202 = arith.mulf %201, %201 : vector<8x32xf32>
    %cst_85 = arith.constant dense<0.000000e+00> : vector<8xf32>
    %203 = vector.multi_reduction <add>, %202, %cst_85 [1] : vector<8x32xf32> to vector<8xf32>
    %204 = vector.shape_cast %203 : vector<8xf32> to vector<8x1xf32>
    %cst_86 = arith.constant 3.200000e+01 : f32
    %205 = vector.broadcast %cst_86 : f32 to vector<8x1xf32>
    %206 = arith.divf %204, %205 : vector<8x1xf32>
    %207 = vector.broadcast %199 : vector<8x1xf32> to vector<8x32xf32>
    %208 = arith.subf %195, %207 : vector<8x32xf32>
    %cst_87 = arith.constant 9.99999974E-6 : f32
    %209 = vector.broadcast %cst_87 : f32 to vector<8x1xf32>
    %210 = arith.addf %206, %209 : vector<8x1xf32>
    %211 = math.rsqrt %210 : vector<8x1xf32>
    %212 = vector.broadcast %211 : vector<8x1xf32> to vector<8x32xf32>
    %213 = arith.mulf %208, %212 : vector<8x32xf32>
    %c0_88 = arith.constant 0 : index
    %c0_89 = arith.constant 0 : index
    %214 = vector.load %arg8[%c0_88, %c0_89] : memref<1x32xf32, #tpu.memory_space<vmem>>, vector<1x32xf32>
    %215 = vector.broadcast %214 : vector<1x32xf32> to vector<8x32xf32>
    %216 = arith.mulf %213, %215 : vector<8x32xf32>
    %c0_90 = arith.constant 0 : index
    %c0_91 = arith.constant 0 : index
    %217 = vector.load %arg9[%c0_90, %c0_91] : memref<1x32xf32, #tpu.memory_space<vmem>>, vector<1x32xf32>
    %218 = vector.broadcast %217 : vector<1x32xf32> to vector<8x32xf32>
    %219 = arith.addf %216, %218 : vector<8x32xf32>
    %220 = vector.shape_cast %219 : vector<8x32xf32> to vector<1x8x32xf32>
    %221 = arith.truncf %220 : vector<1x8x32xf32> to vector<1x8x32xbf16>
    %c0_92 = arith.constant 0 : index
    %c0_93 = arith.constant 0 : index
    %c0_94 = arith.constant 0 : index
    %222 = vector.load %arg10[%c0_92, %c0_93, %c0_94] : memref<1x8x32xbf16, #tpu.memory_space<vmem>>, vector<1x8x32xbf16>
    tpu.vector_store %arg10[%c0_92, %c0_93, %c0_94], %221 {strides = array<i32>} : memref<1x8x32xbf16, #tpu.memory_space<vmem>>, vector<1x8x32xbf16>,
    return
  }
  func.func @transform_0(%arg0: i32) -> (i32, i32, i32) {
    %c0_i32 = arith.constant 0 : i32
    %c0_i32_0 = arith.constant 0 : i32
    %c0_i32_1 = arith.constant 0 : i32
    return %arg0, %c0_i32, %c0_i32_0 : i32, i32, i32
  }
  func.func @transform_1(%arg0: i32) -> (i32, i32, i32) {
    %c0_i32 = arith.constant 0 : i32
    %c0_i32_0 = arith.constant 0 : i32
    %c0_i32_1 = arith.constant 0 : i32
    return %arg0, %c0_i32, %c0_i32_0 : i32, i32, i32
  }
  func.func @transform_2(%arg0: i32) -> (i32, i32, i32) {
    %c0_i32 = arith.constant 0 : i32
    %c0_i32_0 = arith.constant 0 : i32
    %c0_i32_1 = arith.constant 0 : i32
    return %arg0, %c0_i32, %c0_i32_0 : i32, i32, i32
  }
  func.func @transform_3(%arg0: i32) -> (i32, i32, i32) {
    %c0_i32 = arith.constant 0 : i32
    %c0_i32_0 = arith.constant 0 : i32
    %c0_i32_1 = arith.constant 0 : i32
    return %arg0, %c0_i32, %c0_i32_0 : i32, i32, i32
  }
  func.func @transform_4(%arg0: i32) -> (i32, i32, i32) {
    %c0_i32 = arith.constant 0 : i32
    %c0_i32_0 = arith.constant 0 : i32
    %c0_i32_1 = arith.constant 0 : i32
    %c0_i32_2 = arith.constant 0 : i32
    return %c0_i32, %c0_i32_0, %c0_i32_1 : i32, i32, i32
  }
  func.func @transform_5(%arg0: i32) -> (i32, i32, i32) {
    %c0_i32 = arith.constant 0 : i32
    %c0_i32_0 = arith.constant 0 : i32
    %c0_i32_1 = arith.constant 0 : i32
    %c0_i32_2 = arith.constant 0 : i32
    return %c0_i32, %c0_i32_0, %c0_i32_1 : i32, i32, i32
  }
  func.func @transform_6(%arg0: i32) -> (i32, i32) {
    %c0_i32 = arith.constant 0 : i32
    %c0_i32_0 = arith.constant 0 : i32
    %c0_i32_1 = arith.constant 0 : i32
    return %c0_i32, %c0_i32_0 : i32, i32
  }
  func.func @transform_7(%arg0: i32) -> (i32, i32) {
    %c0_i32 = arith.constant 0 : i32
    %c0_i32_0 = arith.constant 0 : i32
    %c0_i32_1 = arith.constant 0 : i32
    return %c0_i32, %c0_i32_0 : i32, i32
  }
  func.func @transform_8(%arg0: i32) -> (i32, i32) {
    %c0_i32 = arith.constant 0 : i32
    %c0_i32_0 = arith.constant 0 : i32
    %c0_i32_1 = arith.constant 0 : i32
    return %c0_i32, %c0_i32_0 : i32, i32
  }
  func.func @transform_9(%arg0: i32) -> (i32, i32, i32) {
    %c0_i32 = arith.constant 0 : i32
    %c0_i32_0 = arith.constant 0 : i32
    %c0_i32_1 = arith.constant 0 : i32
    return %arg0, %c0_i32, %c0_i32_0 : i32, i32, i32
  }
}

module attributes {stable_mosaic.version = 11 : i64} {
  func.func @_linear_res_ln_kernel(%arg0: i32, %arg1: i32, %arg2: memref<16x128xbf16, #tpu.memory_space<vmem>>, %arg3: memref<128x32xbf16, #tpu.memory_space<vmem>>, %arg4: memref<1x32xf32, #tpu.memory_space<vmem>>, %arg5: memref<16x32xbf16, #tpu.memory_space<vmem>>, %arg6: memref<1x32xf32, #tpu.memory_space<vmem>>, %arg7: memref<1x32xf32, #tpu.memory_space<vmem>>, %arg8: memref<16x32xbf16, #tpu.memory_space<vmem>>, %arg9: memref<16x32xf32, #tpu.memory_space<vmem>>) attributes {dimension_semantics = [#tpu.dimension_semantics<parallel>, #tpu.dimension_semantics<arbitrary>], iteration_bounds = array<i64: 1, 1>, scalar_prefetch = 0 : i64, scratch_operands = 1 : i64, tpu.core_type = #tpu.core_type<tc>, window_params = [{transform_indices = @transform_0, window_bounds = array<i64: 16, 128>}, {transform_indices = @transform_1, window_bounds = array<i64: 128, 32>}, {pipeline_mode = #tpu.pipeline_mode<synchronous>, transform_indices = @transform_2, window_bounds = array<i64: 1, 32>}, {transform_indices = @transform_3, window_bounds = array<i64: 16, 32>}, {pipeline_mode = #tpu.pipeline_mode<synchronous>, transform_indices = @transform_4, window_bounds = array<i64: 1, 32>}, {pipeline_mode = #tpu.pipeline_mode<synchronous>, transform_indices = @transform_5, window_bounds = array<i64: 1, 32>}, {transform_indices = @transform_6, window_bounds = array<i64: 16, 32>}]} {
    %c0_i32 = arith.constant 0 : i32
    %0 = arith.cmpi eq, %arg1, %c0_i32 : i32
    %1 = arith.extui %0 : i1 to i32
    %c0_i32_0 = arith.constant 0 : i32
    %2 = arith.cmpi ne, %1, %c0_i32_0 : i32
    scf.if %2 {
      %cst_10 = arith.constant 0.000000e+00 : f32
      %12 = vector.broadcast %cst_10 : f32 to vector<16x32xf32>
      %c0_11 = arith.constant 0 : index
      %c0_12 = arith.constant 0 : index
      %13 = vector.load %arg9[%c0_11, %c0_12] : memref<16x32xf32, #tpu.memory_space<vmem>>, vector<16x32xf32>
      tpu.vector_store %arg9[%c0_11, %c0_12], %12 {strides = array<i32>} : memref<16x32xf32, #tpu.memory_space<vmem>>, vector<16x32xf32>,
    } else {
    }
    %c0 = arith.constant 0 : index
    %c0_1 = arith.constant 0 : index
    %3 = vector.load %arg9[%c0, %c0_1] : memref<16x32xf32, #tpu.memory_space<vmem>>, vector<16x32xf32>
    %c0_2 = arith.constant 0 : index
    %c0_3 = arith.constant 0 : index
    %4 = vector.load %arg2[%c0_2, %c0_3] : memref<16x128xbf16, #tpu.memory_space<vmem>>, vector<16x128xbf16>
    %c0_4 = arith.constant 0 : index
    %c0_5 = arith.constant 0 : index
    %5 = vector.load %arg3[%c0_4, %c0_5] : memref<128x32xbf16, #tpu.memory_space<vmem>>, vector<128x32xbf16>
    %cst = arith.constant dense<0.000000e+00> : vector<16x32xf32>
    %6 = tpu.matmul %4, %5, %cst {dimension_numbers = #tpu.dot_dimension_numbers<[1], [0], [0], [1], [0, 0, 1, 1], [], []>} : vector<16x128xbf16>, vector<128x32xbf16>, vector<16x32xf32> -> vector<16x32xf32>
    %7 = arith.addf %3, %6 : vector<16x32xf32>
    %c0_6 = arith.constant 0 : index
    %c0_7 = arith.constant 0 : index
    %8 = vector.load %arg9[%c0_6, %c0_7] : memref<16x32xf32, #tpu.memory_space<vmem>>, vector<16x32xf32>
    tpu.vector_store %arg9[%c0_6, %c0_7], %7 {strides = array<i32>} : memref<16x32xf32, #tpu.memory_space<vmem>>, vector<16x32xf32>,
    %c0_i32_8 = arith.constant 0 : i32
    %9 = arith.cmpi eq, %arg1, %c0_i32_8 : i32
    %10 = arith.extui %9 : i1 to i32
    %c0_i32_9 = arith.constant 0 : i32
    %11 = arith.cmpi ne, %10, %c0_i32_9 : i32
    scf.if %11 {
      %c0_10 = arith.constant 0 : index
      %c0_11 = arith.constant 0 : index
      %12 = vector.load %arg9[%c0_10, %c0_11] : memref<16x32xf32, #tpu.memory_space<vmem>>, vector<16x32xf32>
      %c0_12 = arith.constant 0 : index
      %c0_13 = arith.constant 0 : index
      %13 = vector.load %arg4[%c0_12, %c0_13] : memref<1x32xf32, #tpu.memory_space<vmem>>, vector<1x32xf32>
      %14 = vector.broadcast %13 : vector<1x32xf32> to vector<16x32xf32>
      %15 = arith.addf %12, %14 : vector<16x32xf32>
      %c0_14 = arith.constant 0 : index
      %c0_15 = arith.constant 0 : index
      %16 = vector.load %arg5[%c0_14, %c0_15] : memref<16x32xbf16, #tpu.memory_space<vmem>>, vector<16x32xbf16>
      %17 = arith.extf %16 : vector<16x32xbf16> to vector<16x32xf32>
      %18 = arith.addf %15, %17 : vector<16x32xf32>
      %cst_16 = arith.constant dense<0.000000e+00> : vector<16xf32>
      %19 = vector.multi_reduction <add>, %18, %cst_16 [1] : vector<16x32xf32> to vector<16xf32>
      %20 = vector.shape_cast %19 : vector<16xf32> to vector<16x1xf32>
      %cst_17 = arith.constant 3.200000e+01 : f32
      %21 = vector.broadcast %cst_17 : f32 to vector<16x1xf32>
      %22 = arith.divf %20, %21 : vector<16x1xf32>
      %23 = vector.broadcast %22 : vector<16x1xf32> to vector<16x32xf32>
      %24 = arith.subf %18, %23 : vector<16x32xf32>
      %25 = arith.mulf %24, %24 : vector<16x32xf32>
      %cst_18 = arith.constant dense<0.000000e+00> : vector<16xf32>
      %26 = vector.multi_reduction <add>, %25, %cst_18 [1] : vector<16x32xf32> to vector<16xf32>
      %27 = vector.shape_cast %26 : vector<16xf32> to vector<16x1xf32>
      %cst_19 = arith.constant 3.200000e+01 : f32
      %28 = vector.broadcast %cst_19 : f32 to vector<16x1xf32>
      %29 = arith.divf %27, %28 : vector<16x1xf32>
      %30 = vector.broadcast %22 : vector<16x1xf32> to vector<16x32xf32>
      %31 = arith.subf %18, %30 : vector<16x32xf32>
      %cst_20 = arith.constant 9.99999974E-6 : f32
      %32 = vector.broadcast %cst_20 : f32 to vector<16x1xf32>
      %33 = arith.addf %29, %32 : vector<16x1xf32>
      %34 = math.rsqrt %33 : vector<16x1xf32>
      %35 = vector.broadcast %34 : vector<16x1xf32> to vector<16x32xf32>
      %36 = arith.mulf %31, %35 : vector<16x32xf32>
      %c0_21 = arith.constant 0 : index
      %c0_22 = arith.constant 0 : index
      %37 = vector.load %arg6[%c0_21, %c0_22] : memref<1x32xf32, #tpu.memory_space<vmem>>, vector<1x32xf32>
      %38 = vector.broadcast %37 : vector<1x32xf32> to vector<16x32xf32>
      %39 = arith.mulf %36, %38 : vector<16x32xf32>
      %c0_23 = arith.constant 0 : index
      %c0_24 = arith.constant 0 : index
      %40 = vector.load %arg7[%c0_23, %c0_24] : memref<1x32xf32, #tpu.memory_space<vmem>>, vector<1x32xf32>
      %41 = vector.broadcast %40 : vector<1x32xf32> to vector<16x32xf32>
      %42 = arith.addf %39, %41 : vector<16x32xf32>
      %43 = arith.truncf %42 : vector<16x32xf32> to vector<16x32xbf16>
      %c0_25 = arith.constant 0 : index
      %c0_26 = arith.constant 0 : index
      %44 = vector.load %arg8[%c0_25, %c0_26] : memref<16x32xbf16, #tpu.memory_space<vmem>>, vector<16x32xbf16>
      tpu.vector_store %arg8[%c0_25, %c0_26], %43 {strides = array<i32>} : memref<16x32xbf16, #tpu.memory_space<vmem>>, vector<16x32xbf16>,
    } else {
    }
    return
  }
  func.func @transform_0(%arg0: i32, %arg1: i32) -> (i32, i32) {
    %c0_i32 = arith.constant 0 : i32
    return %arg0, %arg1 : i32, i32
  }
  func.func @transform_1(%arg0: i32, %arg1: i32) -> (i32, i32) {
    %c0_i32 = arith.constant 0 : i32
    %c0_i32_0 = arith.constant 0 : i32
    return %arg1, %c0_i32 : i32, i32
  }
  func.func @transform_2(%arg0: i32, %arg1: i32) -> (i32, i32) {
    %c0_i32 = arith.constant 0 : i32
    %c0_i32_0 = arith.constant 0 : i32
    %c0_i32_1 = arith.constant 0 : i32
    return %c0_i32, %c0_i32_0 : i32, i32
  }
  func.func @transform_3(%arg0: i32, %arg1: i32) -> (i32, i32) {
    %c0_i32 = arith.constant 0 : i32
    %c0_i32_0 = arith.constant 0 : i32
    return %arg0, %c0_i32 : i32, i32
  }
  func.func @transform_4(%arg0: i32, %arg1: i32) -> (i32, i32) {
    %c0_i32 = arith.constant 0 : i32
    %c0_i32_0 = arith.constant 0 : i32
    %c0_i32_1 = arith.constant 0 : i32
    return %c0_i32, %c0_i32_0 : i32, i32
  }
  func.func @transform_5(%arg0: i32, %arg1: i32) -> (i32, i32) {
    %c0_i32 = arith.constant 0 : i32
    %c0_i32_0 = arith.constant 0 : i32
    %c0_i32_1 = arith.constant 0 : i32
    return %c0_i32, %c0_i32_0 : i32, i32
  }
  func.func @transform_6(%arg0: i32, %arg1: i32) -> (i32, i32) {
    %c0_i32 = arith.constant 0 : i32
    %c0_i32_0 = arith.constant 0 : i32
    return %arg0, %c0_i32 : i32, i32
  }
}

module attributes {stable_mosaic.version = 11 : i64} {
  func.func @_attn_block_kernel(%arg0: i32, %arg1: memref<1x8x32xbf16, #tpu.memory_space<vmem>>, %arg2: memref<1x8x32xbf16, #tpu.memory_space<vmem>>, %arg3: memref<1x8x32xbf16, #tpu.memory_space<vmem>>, %arg4: memref<1x8x32xbf16, #tpu.memory_space<vmem>>, %arg5: memref<3x32x32xbf16, #tpu.memory_space<vmem>>, %arg6: memref<8x4x32xbf16, #tpu.memory_space<vmem>>, %arg7: memref<1x32xf32, #tpu.memory_space<vmem>>, %arg8: memref<1x32xf32, #tpu.memory_space<vmem>>, %arg9: memref<1x32xf32, #tpu.memory_space<vmem>>, %arg10: memref<1x1x8x8xf32, #tpu.memory_space<vmem>>, %arg11: memref<1x8x32xbf16, #tpu.memory_space<vmem>>) attributes {dimension_semantics = [#tpu.dimension_semantics<parallel>], iteration_bounds = array<i64: 2>, scalar_prefetch = 0 : i64, scratch_operands = 0 : i64, tpu.core_type = #tpu.core_type<tc>, window_params = [{transform_indices = @transform_0, window_bounds = array<i64: 1, 8, 32>}, {transform_indices = @transform_1, window_bounds = array<i64: 1, 8, 32>}, {transform_indices = @transform_2, window_bounds = array<i64: 1, 8, 32>}, {transform_indices = @transform_3, window_bounds = array<i64: 1, 8, 32>}, {pipeline_mode = #tpu.pipeline_mode<synchronous>, transform_indices = @transform_4, window_bounds = array<i64: 3, 32, 32>}, {pipeline_mode = #tpu.pipeline_mode<synchronous>, transform_indices = @transform_5, window_bounds = array<i64: 8, 4, 32>}, {pipeline_mode = #tpu.pipeline_mode<synchronous>, transform_indices = @transform_6, window_bounds = array<i64: 1, 32>}, {pipeline_mode = #tpu.pipeline_mode<synchronous>, transform_indices = @transform_7, window_bounds = array<i64: 1, 32>}, {pipeline_mode = #tpu.pipeline_mode<synchronous>, transform_indices = @transform_8, window_bounds = array<i64: 1, 32>}, {pipeline_mode = #tpu.pipeline_mode<synchronous>, transform_indices = @transform_9, window_bounds = array<i64: 1, 1, 8, 8>}, {transform_indices = @transform_10, window_bounds = array<i64: 1, 8, 32>}]} {
    %c0 = arith.constant 0 : index
    %c0_0 = arith.constant 0 : index
    %c0_1 = arith.constant 0 : index
    %0 = vector.load %arg1[%c0, %c0_0, %c0_1] : memref<1x8x32xbf16, #tpu.memory_space<vmem>>, vector<1x8x32xbf16>
    %1 = vector.shape_cast %0 : vector<1x8x32xbf16> to vector<8x32xbf16>
    %c0_2 = arith.constant 0 : index
    %c0_3 = arith.constant 0 : index
    %c0_4 = arith.constant 0 : index
    %2 = vector.load %arg2[%c0_2, %c0_3, %c0_4] : memref<1x8x32xbf16, #tpu.memory_space<vmem>>, vector<1x8x32xbf16>
    %3 = vector.shape_cast %2 : vector<1x8x32xbf16> to vector<8x32xbf16>
    %c0_5 = arith.constant 0 : index
    %c0_6 = arith.constant 0 : index
    %c0_7 = arith.constant 0 : index
    %4 = vector.load %arg3[%c0_5, %c0_6, %c0_7] : memref<1x8x32xbf16, #tpu.memory_space<vmem>>, vector<1x8x32xbf16>
    %5 = vector.shape_cast %4 : vector<1x8x32xbf16> to vector<8x32xbf16>
    %c0_8 = arith.constant 0 : index
    %c0_9 = arith.constant 0 : index
    %c0_10 = arith.constant 0 : index
    %6 = vector.load %arg5[%c0_8, %c0_9, %c0_10] : memref<3x32x32xbf16, #tpu.memory_space<vmem>>, vector<1x32x32xbf16>
    %7 = vector.shape_cast %6 : vector<1x32x32xbf16> to vector<32x32xbf16>
    %cst = arith.constant dense<0.000000e+00> : vector<8x32xf32>
    %8 = tpu.matmul %1, %7, %cst {dimension_numbers = #tpu.dot_dimension_numbers<[1], [0], [0], [1], [0, 0, 1, 1], [], []>} : vector<8x32xbf16>, vector<32x32xbf16>, vector<8x32xf32> -> vector<8x32xf32>
    %cst_11 = arith.constant 5.000000e-01 : f32
    %9 = vector.broadcast %cst_11 : f32 to vector<8x32xf32>
    %10 = arith.mulf %8, %9 : vector<8x32xf32>
    %11 = arith.truncf %10 : vector<8x32xf32> to vector<8x32xbf16>
    %c1 = arith.constant 1 : index
    %c0_12 = arith.constant 0 : index
    %c0_13 = arith.constant 0 : index
    %12 = vector.load %arg5[%c1, %c0_12, %c0_13] : memref<3x32x32xbf16, #tpu.memory_space<vmem>>, vector<1x32x32xbf16>
    %13 = vector.shape_cast %12 : vector<1x32x32xbf16> to vector<32x32xbf16>
    %cst_14 = arith.constant dense<0.000000e+00> : vector<8x32xf32>
    %14 = tpu.matmul %3, %13, %cst_14 {dimension_numbers = #tpu.dot_dimension_numbers<[1], [0], [0], [1], [0, 0, 1, 1], [], []>} : vector<8x32xbf16>, vector<32x32xbf16>, vector<8x32xf32> -> vector<8x32xf32>
    %15 = arith.truncf %14 : vector<8x32xf32> to vector<8x32xbf16>
    %c2 = arith.constant 2 : index
    %c0_15 = arith.constant 0 : index
    %c0_16 = arith.constant 0 : index
    %16 = vector.load %arg5[%c2, %c0_15, %c0_16] : memref<3x32x32xbf16, #tpu.memory_space<vmem>>, vector<1x32x32xbf16>
    %17 = vector.shape_cast %16 : vector<1x32x32xbf16> to vector<32x32xbf16>
    %cst_17 = arith.constant dense<0.000000e+00> : vector<8x32xf32>
    %18 = tpu.matmul %5, %17, %cst_17 {dimension_numbers = #tpu.dot_dimension_numbers<[1], [0], [0], [1], [0, 0, 1, 1], [], []>} : vector<8x32xbf16>, vector<32x32xbf16>, vector<8x32xf32> -> vector<8x32xf32>
    %19 = arith.truncf %18 : vector<8x32xf32> to vector<8x32xbf16>
    %c0_18 = arith.constant 0 : index
    %c0_19 = arith.constant 0 : index
    %c0_20 = arith.constant 0 : index
    %c0_21 = arith.constant 0 : index
    %20 = vector.load %arg10[%c0_18, %c0_19, %c0_20, %c0_21] : memref<1x1x8x8xf32, #tpu.memory_space<vmem>>, vector<1x1x8x8xf32>
    %21 = vector.shape_cast %20 : vector<1x1x8x8xf32> to vector<8x8xf32>
    %cst_22 = arith.constant 0.000000e+00 : f32
    %22 = vector.broadcast %cst_22 : f32 to vector<8x32xf32>
    %23 = vector.extract_strided_slice %11 {offsets = [0, 0], sizes = [8, 4], strides = [1, 1]} : vector<8x32xbf16> to vector<8x4xbf16>
    %24 = vector.extract_strided_slice %15 {offsets = [0, 0], sizes = [8, 4], strides = [1, 1]} : vector<8x32xbf16> to vector<8x4xbf16>
    %cst_23 = arith.constant dense<0.000000e+00> : vector<8x8xf32>
    %25 = tpu.matmul %23, %24, %cst_23 {dimension_numbers = #tpu.dot_dimension_numbers<[1], [1], [0], [0], [0, 0, 1, 0], [], []>} : vector<8x4xbf16>, vector<8x4xbf16>, vector<8x8xf32> -> vector<8x8xf32>
    %cst_24 = arith.constant 0.000000e+00 : f32
    %26 = vector.broadcast %cst_24 : f32 to vector<8x8xf32>
    %27 = arith.cmpf oeq, %21, %26 : vector<8x8xf32>
    %cst_25 = arith.constant -5.000000e+19 : f32
    %28 = vector.broadcast %cst_25 : f32 to vector<8x8xf32>
    %29 = arith.select %27, %28, %25 : vector<8x8xi1>, vector<8x8xf32>
    %cst_26 = arith.constant dense<0xFF800000> : vector<8xf32>
    %30 = vector.multi_reduction <maximumf>, %29, %cst_26 [1] : vector<8x8xf32> to vector<8xf32>
    %31 = vector.shape_cast %30 : vector<8xf32> to vector<8x1xf32>
    %32 = vector.broadcast %31 : vector<8x1xf32> to vector<8x8xf32>
    %33 = arith.subf %29, %32 : vector<8x8xf32>
    %34 = math.exp %33 : vector<8x8xf32>
    %cst_27 = arith.constant dense<0.000000e+00> : vector<8xf32>
    %35 = vector.multi_reduction <add>, %34, %cst_27 [1] : vector<8x8xf32> to vector<8xf32>
    %36 = vector.shape_cast %35 : vector<8xf32> to vector<8x1xf32>
    %37 = tpu.reciprocal %36 {approx = true} : vector<8x1xf32> -> vector<8x1xf32>
    %38 = vector.broadcast %37 : vector<8x1xf32> to vector<8x8xf32>
    %39 = arith.mulf %34, %38 : vector<8x8xf32>
    %40 = arith.truncf %39 : vector<8x8xf32> to vector<8x8xbf16>
    %41 = vector.extract_strided_slice %19 {offsets = [0, 0], sizes = [8, 4], strides = [1, 1]} : vector<8x32xbf16> to vector<8x4xbf16>
    %cst_28 = arith.constant dense<0.000000e+00> : vector<8x4xf32>
    %42 = tpu.matmul %40, %41, %cst_28 {dimension_numbers = #tpu.dot_dimension_numbers<[1], [0], [0], [1], [0, 0, 1, 1], [], []>} : vector<8x8xbf16>, vector<8x4xbf16>, vector<8x4xf32> -> vector<8x4xf32>
    %43 = arith.truncf %42 : vector<8x4xf32> to vector<8x4xbf16>
    %c0_29 = arith.constant 0 : index
    %c0_30 = arith.constant 0 : index
    %c0_31 = arith.constant 0 : index
    %44 = vector.load %arg6[%c0_29, %c0_30, %c0_31] : memref<8x4x32xbf16, #tpu.memory_space<vmem>>, vector<1x4x32xbf16>
    %45 = vector.shape_cast %44 : vector<1x4x32xbf16> to vector<4x32xbf16>
    %cst_32 = arith.constant dense<0.000000e+00> : vector<8x32xf32>
    %46 = tpu.matmul %43, %45, %cst_32 {dimension_numbers = #tpu.dot_dimension_numbers<[1], [0], [0], [1], [0, 0, 1, 1], [], []>} : vector<8x4xbf16>, vector<4x32xbf16>, vector<8x32xf32> -> vector<8x32xf32>
    %47 = arith.addf %22, %46 : vector<8x32xf32>
    %48 = vector.extract_strided_slice %11 {offsets = [0, 4], sizes = [8, 4], strides = [1, 1]} : vector<8x32xbf16> to vector<8x4xbf16>
    %49 = vector.extract_strided_slice %15 {offsets = [0, 4], sizes = [8, 4], strides = [1, 1]} : vector<8x32xbf16> to vector<8x4xbf16>
    %cst_33 = arith.constant dense<0.000000e+00> : vector<8x8xf32>
    %50 = tpu.matmul %48, %49, %cst_33 {dimension_numbers = #tpu.dot_dimension_numbers<[1], [1], [0], [0], [0, 0, 1, 0], [], []>} : vector<8x4xbf16>, vector<8x4xbf16>, vector<8x8xf32> -> vector<8x8xf32>
    %cst_34 = arith.constant 0.000000e+00 : f32
    %51 = vector.broadcast %cst_34 : f32 to vector<8x8xf32>
    %52 = arith.cmpf oeq, %21, %51 : vector<8x8xf32>
    %cst_35 = arith.constant -5.000000e+19 : f32
    %53 = vector.broadcast %cst_35 : f32 to vector<8x8xf32>
    %54 = arith.select %52, %53, %50 : vector<8x8xi1>, vector<8x8xf32>
    %cst_36 = arith.constant dense<0xFF800000> : vector<8xf32>
    %55 = vector.multi_reduction <maximumf>, %54, %cst_36 [1] : vector<8x8xf32> to vector<8xf32>
    %56 = vector.shape_cast %55 : vector<8xf32> to vector<8x1xf32>
    %57 = vector.broadcast %56 : vector<8x1xf32> to vector<8x8xf32>
    %58 = arith.subf %54, %57 : vector<8x8xf32>
    %59 = math.exp %58 : vector<8x8xf32>
    %cst_37 = arith.constant dense<0.000000e+00> : vector<8xf32>
    %60 = vector.multi_reduction <add>, %59, %cst_37 [1] : vector<8x8xf32> to vector<8xf32>
    %61 = vector.shape_cast %60 : vector<8xf32> to vector<8x1xf32>
    %62 = tpu.reciprocal %61 {approx = true} : vector<8x1xf32> -> vector<8x1xf32>
    %63 = vector.broadcast %62 : vector<8x1xf32> to vector<8x8xf32>
    %64 = arith.mulf %59, %63 : vector<8x8xf32>
    %65 = arith.truncf %64 : vector<8x8xf32> to vector<8x8xbf16>
    %66 = vector.extract_strided_slice %19 {offsets = [0, 4], sizes = [8, 4], strides = [1, 1]} : vector<8x32xbf16> to vector<8x4xbf16>
    %cst_38 = arith.constant dense<0.000000e+00> : vector<8x4xf32>
    %67 = tpu.matmul %65, %66, %cst_38 {dimension_numbers = #tpu.dot_dimension_numbers<[1], [0], [0], [1], [0, 0, 1, 1], [], []>} : vector<8x8xbf16>, vector<8x4xbf16>, vector<8x4xf32> -> vector<8x4xf32>
    %68 = arith.truncf %67 : vector<8x4xf32> to vector<8x4xbf16>
    %c1_39 = arith.constant 1 : index
    %c0_40 = arith.constant 0 : index
    %c0_41 = arith.constant 0 : index
    %69 = vector.load %arg6[%c1_39, %c0_40, %c0_41] : memref<8x4x32xbf16, #tpu.memory_space<vmem>>, vector<1x4x32xbf16>
    %70 = vector.shape_cast %69 : vector<1x4x32xbf16> to vector<4x32xbf16>
    %cst_42 = arith.constant dense<0.000000e+00> : vector<8x32xf32>
    %71 = tpu.matmul %68, %70, %cst_42 {dimension_numbers = #tpu.dot_dimension_numbers<[1], [0], [0], [1], [0, 0, 1, 1], [], []>} : vector<8x4xbf16>, vector<4x32xbf16>, vector<8x32xf32> -> vector<8x32xf32>
    %72 = arith.addf %47, %71 : vector<8x32xf32>
    %73 = vector.extract_strided_slice %11 {offsets = [0, 8], sizes = [8, 4], strides = [1, 1]} : vector<8x32xbf16> to vector<8x4xbf16>
    %74 = vector.extract_strided_slice %15 {offsets = [0, 8], sizes = [8, 4], strides = [1, 1]} : vector<8x32xbf16> to vector<8x4xbf16>
    %cst_43 = arith.constant dense<0.000000e+00> : vector<8x8xf32>
    %75 = tpu.matmul %73, %74, %cst_43 {dimension_numbers = #tpu.dot_dimension_numbers<[1], [1], [0], [0], [0, 0, 1, 0], [], []>} : vector<8x4xbf16>, vector<8x4xbf16>, vector<8x8xf32> -> vector<8x8xf32>
    %cst_44 = arith.constant 0.000000e+00 : f32
    %76 = vector.broadcast %cst_44 : f32 to vector<8x8xf32>
    %77 = arith.cmpf oeq, %21, %76 : vector<8x8xf32>
    %cst_45 = arith.constant -5.000000e+19 : f32
    %78 = vector.broadcast %cst_45 : f32 to vector<8x8xf32>
    %79 = arith.select %77, %78, %75 : vector<8x8xi1>, vector<8x8xf32>
    %cst_46 = arith.constant dense<0xFF800000> : vector<8xf32>
    %80 = vector.multi_reduction <maximumf>, %79, %cst_46 [1] : vector<8x8xf32> to vector<8xf32>
    %81 = vector.shape_cast %80 : vector<8xf32> to vector<8x1xf32>
    %82 = vector.broadcast %81 : vector<8x1xf32> to vector<8x8xf32>
    %83 = arith.subf %79, %82 : vector<8x8xf32>
    %84 = math.exp %83 : vector<8x8xf32>
    %cst_47 = arith.constant dense<0.000000e+00> : vector<8xf32>
    %85 = vector.multi_reduction <add>, %84, %cst_47 [1] : vector<8x8xf32> to vector<8xf32>
    %86 = vector.shape_cast %85 : vector<8xf32> to vector<8x1xf32>
    %87 = tpu.reciprocal %86 {approx = true} : vector<8x1xf32> -> vector<8x1xf32>
    %88 = vector.broadcast %87 : vector<8x1xf32> to vector<8x8xf32>
    %89 = arith.mulf %84, %88 : vector<8x8xf32>
    %90 = arith.truncf %89 : vector<8x8xf32> to vector<8x8xbf16>
    %91 = vector.extract_strided_slice %19 {offsets = [0, 8], sizes = [8, 4], strides = [1, 1]} : vector<8x32xbf16> to vector<8x4xbf16>
    %cst_48 = arith.constant dense<0.000000e+00> : vector<8x4xf32>
    %92 = tpu.matmul %90, %91, %cst_48 {dimension_numbers = #tpu.dot_dimension_numbers<[1], [0], [0], [1], [0, 0, 1, 1], [], []>} : vector<8x8xbf16>, vector<8x4xbf16>, vector<8x4xf32> -> vector<8x4xf32>
    %93 = arith.truncf %92 : vector<8x4xf32> to vector<8x4xbf16>
    %c2_49 = arith.constant 2 : index
    %c0_50 = arith.constant 0 : index
    %c0_51 = arith.constant 0 : index
    %94 = vector.load %arg6[%c2_49, %c0_50, %c0_51] : memref<8x4x32xbf16, #tpu.memory_space<vmem>>, vector<1x4x32xbf16>
    %95 = vector.shape_cast %94 : vector<1x4x32xbf16> to vector<4x32xbf16>
    %cst_52 = arith.constant dense<0.000000e+00> : vector<8x32xf32>
    %96 = tpu.matmul %93, %95, %cst_52 {dimension_numbers = #tpu.dot_dimension_numbers<[1], [0], [0], [1], [0, 0, 1, 1], [], []>} : vector<8x4xbf16>, vector<4x32xbf16>, vector<8x32xf32> -> vector<8x32xf32>
    %97 = arith.addf %72, %96 : vector<8x32xf32>
    %98 = vector.extract_strided_slice %11 {offsets = [0, 12], sizes = [8, 4], strides = [1, 1]} : vector<8x32xbf16> to vector<8x4xbf16>
    %99 = vector.extract_strided_slice %15 {offsets = [0, 12], sizes = [8, 4], strides = [1, 1]} : vector<8x32xbf16> to vector<8x4xbf16>
    %cst_53 = arith.constant dense<0.000000e+00> : vector<8x8xf32>
    %100 = tpu.matmul %98, %99, %cst_53 {dimension_numbers = #tpu.dot_dimension_numbers<[1], [1], [0], [0], [0, 0, 1, 0], [], []>} : vector<8x4xbf16>, vector<8x4xbf16>, vector<8x8xf32> -> vector<8x8xf32>
    %cst_54 = arith.constant 0.000000e+00 : f32
    %101 = vector.broadcast %cst_54 : f32 to vector<8x8xf32>
    %102 = arith.cmpf oeq, %21, %101 : vector<8x8xf32>
    %cst_55 = arith.constant -5.000000e+19 : f32
    %103 = vector.broadcast %cst_55 : f32 to vector<8x8xf32>
    %104 = arith.select %102, %103, %100 : vector<8x8xi1>, vector<8x8xf32>
    %cst_56 = arith.constant dense<0xFF800000> : vector<8xf32>
    %105 = vector.multi_reduction <maximumf>, %104, %cst_56 [1] : vector<8x8xf32> to vector<8xf32>
    %106 = vector.shape_cast %105 : vector<8xf32> to vector<8x1xf32>
    %107 = vector.broadcast %106 : vector<8x1xf32> to vector<8x8xf32>
    %108 = arith.subf %104, %107 : vector<8x8xf32>
    %109 = math.exp %108 : vector<8x8xf32>
    %cst_57 = arith.constant dense<0.000000e+00> : vector<8xf32>
    %110 = vector.multi_reduction <add>, %109, %cst_57 [1] : vector<8x8xf32> to vector<8xf32>
    %111 = vector.shape_cast %110 : vector<8xf32> to vector<8x1xf32>
    %112 = tpu.reciprocal %111 {approx = true} : vector<8x1xf32> -> vector<8x1xf32>
    %113 = vector.broadcast %112 : vector<8x1xf32> to vector<8x8xf32>
    %114 = arith.mulf %109, %113 : vector<8x8xf32>
    %115 = arith.truncf %114 : vector<8x8xf32> to vector<8x8xbf16>
    %116 = vector.extract_strided_slice %19 {offsets = [0, 12], sizes = [8, 4], strides = [1, 1]} : vector<8x32xbf16> to vector<8x4xbf16>
    %cst_58 = arith.constant dense<0.000000e+00> : vector<8x4xf32>
    %117 = tpu.matmul %115, %116, %cst_58 {dimension_numbers = #tpu.dot_dimension_numbers<[1], [0], [0], [1], [0, 0, 1, 1], [], []>} : vector<8x8xbf16>, vector<8x4xbf16>, vector<8x4xf32> -> vector<8x4xf32>
    %118 = arith.truncf %117 : vector<8x4xf32> to vector<8x4xbf16>
    %c3 = arith.constant 3 : index
    %c0_59 = arith.constant 0 : index
    %c0_60 = arith.constant 0 : index
    %119 = vector.load %arg6[%c3, %c0_59, %c0_60] : memref<8x4x32xbf16, #tpu.memory_space<vmem>>, vector<1x4x32xbf16>
    %120 = vector.shape_cast %119 : vector<1x4x32xbf16> to vector<4x32xbf16>
    %cst_61 = arith.constant dense<0.000000e+00> : vector<8x32xf32>
    %121 = tpu.matmul %118, %120, %cst_61 {dimension_numbers = #tpu.dot_dimension_numbers<[1], [0], [0], [1], [0, 0, 1, 1], [], []>} : vector<8x4xbf16>, vector<4x32xbf16>, vector<8x32xf32> -> vector<8x32xf32>
    %122 = arith.addf %97, %121 : vector<8x32xf32>
    %123 = vector.extract_strided_slice %11 {offsets = [0, 16], sizes = [8, 4], strides = [1, 1]} : vector<8x32xbf16> to vector<8x4xbf16>
    %124 = vector.extract_strided_slice %15 {offsets = [0, 16], sizes = [8, 4], strides = [1, 1]} : vector<8x32xbf16> to vector<8x4xbf16>
    %cst_62 = arith.constant dense<0.000000e+00> : vector<8x8xf32>
    %125 = tpu.matmul %123, %124, %cst_62 {dimension_numbers = #tpu.dot_dimension_numbers<[1], [1], [0], [0], [0, 0, 1, 0], [], []>} : vector<8x4xbf16>, vector<8x4xbf16>, vector<8x8xf32> -> vector<8x8xf32>
    %cst_63 = arith.constant 0.000000e+00 : f32
    %126 = vector.broadcast %cst_63 : f32 to vector<8x8xf32>
    %127 = arith.cmpf oeq, %21, %126 : vector<8x8xf32>
    %cst_64 = arith.constant -5.000000e+19 : f32
    %128 = vector.broadcast %cst_64 : f32 to vector<8x8xf32>
    %129 = arith.select %127, %128, %125 : vector<8x8xi1>, vector<8x8xf32>
    %cst_65 = arith.constant dense<0xFF800000> : vector<8xf32>
    %130 = vector.multi_reduction <maximumf>, %129, %cst_65 [1] : vector<8x8xf32> to vector<8xf32>
    %131 = vector.shape_cast %130 : vector<8xf32> to vector<8x1xf32>
    %132 = vector.broadcast %131 : vector<8x1xf32> to vector<8x8xf32>
    %133 = arith.subf %129, %132 : vector<8x8xf32>
    %134 = math.exp %133 : vector<8x8xf32>
    %cst_66 = arith.constant dense<0.000000e+00> : vector<8xf32>
    %135 = vector.multi_reduction <add>, %134, %cst_66 [1] : vector<8x8xf32> to vector<8xf32>
    %136 = vector.shape_cast %135 : vector<8xf32> to vector<8x1xf32>
    %137 = tpu.reciprocal %136 {approx = true} : vector<8x1xf32> -> vector<8x1xf32>
    %138 = vector.broadcast %137 : vector<8x1xf32> to vector<8x8xf32>
    %139 = arith.mulf %134, %138 : vector<8x8xf32>
    %140 = arith.truncf %139 : vector<8x8xf32> to vector<8x8xbf16>
    %141 = vector.extract_strided_slice %19 {offsets = [0, 16], sizes = [8, 4], strides = [1, 1]} : vector<8x32xbf16> to vector<8x4xbf16>
    %cst_67 = arith.constant dense<0.000000e+00> : vector<8x4xf32>
    %142 = tpu.matmul %140, %141, %cst_67 {dimension_numbers = #tpu.dot_dimension_numbers<[1], [0], [0], [1], [0, 0, 1, 1], [], []>} : vector<8x8xbf16>, vector<8x4xbf16>, vector<8x4xf32> -> vector<8x4xf32>
    %143 = arith.truncf %142 : vector<8x4xf32> to vector<8x4xbf16>
    %c4 = arith.constant 4 : index
    %c0_68 = arith.constant 0 : index
    %c0_69 = arith.constant 0 : index
    %144 = vector.load %arg6[%c4, %c0_68, %c0_69] : memref<8x4x32xbf16, #tpu.memory_space<vmem>>, vector<1x4x32xbf16>
    %145 = vector.shape_cast %144 : vector<1x4x32xbf16> to vector<4x32xbf16>
    %cst_70 = arith.constant dense<0.000000e+00> : vector<8x32xf32>
    %146 = tpu.matmul %143, %145, %cst_70 {dimension_numbers = #tpu.dot_dimension_numbers<[1], [0], [0], [1], [0, 0, 1, 1], [], []>} : vector<8x4xbf16>, vector<4x32xbf16>, vector<8x32xf32> -> vector<8x32xf32>
    %147 = arith.addf %122, %146 : vector<8x32xf32>
    %148 = vector.extract_strided_slice %11 {offsets = [0, 20], sizes = [8, 4], strides = [1, 1]} : vector<8x32xbf16> to vector<8x4xbf16>
    %149 = vector.extract_strided_slice %15 {offsets = [0, 20], sizes = [8, 4], strides = [1, 1]} : vector<8x32xbf16> to vector<8x4xbf16>
    %cst_71 = arith.constant dense<0.000000e+00> : vector<8x8xf32>
    %150 = tpu.matmul %148, %149, %cst_71 {dimension_numbers = #tpu.dot_dimension_numbers<[1], [1], [0], [0], [0, 0, 1, 0], [], []>} : vector<8x4xbf16>, vector<8x4xbf16>, vector<8x8xf32> -> vector<8x8xf32>
    %cst_72 = arith.constant 0.000000e+00 : f32
    %151 = vector.broadcast %cst_72 : f32 to vector<8x8xf32>
    %152 = arith.cmpf oeq, %21, %151 : vector<8x8xf32>
    %cst_73 = arith.constant -5.000000e+19 : f32
    %153 = vector.broadcast %cst_73 : f32 to vector<8x8xf32>
    %154 = arith.select %152, %153, %150 : vector<8x8xi1>, vector<8x8xf32>
    %cst_74 = arith.constant dense<0xFF800000> : vector<8xf32>
    %155 = vector.multi_reduction <maximumf>, %154, %cst_74 [1] : vector<8x8xf32> to vector<8xf32>
    %156 = vector.shape_cast %155 : vector<8xf32> to vector<8x1xf32>
    %157 = vector.broadcast %156 : vector<8x1xf32> to vector<8x8xf32>
    %158 = arith.subf %154, %157 : vector<8x8xf32>
    %159 = math.exp %158 : vector<8x8xf32>
    %cst_75 = arith.constant dense<0.000000e+00> : vector<8xf32>
    %160 = vector.multi_reduction <add>, %159, %cst_75 [1] : vector<8x8xf32> to vector<8xf32>
    %161 = vector.shape_cast %160 : vector<8xf32> to vector<8x1xf32>
    %162 = tpu.reciprocal %161 {approx = true} : vector<8x1xf32> -> vector<8x1xf32>
    %163 = vector.broadcast %162 : vector<8x1xf32> to vector<8x8xf32>
    %164 = arith.mulf %159, %163 : vector<8x8xf32>
    %165 = arith.truncf %164 : vector<8x8xf32> to vector<8x8xbf16>
    %166 = vector.extract_strided_slice %19 {offsets = [0, 20], sizes = [8, 4], strides = [1, 1]} : vector<8x32xbf16> to vector<8x4xbf16>
    %cst_76 = arith.constant dense<0.000000e+00> : vector<8x4xf32>
    %167 = tpu.matmul %165, %166, %cst_76 {dimension_numbers = #tpu.dot_dimension_numbers<[1], [0], [0], [1], [0, 0, 1, 1], [], []>} : vector<8x8xbf16>, vector<8x4xbf16>, vector<8x4xf32> -> vector<8x4xf32>
    %168 = arith.truncf %167 : vector<8x4xf32> to vector<8x4xbf16>
    %c5 = arith.constant 5 : index
    %c0_77 = arith.constant 0 : index
    %c0_78 = arith.constant 0 : index
    %169 = vector.load %arg6[%c5, %c0_77, %c0_78] : memref<8x4x32xbf16, #tpu.memory_space<vmem>>, vector<1x4x32xbf16>
    %170 = vector.shape_cast %169 : vector<1x4x32xbf16> to vector<4x32xbf16>
    %cst_79 = arith.constant dense<0.000000e+00> : vector<8x32xf32>
    %171 = tpu.matmul %168, %170, %cst_79 {dimension_numbers = #tpu.dot_dimension_numbers<[1], [0], [0], [1], [0, 0, 1, 1], [], []>} : vector<8x4xbf16>, vector<4x32xbf16>, vector<8x32xf32> -> vector<8x32xf32>
    %172 = arith.addf %147, %171 : vector<8x32xf32>
    %173 = vector.extract_strided_slice %11 {offsets = [0, 24], sizes = [8, 4], strides = [1, 1]} : vector<8x32xbf16> to vector<8x4xbf16>
    %174 = vector.extract_strided_slice %15 {offsets = [0, 24], sizes = [8, 4], strides = [1, 1]} : vector<8x32xbf16> to vector<8x4xbf16>
    %cst_80 = arith.constant dense<0.000000e+00> : vector<8x8xf32>
    %175 = tpu.matmul %173, %174, %cst_80 {dimension_numbers = #tpu.dot_dimension_numbers<[1], [1], [0], [0], [0, 0, 1, 0], [], []>} : vector<8x4xbf16>, vector<8x4xbf16>, vector<8x8xf32> -> vector<8x8xf32>
    %cst_81 = arith.constant 0.000000e+00 : f32
    %176 = vector.broadcast %cst_81 : f32 to vector<8x8xf32>
    %177 = arith.cmpf oeq, %21, %176 : vector<8x8xf32>
    %cst_82 = arith.constant -5.000000e+19 : f32
    %178 = vector.broadcast %cst_82 : f32 to vector<8x8xf32>
    %179 = arith.select %177, %178, %175 : vector<8x8xi1>, vector<8x8xf32>
    %cst_83 = arith.constant dense<0xFF800000> : vector<8xf32>
    %180 = vector.multi_reduction <maximumf>, %179, %cst_83 [1] : vector<8x8xf32> to vector<8xf32>
    %181 = vector.shape_cast %180 : vector<8xf32> to vector<8x1xf32>
    %182 = vector.broadcast %181 : vector<8x1xf32> to vector<8x8xf32>
    %183 = arith.subf %179, %182 : vector<8x8xf32>
    %184 = math.exp %183 : vector<8x8xf32>
    %cst_84 = arith.constant dense<0.000000e+00> : vector<8xf32>
    %185 = vector.multi_reduction <add>, %184, %cst_84 [1] : vector<8x8xf32> to vector<8xf32>
    %186 = vector.shape_cast %185 : vector<8xf32> to vector<8x1xf32>
    %187 = tpu.reciprocal %186 {approx = true} : vector<8x1xf32> -> vector<8x1xf32>
    %188 = vector.broadcast %187 : vector<8x1xf32> to vector<8x8xf32>
    %189 = arith.mulf %184, %188 : vector<8x8xf32>
    %190 = arith.truncf %189 : vector<8x8xf32> to vector<8x8xbf16>
    %191 = vector.extract_strided_slice %19 {offsets = [0, 24], sizes = [8, 4], strides = [1, 1]} : vector<8x32xbf16> to vector<8x4xbf16>
    %cst_85 = arith.constant dense<0.000000e+00> : vector<8x4xf32>
    %192 = tpu.matmul %190, %191, %cst_85 {dimension_numbers = #tpu.dot_dimension_numbers<[1], [0], [0], [1], [0, 0, 1, 1], [], []>} : vector<8x8xbf16>, vector<8x4xbf16>, vector<8x4xf32> -> vector<8x4xf32>
    %193 = arith.truncf %192 : vector<8x4xf32> to vector<8x4xbf16>
    %c6 = arith.constant 6 : index
    %c0_86 = arith.constant 0 : index
    %c0_87 = arith.constant 0 : index
    %194 = vector.load %arg6[%c6, %c0_86, %c0_87] : memref<8x4x32xbf16, #tpu.memory_space<vmem>>, vector<1x4x32xbf16>
    %195 = vector.shape_cast %194 : vector<1x4x32xbf16> to vector<4x32xbf16>
    %cst_88 = arith.constant dense<0.000000e+00> : vector<8x32xf32>
    %196 = tpu.matmul %193, %195, %cst_88 {dimension_numbers = #tpu.dot_dimension_numbers<[1], [0], [0], [1], [0, 0, 1, 1], [], []>} : vector<8x4xbf16>, vector<4x32xbf16>, vector<8x32xf32> -> vector<8x32xf32>
    %197 = arith.addf %172, %196 : vector<8x32xf32>
    %198 = vector.extract_strided_slice %11 {offsets = [0, 28], sizes = [8, 4], strides = [1, 1]} : vector<8x32xbf16> to vector<8x4xbf16>
    %199 = vector.extract_strided_slice %15 {offsets = [0, 28], sizes = [8, 4], strides = [1, 1]} : vector<8x32xbf16> to vector<8x4xbf16>
    %cst_89 = arith.constant dense<0.000000e+00> : vector<8x8xf32>
    %200 = tpu.matmul %198, %199, %cst_89 {dimension_numbers = #tpu.dot_dimension_numbers<[1], [1], [0], [0], [0, 0, 1, 0], [], []>} : vector<8x4xbf16>, vector<8x4xbf16>, vector<8x8xf32> -> vector<8x8xf32>
    %cst_90 = arith.constant 0.000000e+00 : f32
    %201 = vector.broadcast %cst_90 : f32 to vector<8x8xf32>
    %202 = arith.cmpf oeq, %21, %201 : vector<8x8xf32>
    %cst_91 = arith.constant -5.000000e+19 : f32
    %203 = vector.broadcast %cst_91 : f32 to vector<8x8xf32>
    %204 = arith.select %202, %203, %200 : vector<8x8xi1>, vector<8x8xf32>
    %cst_92 = arith.constant dense<0xFF800000> : vector<8xf32>
    %205 = vector.multi_reduction <maximumf>, %204, %cst_92 [1] : vector<8x8xf32> to vector<8xf32>
    %206 = vector.shape_cast %205 : vector<8xf32> to vector<8x1xf32>
    %207 = vector.broadcast %206 : vector<8x1xf32> to vector<8x8xf32>
    %208 = arith.subf %204, %207 : vector<8x8xf32>
    %209 = math.exp %208 : vector<8x8xf32>
    %cst_93 = arith.constant dense<0.000000e+00> : vector<8xf32>
    %210 = vector.multi_reduction <add>, %209, %cst_93 [1] : vector<8x8xf32> to vector<8xf32>
    %211 = vector.shape_cast %210 : vector<8xf32> to vector<8x1xf32>
    %212 = tpu.reciprocal %211 {approx = true} : vector<8x1xf32> -> vector<8x1xf32>
    %213 = vector.broadcast %212 : vector<8x1xf32> to vector<8x8xf32>
    %214 = arith.mulf %209, %213 : vector<8x8xf32>
    %215 = arith.truncf %214 : vector<8x8xf32> to vector<8x8xbf16>
    %216 = vector.extract_strided_slice %19 {offsets = [0, 28], sizes = [8, 4], strides = [1, 1]} : vector<8x32xbf16> to vector<8x4xbf16>
    %cst_94 = arith.constant dense<0.000000e+00> : vector<8x4xf32>
    %217 = tpu.matmul %215, %216, %cst_94 {dimension_numbers = #tpu.dot_dimension_numbers<[1], [0], [0], [1], [0, 0, 1, 1], [], []>} : vector<8x8xbf16>, vector<8x4xbf16>, vector<8x4xf32> -> vector<8x4xf32>
    %218 = arith.truncf %217 : vector<8x4xf32> to vector<8x4xbf16>
    %c7 = arith.constant 7 : index
    %c0_95 = arith.constant 0 : index
    %c0_96 = arith.constant 0 : index
    %219 = vector.load %arg6[%c7, %c0_95, %c0_96] : memref<8x4x32xbf16, #tpu.memory_space<vmem>>, vector<1x4x32xbf16>
    %220 = vector.shape_cast %219 : vector<1x4x32xbf16> to vector<4x32xbf16>
    %cst_97 = arith.constant dense<0.000000e+00> : vector<8x32xf32>
    %221 = tpu.matmul %218, %220, %cst_97 {dimension_numbers = #tpu.dot_dimension_numbers<[1], [0], [0], [1], [0, 0, 1, 1], [], []>} : vector<8x4xbf16>, vector<4x32xbf16>, vector<8x32xf32> -> vector<8x32xf32>
    %222 = arith.addf %197, %221 : vector<8x32xf32>
    %c0_98 = arith.constant 0 : index
    %c0_99 = arith.constant 0 : index
    %223 = vector.load %arg7[%c0_98, %c0_99] : memref<1x32xf32, #tpu.memory_space<vmem>>, vector<1x32xf32>
    %224 = vector.broadcast %223 : vector<1x32xf32> to vector<8x32xf32>
    %225 = arith.addf %222, %224 : vector<8x32xf32>
    %c0_100 = arith.constant 0 : index
    %c0_101 = arith.constant 0 : index
    %c0_102 = arith.constant 0 : index
    %226 = vector.load %arg4[%c0_100, %c0_101, %c0_102] : memref<1x8x32xbf16, #tpu.memory_space<vmem>>, vector<1x8x32xbf16>
    %227 = vector.shape_cast %226 : vector<1x8x32xbf16> to vector<8x32xbf16>
    %228 = arith.extf %227 : vector<8x32xbf16> to vector<8x32xf32>
    %229 = arith.addf %225, %228 : vector<8x32xf32>
    %cst_103 = arith.constant dense<0.000000e+00> : vector<8xf32>
    %230 = vector.multi_reduction <add>, %229, %cst_103 [1] : vector<8x32xf32> to vector<8xf32>
    %231 = vector.shape_cast %230 : vector<8xf32> to vector<8x1xf32>
    %cst_104 = arith.constant 3.200000e+01 : f32
    %232 = vector.broadcast %cst_104 : f32 to vector<8x1xf32>
    %233 = arith.divf %231, %232 : vector<8x1xf32>
    %234 = vector.broadcast %233 : vector<8x1xf32> to vector<8x32xf32>
    %235 = arith.subf %229, %234 : vector<8x32xf32>
    %236 = arith.mulf %235, %235 : vector<8x32xf32>
    %cst_105 = arith.constant dense<0.000000e+00> : vector<8xf32>
    %237 = vector.multi_reduction <add>, %236, %cst_105 [1] : vector<8x32xf32> to vector<8xf32>
    %238 = vector.shape_cast %237 : vector<8xf32> to vector<8x1xf32>
    %cst_106 = arith.constant 3.200000e+01 : f32
    %239 = vector.broadcast %cst_106 : f32 to vector<8x1xf32>
    %240 = arith.divf %238, %239 : vector<8x1xf32>
    %241 = vector.broadcast %233 : vector<8x1xf32> to vector<8x32xf32>
    %242 = arith.subf %229, %241 : vector<8x32xf32>
    %cst_107 = arith.constant 9.99999974E-6 : f32
    %243 = vector.broadcast %cst_107 : f32 to vector<8x1xf32>
    %244 = arith.addf %240, %243 : vector<8x1xf32>
    %245 = math.rsqrt %244 : vector<8x1xf32>
    %246 = vector.broadcast %245 : vector<8x1xf32> to vector<8x32xf32>
    %247 = arith.mulf %242, %246 : vector<8x32xf32>
    %c0_108 = arith.constant 0 : index
    %c0_109 = arith.constant 0 : index
    %248 = vector.load %arg8[%c0_108, %c0_109] : memref<1x32xf32, #tpu.memory_space<vmem>>, vector<1x32xf32>
    %249 = vector.broadcast %248 : vector<1x32xf32> to vector<8x32xf32>
    %250 = arith.mulf %247, %249 : vector<8x32xf32>
    %c0_110 = arith.constant 0 : index
    %c0_111 = arith.constant 0 : index
    %251 = vector.load %arg9[%c0_110, %c0_111] : memref<1x32xf32, #tpu.memory_space<vmem>>, vector<1x32xf32>
    %252 = vector.broadcast %251 : vector<1x32xf32> to vector<8x32xf32>
    %253 = arith.addf %250, %252 : vector<8x32xf32>
    %254 = vector.shape_cast %253 : vector<8x32xf32> to vector<1x8x32xf32>
    %255 = arith.truncf %254 : vector<1x8x32xf32> to vector<1x8x32xbf16>
    %c0_112 = arith.constant 0 : index
    %c0_113 = arith.constant 0 : index
    %c0_114 = arith.constant 0 : index
    %256 = vector.load %arg11[%c0_112, %c0_113, %c0_114] : memref<1x8x32xbf16, #tpu.memory_space<vmem>>, vector<1x8x32xbf16>
    tpu.vector_store %arg11[%c0_112, %c0_113, %c0_114], %255 {strides = array<i32>} : memref<1x8x32xbf16, #tpu.memory_space<vmem>>, vector<1x8x32xbf16>,
    return
  }
  func.func @transform_0(%arg0: i32) -> (i32, i32, i32) {
    %c0_i32 = arith.constant 0 : i32
    %c0_i32_0 = arith.constant 0 : i32
    %c0_i32_1 = arith.constant 0 : i32
    return %arg0, %c0_i32, %c0_i32_0 : i32, i32, i32
  }
  func.func @transform_1(%arg0: i32) -> (i32, i32, i32) {
    %c0_i32 = arith.constant 0 : i32
    %c0_i32_0 = arith.constant 0 : i32
    %c0_i32_1 = arith.constant 0 : i32
    return %arg0, %c0_i32, %c0_i32_0 : i32, i32, i32
  }
  func.func @transform_2(%arg0: i32) -> (i32, i32, i32) {
    %c0_i32 = arith.constant 0 : i32
    %c0_i32_0 = arith.constant 0 : i32
    %c0_i32_1 = arith.constant 0 : i32
    return %arg0, %c0_i32, %c0_i32_0 : i32, i32, i32
  }
  func.func @transform_3(%arg0: i32) -> (i32, i32, i32) {
    %c0_i32 = arith.constant 0 : i32
    %c0_i32_0 = arith.constant 0 : i32
    %c0_i32_1 = arith.constant 0 : i32
    return %arg0, %c0_i32, %c0_i32_0 : i32, i32, i32
  }
  func.func @transform_4(%arg0: i32) -> (i32, i32, i32) {
    %c0_i32 = arith.constant 0 : i32
    %c0_i32_0 = arith.constant 0 : i32
    %c0_i32_1 = arith.constant 0 : i32
    %c0_i32_2 = arith.constant 0 : i32
    return %c0_i32, %c0_i32_0, %c0_i32_1 : i32, i32, i32
  }
  func.func @transform_5(%arg0: i32) -> (i32, i32, i32) {
    %c0_i32 = arith.constant 0 : i32
    %c0_i32_0 = arith.constant 0 : i32
    %c0_i32_1 = arith.constant 0 : i32
    %c0_i32_2 = arith.constant 0 : i32
    return %c0_i32, %c0_i32_0, %c0_i32_1 : i32, i32, i32
  }
  func.func @transform_6(%arg0: i32) -> (i32, i32) {
    %c0_i32 = arith.constant 0 : i32
    %c0_i32_0 = arith.constant 0 : i32
    %c0_i32_1 = arith.constant 0 : i32
    return %c0_i32, %c0_i32_0 : i32, i32
  }
  func.func @transform_7(%arg0: i32) -> (i32, i32) {
    %c0_i32 = arith.constant 0 : i32
    %c0_i32_0 = arith.constant 0 : i32
    %c0_i32_1 = arith.constant 0 : i32
    return %c0_i32, %c0_i32_0 : i32, i32
  }
  func.func @transform_8(%arg0: i32) -> (i32, i32) {
    %c0_i32 = arith.constant 0 : i32
    %c0_i32_0 = arith.constant 0 : i32
    %c0_i32_1 = arith.constant 0 : i32
    return %c0_i32, %c0_i32_0 : i32, i32
  }
  func.func @transform_9(%arg0: i32) -> (i32, i32, i32, i32) {
    %c0_i32 = arith.constant 0 : i32
    %c0_i32_0 = arith.constant 0 : i32
    %c0_i32_1 = arith.constant 0 : i32
    %c0_i32_2 = arith.constant 0 : i32
    %c0_i32_3 = arith.constant 0 : i32
    return %c0_i32, %c0_i32_0, %c0_i32_1, %c0_i32_2 : i32, i32, i32, i32
  }
  func.func @transform_10(%arg0: i32) -> (i32, i32, i32) {
    %c0_i32 = arith.constant 0 : i32
    %c0_i32_0 = arith.constant 0 : i32
    %c0_i32_1 = arith.constant 0 : i32
    return %arg0, %c0_i32, %c0_i32_0 : i32, i32, i32
  }
}

module attributes {stable_mosaic.version = 11 : i64} {
  func.func @_linear_kernel(%arg0: i32, %arg1: i32, %arg2: i32, %arg3: memref<16x32xbf16, #tpu.memory_space<vmem>>, %arg4: memref<32x64xbf16, #tpu.memory_space<vmem>>, %arg5: memref<1x64xf32, #tpu.memory_space<vmem>>, %arg6: memref<16x64xf32, #tpu.memory_space<vmem>>, %arg7: memref<16x64xf32, #tpu.memory_space<vmem>>) attributes {dimension_semantics = [#tpu.dimension_semantics<parallel>, #tpu.dimension_semantics<parallel>, #tpu.dimension_semantics<arbitrary>], iteration_bounds = array<i64: 1, 1, 1>, scalar_prefetch = 0 : i64, scratch_operands = 1 : i64, tpu.core_type = #tpu.core_type<tc>, window_params = [{transform_indices = @transform_0, window_bounds = array<i64: 16, 32>}, {transform_indices = @transform_1, window_bounds = array<i64: 32, 64>}, {transform_indices = @transform_2, window_bounds = array<i64: 1, 64>}, {transform_indices = @transform_3, window_bounds = array<i64: 16, 64>}]} {
    %c0_i32 = arith.constant 0 : i32
    %0 = arith.cmpi eq, %arg2, %c0_i32 : i32
    %1 = arith.extui %0 : i1 to i32
    %c0_i32_0 = arith.constant 0 : i32
    %2 = arith.cmpi ne, %1, %c0_i32_0 : i32
    scf.if %2 {
      %cst_10 = arith.constant 0.000000e+00 : f32
      %12 = vector.broadcast %cst_10 : f32 to vector<16x64xf32>
      %c0_11 = arith.constant 0 : index
      %c0_12 = arith.constant 0 : index
      %13 = vector.load %arg7[%c0_11, %c0_12] : memref<16x64xf32, #tpu.memory_space<vmem>>, vector<16x64xf32>
      tpu.vector_store %arg7[%c0_11, %c0_12], %12 {strides = array<i32>} : memref<16x64xf32, #tpu.memory_space<vmem>>, vector<16x64xf32>,
    } else {
    }
    %c0 = arith.constant 0 : index
    %c0_1 = arith.constant 0 : index
    %3 = vector.load %arg7[%c0, %c0_1] : memref<16x64xf32, #tpu.memory_space<vmem>>, vector<16x64xf32>
    %c0_2 = arith.constant 0 : index
    %c0_3 = arith.constant 0 : index
    %4 = vector.load %arg3[%c0_2, %c0_3] : memref<16x32xbf16, #tpu.memory_space<vmem>>, vector<16x32xbf16>
    %c0_4 = arith.constant 0 : index
    %c0_5 = arith.constant 0 : index
    %5 = vector.load %arg4[%c0_4, %c0_5] : memref<32x64xbf16, #tpu.memory_space<vmem>>, vector<32x64xbf16>
    %cst = arith.constant dense<0.000000e+00> : vector<16x64xf32>
    %6 = tpu.matmul %4, %5, %cst {dimension_numbers = #tpu.dot_dimension_numbers<[1], [0], [0], [1], [0, 0, 1, 1], [], []>} : vector<16x32xbf16>, vector<32x64xbf16>, vector<16x64xf32> -> vector<16x64xf32>
    %7 = arith.addf %3, %6 : vector<16x64xf32>
    %c0_6 = arith.constant 0 : index
    %c0_7 = arith.constant 0 : index
    %8 = vector.load %arg7[%c0_6, %c0_7] : memref<16x64xf32, #tpu.memory_space<vmem>>, vector<16x64xf32>
    tpu.vector_store %arg7[%c0_6, %c0_7], %7 {strides = array<i32>} : memref<16x64xf32, #tpu.memory_space<vmem>>, vector<16x64xf32>,
    %c0_i32_8 = arith.constant 0 : i32
    %9 = arith.cmpi eq, %arg2, %c0_i32_8 : i32
    %10 = arith.extui %9 : i1 to i32
    %c0_i32_9 = arith.constant 0 : i32
    %11 = arith.cmpi ne, %10, %c0_i32_9 : i32
    scf.if %11 {
      %c0_10 = arith.constant 0 : index
      %c0_11 = arith.constant 0 : index
      %12 = vector.load %arg7[%c0_10, %c0_11] : memref<16x64xf32, #tpu.memory_space<vmem>>, vector<16x64xf32>
      %c0_12 = arith.constant 0 : index
      %c0_13 = arith.constant 0 : index
      %13 = vector.load %arg5[%c0_12, %c0_13] : memref<1x64xf32, #tpu.memory_space<vmem>>, vector<1x64xf32>
      %14 = vector.broadcast %13 : vector<1x64xf32> to vector<16x64xf32>
      %15 = arith.addf %12, %14 : vector<16x64xf32>
      %c0_14 = arith.constant 0 : index
      %c0_15 = arith.constant 0 : index
      %16 = vector.load %arg6[%c0_14, %c0_15] : memref<16x64xf32, #tpu.memory_space<vmem>>, vector<16x64xf32>
      tpu.vector_store %arg6[%c0_14, %c0_15], %15 {strides = array<i32>} : memref<16x64xf32, #tpu.memory_space<vmem>>, vector<16x64xf32>,
    } else {
    }
    return
  }
  func.func @transform_0(%arg0: i32, %arg1: i32, %arg2: i32) -> (i32, i32) {
    %c0_i32 = arith.constant 0 : i32
    return %arg0, %arg2 : i32, i32
  }
  func.func @transform_1(%arg0: i32, %arg1: i32, %arg2: i32) -> (i32, i32) {
    %c0_i32 = arith.constant 0 : i32
    return %arg2, %arg1 : i32, i32
  }
  func.func @transform_2(%arg0: i32, %arg1: i32, %arg2: i32) -> (i32, i32) {
    %c0_i32 = arith.constant 0 : i32
    %c0_i32_0 = arith.constant 0 : i32
    return %c0_i32, %arg1 : i32, i32
  }
  func.func @transform_3(%arg0: i32, %arg1: i32, %arg2: i32) -> (i32, i32) {
    %c0_i32 = arith.constant 0 : i32
    return %arg0, %arg1 : i32, i32
  }
}

</mosaic_0001>

<llo_original>
// kernel: transformer_decoder.11
$region0: #{transformer_decoder.11}
  #allocation0 [shape = 'u32[]', space=smem, size = 0x4, offset = 0x4, fixed_abs, tag = 'smem constant byte address 0x4 - core index']
  #allocation1 [shape = 'u32[72,128]{1,0:T(1,128)}', space=vmem, size = 0x9000, scoped, tag = 'internal scratch']
  #allocation2 [shape = 'f32[16,128]{1,0:T(8,128)}', space=vmem, size = 0x2000, scoped, tag = 'scratch operand']
  %s0 = inlined_call_operand.vmem [shape: bf16[16,32], index: 0, kind: input, shape index: {}]
  %s1 = inlined_call_operand.vmem [shape: bf16[32,128], index: 1, kind: input, shape index: {}]
  %s2 = inlined_call_operand.vmem [shape: f32[1,128], index: 2, kind: input, shape index: {}]
  %s3 = inlined_call_operand.vmem [shape: bf16[16,128], index: 3, kind: output, shape index: {}]
  %s4 = sld [smem:[#allocation0]]
  $region30: #{transformer_decoder.11} parent=0
    _
  %s6 = ssub.s32 1, %s4
  %s7 = scalar_select 0, %s6, %s4
  // Predicated region
  $region2: #{transformer_decoder.11} parent=0 // pred_check
    _
  $region3: #{transformer_decoder.11} parent=0 // pred_check_branch
    %9 = sbr.rel (0) target = $region5
  $region4: #{transformer_decoder.11} parent=0 // pred_region
    _
  $region5: #{transformer_decoder.11} parent=0 // pred_fallthru
    _
  // Predicated region
  $region6: #{transformer_decoder.11} parent=0 // pred_check
    _
  $region7: #{transformer_decoder.11} parent=0 // pred_check_branch
    %11 = sbr.rel (0) target = $region9
  $region8: #{transformer_decoder.11} parent=0 // pred_region
    _
  $region9: #{transformer_decoder.11} parent=0 // pred_fallthru
    _
  // Predicated region
  $region10: #{transformer_decoder.11} parent=0 // pred_check
    _
  $region11: #{transformer_decoder.11} parent=0 // pred_check_branch
    %13 = sbr.rel (0) target = $region13
  $region12: #{transformer_decoder.11} parent=0 // pred_region
    _
  $region13: #{transformer_decoder.11} parent=0 // pred_fallthru
    _
  %p15 = scmp.eq.s32.totalorder 0, 0
  // Predicated region
  $region14: #{transformer_decoder.11} parent=0 // pred_check
    %p16 = pneg %p15
  $region15: #{transformer_decoder.11} parent=0 // pred_check_branch
    %18 = sbr.rel (%p16) target = $region17
  $region16: #{transformer_decoder.11} parent=0 // pred_region
    %19 = vst [vmem:[#allocation2] sm:$0xff] 0.0
    %20 = vst [vmem:[#allocation2 + $0x8] sm:$0xff] 0.0
  $region17: #{transformer_decoder.11} parent=0 // pred_fallthru
    _
  %v21 = vld [vmem:[#allocation2] sm:$0xff]
  %v22 = vld [vmem:[#allocation2 + $0x8] sm:$0xff]
  %v23 = vld [vmem:[%s0] sm:$0xf]
  %v24 = vld [vmem:[%s0 + $0x4] sm:$0xf]
  %v25 = vld [vmem:[%s1] sm:$0xf]
  %v26 = vld [vmem:[%s1 + $0x4] sm:$0xf]
  %v27 = vld [vmem:[%s1 + $0x8] sm:$0xf]
  %v28 = vld [vmem:[%s1 + $0xc] sm:$0xf]
  %v31 = vunpack.c.l.b16 %v23
  %v32 = vunpack.c.l.b16 %v24
  %v33 = vpack.c.b16 %v32, %v31
  %v38 = vunpack.c.l.b16 %v25
  %v39 = vunpack.c.l.b16 %v26
  %v40 = vunpack.c.l.b16 %v27
  %v41 = vunpack.c.l.b16 %v28
  %v42 = vpack.c.b16 %v39, %v38
  %v43 = vpack.c.b16 %v41, %v40
  %vm46 = vcmask 261120
  %v48 = vsel %vm46, %v33, 0
  %50 = vmatpush.bf16.msra.mxu0 0
  %51 = vmatpush.bf16.msra.mxu0 0
  %52 = vmatpush.bf16.msra.mxu0 0
  %53 = vmatpush.bf16.msra.mxu0 0
  %54 = vmatpush.bf16.msra.mxu0 0
  %55 = vmatpush.bf16.msra.mxu0 0
  %56 = vmatpush.bf16.msra.mxu0 %v43
  %57 = vmatpush.bf16.msra.mxu0 %v42
  %58 = vmatmul.bf16.gmra.mxu0 %v48
  %v59 = vpop.f32.mrf.mxu0
  %v60 = vadd.f32 0.0, %v59
  %v61 = vpop.f32.mrf.mxu0
  %v62 = vadd.f32 0.0, %v61
  %63 = vdwg.mxu0
  %v64 = vadd.f32 %v21, %v60
  %v65 = vadd.f32 %v22, %v62
  %66 = vst [vmem:[#allocation2] sm:$0xff] %v64
  %67 = vst [vmem:[#allocation2 + $0x8] sm:$0xff] %v65
  // Predicated region
  $region18: #{transformer_decoder.11} parent=0 // pred_check
    %p68 = pneg %p15
  $region19: #{transformer_decoder.11} parent=0 // pred_check_branch
    %70 = sbr.rel (%p68) target = $region21
  $region20: #{transformer_decoder.11} parent=0 // pred_region
    %v71 = vld [vmem:[#allocation2] sm:$0xff]
    %v72 = vld [vmem:[#allocation2 + $0x8] sm:$0xff]
    %v73 = vld [vmem:[%s2] sm:$0x1]
    %v75 = vperm.slane %v73, 0
    %v77 = vadd.f32 %v71, %v75
    %v78 = vadd.f32 %v72, %v75
    %v79 = vmax.f32 %v77, 0.0
    %v80 = vmax.f32 %v78, 0.0
    %v81 = vpack.c.bf16 %v79, %v79
    %v82 = vpack.c.bf16 %v80, %v80
    %83 = vst [vmem:[%s3] sm:$0xf] %v81
    %84 = vst [vmem:[%s3 + $0x4] sm:$0xf] %v82
  $region21: #{transformer_decoder.11} parent=0 // pred_fallthru
    _
  // Predicated region
  $region22: #{transformer_decoder.11} parent=0 // pred_check
    _
  $region23: #{transformer_decoder.11} parent=0 // pred_check_branch
    %86 = sbr.rel (0) target = $region25
  $region24: #{transformer_decoder.11} parent=0 // pred_region
    _
  $region25: #{transformer_decoder.11} parent=0 // pred_fallthru
    _
  // Predicated region
  $region26: #{transformer_decoder.11} parent=0 // pred_check
    _
  $region27: #{transformer_decoder.11} parent=0 // pred_check_branch
    %88 = sbr.rel (0) target = $region29
  $region28: #{transformer_decoder.11} parent=0 // pred_region
    _
  $region29: #{transformer_decoder.11} parent=0 // pred_fallthru
    _

// kernel: transformer_decoder.12
$region0: #{transformer_decoder.12}
  #allocation0 [shape = 'u32[]', space=smem, size = 0x4, offset = 0x4, fixed_abs, tag = 'smem constant byte address 0x4 - core index']
  #allocation1 [shape = 'u32[72,128]{1,0:T(1,128)}', space=vmem, size = 0x9000, scoped, tag = 'internal scratch']
  #allocation2 [shape = 'f32[16,32]{1,0:T(8,128)}', space=vmem, size = 0x2000, scoped, tag = 'scratch operand']
  %s0 = inlined_call_operand.vmem [shape: bf16[16,128], index: 0, kind: input, shape index: {}]
  %s1 = inlined_call_operand.vmem [shape: bf16[128,32], index: 1, kind: input, shape index: {}]
  %s2 = inlined_call_operand.vmem [shape: f32[1,32], index: 2, kind: input, shape index: {}]
  %s3 = inlined_call_operand.vmem [shape: bf16[16,32], index: 3, kind: input, shape index: {}]
  %s4 = inlined_call_operand.vmem [shape: f32[1,32], index: 4, kind: input, shape index: {}]
  %s5 = inlined_call_operand.vmem [shape: f32[1,32], index: 5, kind: input, shape index: {}]
  %s6 = inlined_call_operand.vmem [shape: bf16[16,32], index: 6, kind: output, shape index: {}]
  %s7 = sld [smem:[#allocation0]]
  $region42: #{transformer_decoder.12} parent=0
    _
  %s9 = ssub.s32 1, %s7
  %s10 = scalar_select 0, %s9, %s7
  // Predicated region
  $region2: #{transformer_decoder.12} parent=0 // pred_check
    _
  $region3: #{transformer_decoder.12} parent=0 // pred_check_branch
    %12 = sbr.rel (0) target = $region5
  $region4: #{transformer_decoder.12} parent=0 // pred_region
    _
  $region5: #{transformer_decoder.12} parent=0 // pred_fallthru
    _
  // Predicated region
  $region6: #{transformer_decoder.12} parent=0 // pred_check
    _
  $region7: #{transformer_decoder.12} parent=0 // pred_check_branch
    %14 = sbr.rel (0) target = $region9
  $region8: #{transformer_decoder.12} parent=0 // pred_region
    _
  $region9: #{transformer_decoder.12} parent=0 // pred_fallthru
    _
  // Predicated region
  $region10: #{transformer_decoder.12} parent=0 // pred_check
    _
  $region11: #{transformer_decoder.12} parent=0 // pred_check_branch
    %16 = sbr.rel (0) target = $region13
  $region12: #{transformer_decoder.12} parent=0 // pred_region
    _
  $region13: #{transformer_decoder.12} parent=0 // pred_fallthru
    _
  // Predicated region
  $region14: #{transformer_decoder.12} parent=0 // pred_check
    _
  $region15: #{transformer_decoder.12} parent=0 // pred_check_branch
    %18 = sbr.rel (0) target = $region17
  $region16: #{transformer_decoder.12} parent=0 // pred_region
    _
  $region17: #{transformer_decoder.12} parent=0 // pred_fallthru
    _
  // Predicated region
  $region18: #{transformer_decoder.12} parent=0 // pred_check
    _
  $region19: #{transformer_decoder.12} parent=0 // pred_check_branch
    %20 = sbr.rel (0) target = $region21
  $region20: #{transformer_decoder.12} parent=0 // pred_region
    _
  $region21: #{transformer_decoder.12} parent=0 // pred_fallthru
    _
  // Predicated region
  $region22: #{transformer_decoder.12} parent=0 // pred_check
    _
  $region23: #{transformer_decoder.12} parent=0 // pred_check_branch
    %22 = sbr.rel (0) target = $region25
  $region24: #{transformer_decoder.12} parent=0 // pred_region
    _
  $region25: #{transformer_decoder.12} parent=0 // pred_fallthru
    _
  %p23 = scmp.eq.s32.totalorder 0, 0
  // Predicated region
  $region26: #{transformer_decoder.12} parent=0 // pred_check
    %p24 = pneg %p23
  $region27: #{transformer_decoder.12} parent=0 // pred_check_branch
    %26 = sbr.rel (%p24) target = $region29
  $region28: #{transformer_decoder.12} parent=0 // pred_region
    %vm27 = vcmask 261120
    %28 = vst.msk [vmem:[#allocation2] sm:$0xff] %vm27, 0.0
    %29 = vst.msk [vmem:[#allocation2 + $0x8] sm:$0xff] %vm27, 0.0
  $region29: #{transformer_decoder.12} parent=0 // pred_fallthru
    _
  %v30 = vld [vmem:[#allocation2] sm:$0xff]
  %v31 = vld [vmem:[#allocation2 + $0x8] sm:$0xff]
  %v32 = vld [vmem:[%s0] sm:$0xf]
  %v33 = vld [vmem:[%s0 + $0x4] sm:$0xf]
  %v34 = vld [vmem:[%s1] sm:$0xf]
  %v35 = vld [vmem:[%s1 + $0x4] sm:$0xf]
  %v36 = vld [vmem:[%s1 + $0x8] sm:$0xf]
  %v37 = vld [vmem:[%s1 + $0xc] sm:$0xf]
  %v38 = vld [vmem:[%s1 + $0x10] sm:$0xf]
  %v39 = vld [vmem:[%s1 + $0x14] sm:$0xf]
  %v40 = vld [vmem:[%s1 + $0x18] sm:$0xf]
  %v41 = vld [vmem:[%s1 + $0x1c] sm:$0xf]
  %v42 = vld [vmem:[%s1 + $0x20] sm:$0xf]
  %v43 = vld [vmem:[%s1 + $0x24] sm:$0xf]
  %v44 = vld [vmem:[%s1 + $0x28] sm:$0xf]
  %v45 = vld [vmem:[%s1 + $0x2c] sm:$0xf]
  %v46 = vld [vmem:[%s1 + $0x30] sm:$0xf]
  %v47 = vld [vmem:[%s1 + $0x34] sm:$0xf]
  %v48 = vld [vmem:[%s1 + $0x38] sm:$0xf]
  %v49 = vld [vmem:[%s1 + $0x3c] sm:$0xf]
  %v52 = vunpack.c.l.b16 %v32
  %v53 = vunpack.c.l.b16 %v33
  %v54 = vpack.c.b16 %v53, %v52
  %v72 = vunpack.c.l.b16 %v34
  %v73 = vunpack.c.l.b16 %v35
  %v74 = vunpack.c.l.b16 %v36
  %v75 = vunpack.c.l.b16 %v37
  %v76 = vunpack.c.l.b16 %v38
  %v77 = vunpack.c.l.b16 %v39
  %v78 = vunpack.c.l.b16 %v40
  %v79 = vunpack.c.l.b16 %v41
  %v80 = vunpack.c.l.b16 %v42
  %v81 = vunpack.c.l.b16 %v43
  %v82 = vunpack.c.l.b16 %v44
  %v83 = vunpack.c.l.b16 %v45
  %v84 = vunpack.c.l.b16 %v46
  %v85 = vunpack.c.l.b16 %v47
  %v86 = vunpack.c.l.b16 %v48
  %v87 = vunpack.c.l.b16 %v49
  %v88 = vpack.c.b16 %v73, %v72
  %v89 = vpack.c.b16 %v75, %v74
  %v90 = vpack.c.b16 %v77, %v76
  %v91 = vpack.c.b16 %v79, %v78
  %v92 = vpack.c.b16 %v81, %v80
  %v93 = vpack.c.b16 %v83, %v82
  %v94 = vpack.c.b16 %v85, %v84
  %v95 = vpack.c.b16 %v87, %v86
  %104 = vmatpush.bf16.msra.mxu0 %v95
  %105 = vmatpush.bf16.msra.mxu0 %v94
  %106 = vmatpush.bf16.msra.mxu0 %v93
  %107 = vmatpush.bf16.msra.mxu0 %v92
  %108 = vmatpush.bf16.msra.mxu0 %v91
  %109 = vmatpush.bf16.msra.mxu0 %v90
  %110 = vmatpush.bf16.msra.mxu0 %v89
  %111 = vmatpush.bf16.msra.mxu0 %v88
  %112 = vmatmul.bf16.gmra.mxu0 %v54
  %v113 = vpop.f32.mrf.mxu0
  %v114 = vadd.f32 0.0, %v113
  %v115 = vpop.f32.mrf.mxu0
  %v116 = vadd.f32 0.0, %v115
  %117 = vdwg.mxu0
  %v118 = vadd.f32 %v30, %v114
  %v119 = vadd.f32 %v31, %v116
  %vm120 = vcmask 261120
  %121 = vst.msk [vmem:[#allocation2] sm:$0xff] %vm120, %v118
  %122 = vst.msk [vmem:[#allocation2 + $0x8] sm:$0xff] %vm120, %v119
  // Predicated region
  $region30: #{transformer_decoder.12} parent=0 // pred_check
    %p123 = pneg %p23
  $region31: #{transformer_decoder.12} parent=0 // pred_check_branch
    %125 = sbr.rel (%p123) target = $region33
  $region32: #{transformer_decoder.12} parent=0 // pred_region
    %v126 = vld [vmem:[#allocation2] sm:$0xff]
    %v127 = vld [vmem:[#allocation2 + $0x8] sm:$0xff]
    %v128 = vld [vmem:[%s2] sm:$0x1]
    %v130 = vperm.slane %v128, 0
    %v132 = vadd.f32 %v126, %v130
    %v133 = vadd.f32 %v127, %v130
    %v134 = vld [vmem:[%s3] sm:$0xf]
    %v135 = vld [vmem:[%s3 + $0x4] sm:$0xf]
    %v136 = vunpack.c.l.bf16 %v134
    %v137 = vunpack.c.l.bf16 %v135
    %v138 = vadd.f32 %v132, %v136
    %v139 = vadd.f32 %v133, %v137
    %v140 = vsel %vm120, %v138, 0.0
    %141 = vadd.xlane.f32.xlu0 %v140
    %v142 = vpop.xlane.xlu0 %141
    %v143 = vsel %vm120, %v139, 0.0
    %144 = vadd.xlane.f32.xlu0 %v143
    %v145 = vpop.xlane.xlu0 %144
    %v146 = vrcp.pop 32.0
    %v147 = vmul.f32 32.0, %v146
    %v148 = vsub.f32 1.0, %v147
    %v149 = vmul.f32 %v146, %v148
    %v150 = vadd.f32 %v146, %v149
    %vm151 = vweird.f32 %v146
    %v152 = vsel %vm151, %v146, %v150
    %v153 = vmul.f32 %v142, %v152
    %v154 = vmul.f32 %v145, %v152
    %v155 = vsub.f32 %v138, %v153
    %v156 = vsub.f32 %v139, %v154
    %v157 = vmul.f32 %v155, %v155
    %v158 = vmul.f32 %v156, %v156
    %v159 = vsel %vm120, %v157, 0.0
    %160 = vadd.xlane.f32.xlu0 %v159
    %v161 = vpop.xlane.xlu0 %160
    %v162 = vsel %vm120, %v158, 0.0
    %163 = vadd.xlane.f32.xlu0 %v162
    %v164 = vpop.xlane.xlu0 %163
    %v165 = vmul.f32 %v161, %v152
    %v166 = vmul.f32 %v164, %v152
    %v167 = vadd.f32 %v165, 1e-05
    %v168 = vadd.f32 %v166, 1e-05
    %v169 = vrsqrt.pop %v167
    %v170 = vmul.f32 %v169, %v167
    %v171 = vmul.f32 %v170, %v169
    %v172 = vmul.f32 0.5, %v171
    %v173 = vsub.f32 1.5, %v172
    %v174 = vmul.f32 %v169, %v173
    %vm175 = vweird.f32 %v167
    %vm176 = vweird.f32 %v169
    %vm177 = vmor %vm175, %vm176
    %v178 = vsel %vm177, %v169, %v174
    %v179 = vrsqrt.pop %v168
    %v180 = vmul.f32 %v179, %v168
    %v181 = vmul.f32 %v180, %v179
    %v182 = vmul.f32 0.5, %v181
    %v183 = vsub.f32 1.5, %v182
    %v184 = vmul.f32 %v179, %v183
    %vm185 = vweird.f32 %v168
    %vm186 = vweird.f32 %v179
    %vm187 = vmor %vm185, %vm186
    %v188 = vsel %vm187, %v179, %v184
    %v189 = vmul.f32 %v155, %v178
    %v190 = vmul.f32 %v156, %v188
    %v191 = vld [vmem:[%s4] sm:$0x1]
    %v193 = vperm.slane %v191, 0
    %v195 = vmul.f32 %v189, %v193
    %v196 = vmul.f32 %v190, %v193
    %v197 = vld [vmem:[%s5] sm:$0x1]
    %v199 = vperm.slane %v197, 0
    %v201 = vadd.f32 %v195, %v199
    %v202 = vadd.f32 %v196, %v199
    %v203 = vpack.c.bf16 %v201, %v201
    %v204 = vpack.c.bf16 %v202, %v202
    %vm205 = vcmask 257024
    %206 = vst.msk [vmem:[%s6] sm:$0xf] %vm205, %v203
    %207 = vst.msk [vmem:[%s6 + $0x4] sm:$0xf] %vm205, %v204
  $region33: #{transformer_decoder.12} parent=0 // pred_fallthru
    _
  // Predicated region
  $region34: #{transformer_decoder.12} parent=0 // pred_check
    _
  $region35: #{transformer_decoder.12} parent=0 // pred_check_branch
    %209 = sbr.rel (0) target = $region37
  $region36: #{transformer_decoder.12} parent=0 // pred_region
    _
  $region37: #{transformer_decoder.12} parent=0 // pred_fallthru
    _
  // Predicated region
  $region38: #{transformer_decoder.12} parent=0 // pred_check
    _
  $region39: #{transformer_decoder.12} parent=0 // pred_check_branch
    %211 = sbr.rel (0) target = $region41
  $region40: #{transformer_decoder.12} parent=0 // pred_region
    _
  $region41: #{transformer_decoder.12} parent=0 // pred_fallthru
    _

// kernel: transformer_decoder.10
$region0: #{transformer_decoder.10}
  #allocation0 [shape = 'u32[]', space=smem, size = 0x4, offset = 0x4, fixed_abs, tag = 'smem constant byte address 0x4 - core index']
  #allocation1 [shape = 'u32[72,128]{1,0:T(1,128)}', space=vmem, size = 0x9000, scoped, tag = 'internal scratch']
  %s0 = inlined_call_operand.vmem [shape: bf16[2,8,32], index: 0, kind: input, shape index: {}]
  %s1 = inlined_call_operand.vmem [shape: bf16[2,8,32], index: 1, kind: input, shape index: {}, may-alias: {1,2,3}]
  %s2 = inlined_call_operand.vmem [shape: bf16[2,8,32], index: 2, kind: input, shape index: {}, may-alias: {1,2,3}]
  %s3 = inlined_call_operand.vmem [shape: bf16[2,8,32], index: 3, kind: input, shape index: {}, may-alias: {1,2,3}]
  %s4 = inlined_call_operand.vmem [shape: bf16[3,32,32], index: 4, kind: input, shape index: {}]
  %s5 = inlined_call_operand.vmem [shape: bf16[8,4,32], index: 5, kind: input, shape index: {}]
  %s6 = inlined_call_operand.vmem [shape: f32[1,32], index: 6, kind: input, shape index: {}]
  %s7 = inlined_call_operand.vmem [shape: f32[1,32], index: 7, kind: input, shape index: {}]
  %s8 = inlined_call_operand.vmem [shape: f32[1,32], index: 8, kind: input, shape index: {}]
  %s9 = inlined_call_operand.vmem [shape: bf16[2,8,32], index: 9, kind: output, shape index: {}]
  %s10 = sld [smem:[#allocation0]]
  $region69: #{transformer_decoder.10} parent=0
    _
  %s12 = ssub.s32 1, %s10
  %s13 = scalar_select 0, %s12, %s10
  loop: start=0, step=1, limit=4
  $region2: #{transformer_decoder.10} parent=0 // loop_pre_header
    _
  $region3: #{transformer_decoder.10} parent=0 // loop_header
    %s15 = sphi 0, %s19
    %p16 = scmp.ge.s32.totalorder %s15, 4
    %s25 = sphi 0, %s27
    %s28 = sphi 0, %s25
    %s29 = sphi 0, %s28
    %s45 = sphi 0, %s29
    %s51 = sphi 0, %s53
    %s54 = sphi 0, %s51
    %s55 = sphi 0, %s54
    %s71 = sphi 0, %s55
    %s77 = sphi 0, %s79
    %s80 = sphi 0, %s77
    %s81 = sphi 0, %s80
    %s97 = sphi 0, %s81
    %s103 = sphi 0, %s105
    %s106 = sphi 0, %s103
    %s107 = sphi 0, %s106
    %s123 = sphi 0, %s107
    %s127 = sphi 0, %s127
    %s129 = sphi 0, %s127
    %s130 = sphi 0, %s129
    %s144 = sphi 0, %s130
    %s148 = sphi 0, %s148
    %s150 = sphi 0, %s148
    %s151 = sphi 0, %s150
    %s165 = sphi 0, %s151
    %s169 = sphi 0, %s169
    %s171 = sphi 0, %s169
    %s172 = sphi 0, %s171
    %s186 = sphi 0, %s172
    %s190 = sphi 0, %s190
    %s192 = sphi 0, %s190
    %s193 = sphi 0, %s192
    %s207 = sphi 0, %s193
    %s211 = sphi 0, %s211
    %s213 = sphi 0, %s211
    %s214 = sphi 0, %s213
    %s228 = sphi 0, %s214
    %s234 = sphi 0, %s236
    %s237 = sphi 0, %s234
    %s238 = sphi 0, %s237
    %s254 = sphi 0, %s238
  $region4: #{transformer_decoder.10} parent=0 // loop_header_branch
    %18 = sbr.rel (%p16) target = $region8
  $region5: #{transformer_decoder.10} parent=0 // loop_body
    %s20 = ssub.s32 %s15, 1
    %s21 = ssub.s32 %s15, 2
    %s22 = sadd.s32 %s15, 1
    %s23 = ssub.s32 %s15, %s22
    %p24 = scmp.eq.s32.totalorder %s23, 0
    %s26 = sadd.s32 %s25, 1
    %s27 = scalar_select %p24, %s25, %s26
    %p30 = pneg %p24
    %p31 = scmp.eq.s32.totalorder %s15, 1
    %p32 = por %p30, %p31
    %p33 = scmp.ne.s32.totalorder %s25, %s28
    %p34 = scmp.eq.s32.totalorder %s15, 0
    %p35 = por %p33, %p34
    %p36 = scmp.ne.s32.totalorder %s25, %s28
    %p37 = scmp.eq.s32.totalorder %s20, 1
    %p38 = por %p36, %p37
    %p39 = scmp.ne.s32.totalorder %s28, %s29
    %p40 = scmp.eq.s32.totalorder %s20, 0
    %p41 = por %p39, %p40
    %p42 = scmp.ne.s32.totalorder %s28, %s29
    %p43 = scmp.eq.s32.totalorder %s21, 1
    %p44 = por %p42, %p43
    %p46 = scmp.ne.s32.totalorder %s29, %s45
    %p47 = scmp.eq.s32.totalorder %s21, 0
    %p48 = por %p46, %p47
    %s49 = ssub.s32 %s15, %s22
    %p50 = scmp.eq.s32.totalorder %s49, 0
    %s52 = sadd.s32 %s51, 1
    %s53 = scalar_select %p50, %s51, %s52
    %p56 = pneg %p50
    %p57 = scmp.eq.s32.totalorder %s15, 1
    %p58 = por %p56, %p57
    %p59 = scmp.ne.s32.totalorder %s51, %s54
    %p60 = scmp.eq.s32.totalorder %s15, 0
    %p61 = por %p59, %p60
    %p62 = scmp.ne.s32.totalorder %s51, %s54
    %p63 = scmp.eq.s32.totalorder %s20, 1
    %p64 = por %p62, %p63
    %p65 = scmp.ne.s32.totalorder %s54, %s55
    %p66 = scmp.eq.s32.totalorder %s20, 0
    %p67 = por %p65, %p66
    %p68 = scmp.ne.s32.totalorder %s54, %s55
    %p69 = scmp.eq.s32.totalorder %s21, 1
    %p70 = por %p68, %p69
    %p72 = scmp.ne.s32.totalorder %s55, %s71
    %p73 = scmp.eq.s32.totalorder %s21, 0
    %p74 = por %p72, %p73
    %s75 = ssub.s32 %s15, %s22
    %p76 = scmp.eq.s32.totalorder %s75, 0
    %s78 = sadd.s32 %s77, 1
    %s79 = scalar_select %p76, %s77, %s78
    %p82 = pneg %p76
    %p83 = scmp.eq.s32.totalorder %s15, 1
    %p84 = por %p82, %p83
    %p85 = scmp.ne.s32.totalorder %s77, %s80
    %p86 = scmp.eq.s32.totalorder %s15, 0
    %p87 = por %p85, %p86
    %p88 = scmp.ne.s32.totalorder %s77, %s80
    %p89 = scmp.eq.s32.totalorder %s20, 1
    %p90 = por %p88, %p89
    %p91 = scmp.ne.s32.totalorder %s80, %s81
    %p92 = scmp.eq.s32.totalorder %s20, 0
    %p93 = por %p91, %p92
    %p94 = scmp.ne.s32.totalorder %s80, %s81
    %p95 = scmp.eq.s32.totalorder %s21, 1
    %p96 = por %p94, %p95
    %p98 = scmp.ne.s32.totalorder %s81, %s97
    %p99 = scmp.eq.s32.totalorder %s21, 0
    %p100 = por %p98, %p99
    %s101 = ssub.s32 %s15, %s22
    %p102 = scmp.eq.s32.totalorder %s101, 0
    %s104 = sadd.s32 %s103, 1
    %s105 = scalar_select %p102, %s103, %s104
    %p108 = pneg %p102
    %p109 = scmp.eq.s32.totalorder %s15, 1
    %p110 = por %p108, %p109
    %p111 = scmp.ne.s32.totalorder %s103, %s106
    %p112 = scmp.eq.s32.totalorder %s15, 0
    %p113 = por %p111, %p112
    %p114 = scmp.ne.s32.totalorder %s103, %s106
    %p115 = scmp.eq.s32.totalorder %s20, 1
    %p116 = por %p114, %p115
    %p117 = scmp.ne.s32.totalorder %s106, %s107
    %p118 = scmp.eq.s32.totalorder %s20, 0
    %p119 = por %p117, %p118
    %p120 = scmp.ne.s32.totalorder %s106, %s107
    %p121 = scmp.eq.s32.totalorder %s21, 1
    %p122 = por %p120, %p121
    %p124 = scmp.ne.s32.totalorder %s107, %s123
    %p125 = scmp.eq.s32.totalorder %s21, 0
    %p126 = por %p124, %p125
    %s128 = sadd.s32 %s127, 1
    %p131 = scmp.eq.s32.totalorder %s15, 1
    %p132 = scmp.ne.s32.totalorder %s127, %s129
    %p133 = scmp.eq.s32.totalorder %s15, 0
    %p134 = por %p132, %p133
    %p135 = scmp.ne.s32.totalorder %s127, %s129
    %p136 = scmp.eq.s32.totalorder %s20, 1
    %p137 = por %p135, %p136
    %p138 = scmp.ne.s32.totalorder %s129, %s130
    %p139 = scmp.eq.s32.totalorder %s20, 0
    %p140 = por %p138, %p139
    %p141 = scmp.ne.s32.totalorder %s129, %s130
    %p142 = scmp.eq.s32.totalorder %s21, 1
    %p143 = por %p141, %p142
    %p145 = scmp.ne.s32.totalorder %s130, %s144
    %p146 = scmp.eq.s32.totalorder %s21, 0
    %p147 = por %p145, %p146
    %s149 = sadd.s32 %s148, 1
    %p152 = scmp.eq.s32.totalorder %s15, 1
    %p153 = scmp.ne.s32.totalorder %s148, %s150
    %p154 = scmp.eq.s32.totalorder %s15, 0
    %p155 = por %p153, %p154
    %p156 = scmp.ne.s32.totalorder %s148, %s150
    %p157 = scmp.eq.s32.totalorder %s20, 1
    %p158 = por %p156, %p157
    %p159 = scmp.ne.s32.totalorder %s150, %s151
    %p160 = scmp.eq.s32.totalorder %s20, 0
    %p161 = por %p159, %p160
    %p162 = scmp.ne.s32.totalorder %s150, %s151
    %p163 = scmp.eq.s32.totalorder %s21, 1
    %p164 = por %p162, %p163
    %p166 = scmp.ne.s32.totalorder %s151, %s165
    %p167 = scmp.eq.s32.totalorder %s21, 0
    %p168 = por %p166, %p167
    %s170 = sadd.s32 %s169, 1
    %p173 = scmp.eq.s32.totalorder %s15, 1
    %p174 = scmp.ne.s32.totalorder %s169, %s171
    %p175 = scmp.eq.s32.totalorder %s15, 0
    %p176 = por %p174, %p175
    %p177 = scmp.ne.s32.totalorder %s169, %s171
    %p178 = scmp.eq.s32.totalorder %s20, 1
    %p179 = por %p177, %p178
    %p180 = scmp.ne.s32.totalorder %s171, %s172
    %p181 = scmp.eq.s32.totalorder %s20, 0
    %p182 = por %p180, %p181
    %p183 = scmp.ne.s32.totalorder %s171, %s172
    %p184 = scmp.eq.s32.totalorder %s21, 1
    %p185 = por %p183, %p184
    %p187 = scmp.ne.s32.totalorder %s172, %s186
    %p188 = scmp.eq.s32.totalorder %s21, 0
    %p189 = por %p187, %p188
    %s191 = sadd.s32 %s190, 1
    %p194 = scmp.eq.s32.totalorder %s15, 1
    %p195 = scmp.ne.s32.totalorder %s190, %s192
    %p196 = scmp.eq.s32.totalorder %s15, 0
    %p197 = por %p195, %p196
    %p198 = scmp.ne.s32.totalorder %s190, %s192
    %p199 = scmp.eq.s32.totalorder %s20, 1
    %p200 = por %p198, %p199
    %p201 = scmp.ne.s32.totalorder %s192, %s193
    %p202 = scmp.eq.s32.totalorder %s20, 0
    %p203 = por %p201, %p202
    %p204 = scmp.ne.s32.totalorder %s192, %s193
    %p205 = scmp.eq.s32.totalorder %s21, 1
    %p206 = por %p204, %p205
    %p208 = scmp.ne.s32.totalorder %s193, %s207
    %p209 = scmp.eq.s32.totalorder %s21, 0
    %p210 = por %p208, %p209
    %s212 = sadd.s32 %s211, 1
    %p215 = scmp.eq.s32.totalorder %s15, 1
    %p216 = scmp.ne.s32.totalorder %s211, %s213
    %p217 = scmp.eq.s32.totalorder %s15, 0
    %p218 = por %p216, %p217
    %p219 = scmp.ne.s32.totalorder %s211, %s213
    %p220 = scmp.eq.s32.totalorder %s20, 1
    %p221 = por %p219, %p220
    %p222 = scmp.ne.s32.totalorder %s213, %s214
    %p223 = scmp.eq.s32.totalorder %s20, 0
    %p224 = por %p222, %p223
    %p225 = scmp.ne.s32.totalorder %s213, %s214
    %p226 = scmp.eq.s32.totalorder %s21, 1
    %p227 = por %p225, %p226
    %p229 = scmp.ne.s32.totalorder %s214, %s228
    %p230 = scmp.eq.s32.totalorder %s21, 0
    %p231 = por %p229, %p230
    %s232 = ssub.s32 %s15, %s22
    %p233 = scmp.eq.s32.totalorder %s232, 0
    %s235 = sadd.s32 %s234, 1
    %s236 = scalar_select %p233, %s234, %s235
    %p239 = pneg %p233
    %p240 = scmp.eq.s32.totalorder %s15, 1
    %p241 = por %p239, %p240
    %p242 = scmp.ne.s32.totalorder %s234, %s237
    %p243 = scmp.eq.s32.totalorder %s15, 0
    %p244 = por %p242, %p243
    %p245 = scmp.ne.s32.totalorder %s234, %s237
    %p246 = scmp.eq.s32.totalorder %s20, 1
    %p247 = por %p245, %p246
    %p248 = scmp.ne.s32.totalorder %s237, %s238
    %p249 = scmp.eq.s32.totalorder %s20, 0
    %p250 = por %p248, %p249
    %p251 = scmp.ne.s32.totalorder %s237, %s238
    %p252 = scmp.eq.s32.totalorder %s21, 1
    %p253 = por %p251, %p252
    %p255 = scmp.ne.s32.totalorder %s238, %s254
    %p256 = scmp.eq.s32.totalorder %s21, 0
    %p257 = por %p255, %p256
    %p258 = scmp.le.s32.totalorder 1, %s15
    %p259 = scmp.lt.s32.totalorder %s15, 3
    %p260 = pnand %p258, %p259
    %p261 = pneg %p260
    // Predicated region
    $region9: #{transformer_decoder.10} parent=5 // pred_check
      _
    $region10: #{transformer_decoder.10} parent=5 // pred_check_branch
      %263 = sbr.rel (%p260) target = $region12
    $region11: #{transformer_decoder.10} parent=5 // pred_region
      %s264 = ssub.s32 %s15, 1
      // Predicated region
      $region13: #{transformer_decoder.10} parent=11 // pred_check
        %p265 = pneg %p140
      $region14: #{transformer_decoder.10} parent=11 // pred_check_branch
        %267 = sbr.rel (%p265) target = $region16
      $region15: #{transformer_decoder.10} parent=11 // pred_region
        _
      $region16: #{transformer_decoder.10} parent=11 // pred_fallthru
        _
      // Predicated region
      $region17: #{transformer_decoder.10} parent=11 // pred_check
        %p268 = pneg %p161
      $region18: #{transformer_decoder.10} parent=11 // pred_check_branch
        %270 = sbr.rel (%p268) target = $region20
      $region19: #{transformer_decoder.10} parent=11 // pred_region
        _
      $region20: #{transformer_decoder.10} parent=11 // pred_fallthru
        _
      // Predicated region
      $region21: #{transformer_decoder.10} parent=11 // pred_check
        %p271 = pneg %p182
      $region22: #{transformer_decoder.10} parent=11 // pred_check_branch
        %273 = sbr.rel (%p271) target = $region24
      $region23: #{transformer_decoder.10} parent=11 // pred_region
        _
      $region24: #{transformer_decoder.10} parent=11 // pred_fallthru
        _
      // Predicated region
      $region25: #{transformer_decoder.10} parent=11 // pred_check
        %p274 = pneg %p203
      $region26: #{transformer_decoder.10} parent=11 // pred_check_branch
        %276 = sbr.rel (%p274) target = $region28
      $region27: #{transformer_decoder.10} parent=11 // pred_region
        _
      $region28: #{transformer_decoder.10} parent=11 // pred_fallthru
        _
      // Predicated region
      $region29: #{transformer_decoder.10} parent=11 // pred_check
        %p277 = pneg %p224
      $region30: #{transformer_decoder.10} parent=11 // pred_check_branch
        %279 = sbr.rel (%p277) target = $region32
      $region31: #{transformer_decoder.10} parent=11 // pred_region
        _
      $region32: #{transformer_decoder.10} parent=11 // pred_fallthru
        _
    $region12: #{transformer_decoder.10} parent=5 // pred_fallthru
      _
    %p280 = scmp.lt.s32.totalorder %s15, 2
    // Predicated region
    $region33: #{transformer_decoder.10} parent=5 // pred_check
      %p281 = pneg %p280
    $region34: #{transformer_decoder.10} parent=5 // pred_check_branch
      %283 = sbr.rel (%p281) target = $region36
    $region35: #{transformer_decoder.10} parent=5 // pred_region
      // Predicated region
      $region37: #{transformer_decoder.10} parent=35 // pred_check
        %p284 = pneg %p35
      $region38: #{transformer_decoder.10} parent=35 // pred_check_branch
        %286 = sbr.rel (%p284) target = $region40
      $region39: #{transformer_decoder.10} parent=35 // pred_region
        %p287 = scmp.lt.s32.totalorder %s15, 1
        %s288 = scalar_select %p287, %s15, 1
        %s289 = smul.addr %s288, 4
        %s290 = scalar_lea.vmem %s0, %s289
      $region40: #{transformer_decoder.10} parent=35 // pred_fallthru
        _
      // Predicated region
      $region41: #{transformer_decoder.10} parent=35 // pred_check
        %p291 = pneg %p61
      $region42: #{transformer_decoder.10} parent=35 // pred_check_branch
        %293 = sbr.rel (%p291) target = $region44
      $region43: #{transformer_decoder.10} parent=35 // pred_region
        %p294 = scmp.lt.s32.totalorder %s15, 1
        %s295 = scalar_select %p294, %s15, 1
        %s296 = smul.addr %s295, 4
        %s297 = scalar_lea.vmem %s1, %s296
      $region44: #{transformer_decoder.10} parent=35 // pred_fallthru
        _
      // Predicated region
      $region45: #{transformer_decoder.10} parent=35 // pred_check
        %p298 = pneg %p87
      $region46: #{transformer_decoder.10} parent=35 // pred_check_branch
        %300 = sbr.rel (%p298) target = $region48
      $region47: #{transformer_decoder.10} parent=35 // pred_region
        %p301 = scmp.lt.s32.totalorder %s15, 1
        %s302 = scalar_select %p301, %s15, 1
        %s303 = smul.addr %s302, 4
        %s304 = scalar_lea.vmem %s2, %s303
      $region48: #{transformer_decoder.10} parent=35 // pred_fallthru
        _
      // Predicated region
      $region49: #{transformer_decoder.10} parent=35 // pred_check
        %p305 = pneg %p113
      $region50: #{transformer_decoder.10} parent=35 // pred_check_branch
        %307 = sbr.rel (%p305) target = $region52
      $region51: #{transformer_decoder.10} parent=35 // pred_region
        %p308 = scmp.lt.s32.totalorder %s15, 1
        %s309 = scalar_select %p308, %s15, 1
        %s310 = smul.addr %s309, 4
        %s311 = scalar_lea.vmem %s3, %s310
      $region52: #{transformer_decoder.10} parent=35 // pred_fallthru
        _
    $region36: #{transformer_decoder.10} parent=5 // pred_fallthru
      _
    %p312 = scmp.le.s32.totalorder 1, %s15
    %p313 = scmp.lt.s32.totalorder %s15, 3
    %p314 = pnand %p312, %p313
    %p315 = pneg %p314
    // Predicated region
    $region53: #{transformer_decoder.10} parent=5 // pred_check
      _
    $region54: #{transformer_decoder.10} parent=5 // pred_check_branch
      %317 = sbr.rel (%p314) target = $region56
    $region55: #{transformer_decoder.10} parent=5 // pred_region
      %s318 = ssub.s32 %s15, 1
      %p319 = scmp.lt.s32.totalorder %s20, 1
      %s320 = scalar_select %p319, %s20, 1
      %s321 = smul.addr %s320, 4
      %s322 = scalar_lea.vmem %s0, %s321
      %p323 = pneg %p41
      %p324 = pneg %p38
      %p325 = scmp.lt.s32.totalorder %s20, 1
      %s326 = scalar_select %p325, %s20, 1
      %s327 = smul.addr %s326, 4
      %s328 = scalar_lea.vmem %s1, %s327
      %p329 = pneg %p67
      %p330 = pneg %p64
      %p331 = scmp.lt.s32.totalorder %s20, 1
      %s332 = scalar_select %p331, %s20, 1
      %s333 = smul.addr %s332, 4
      %s334 = scalar_lea.vmem %s2, %s333
      %p335 = pneg %p93
      %p336 = pneg %p90
      %p337 = scmp.lt.s32.totalorder %s20, 1
      %s338 = scalar_select %p337, %s20, 1
      %s339 = smul.addr %s338, 4
      %s340 = scalar_lea.vmem %s3, %s339
      %p341 = pneg %p119
      %p342 = pneg %p116
      %p343 = pneg %p140
      %p344 = pneg %p137
      %p345 = pneg %p161
      %p346 = pneg %p158
      %p347 = pneg %p182
      %p348 = pneg %p179
      %p349 = pneg %p203
      %p350 = pneg %p200
      %p351 = pneg %p224
      %p352 = pneg %p221
      %p353 = pneg %p250
      %p354 = pneg %p247
      %p355 = scmp.lt.s32.totalorder %s20, 1
      %s356 = scalar_select %p355, %s20, 1
      %s357 = smul.addr %s356, 4
      %s358 = scalar_lea.vmem %s9, %s357
      %p359 = scmp.lt.s32.totalorder %s20, 1
      %s360 = scalar_select %p359, %s20, 1
      %s361 = smul.addr %s360, 4
      %s362 = scalar_lea.vmem %s0, %s361
      %p363 = scmp.lt.s32.totalorder %s20, 1
      %s364 = scalar_select %p363, %s20, 1
      %s365 = smul.addr %s364, 4
      %s366 = scalar_lea.vmem %s1, %s365
      %p367 = scmp.lt.s32.totalorder %s20, 1
      %s368 = scalar_select %p367, %s20, 1
      %s369 = smul.addr %s368, 4
      %s370 = scalar_lea.vmem %s2, %s369
      %p371 = scmp.lt.s32.totalorder %s20, 1
      %s372 = scalar_select %p371, %s20, 1
      %s373 = smul.addr %s372, 4
      %s374 = scalar_lea.vmem %s3, %s373
      %p375 = scmp.lt.s32.totalorder %s20, 1
      %s376 = scalar_select %p375, %s20, 1
      %s377 = smul.addr %s376, 4
      %s378 = scalar_lea.vmem %s9, %s377
      %v380 = vld [vmem:[%s362] sm:$0xf]
      %v381 = vld [vmem:[%s366] sm:$0xf]
      %v382 = vld [vmem:[%s370] sm:$0xf]
      %v383 = vld [vmem:[%s4] sm:$0xf]
      %v384 = vld [vmem:[%s4 + $0x4] sm:$0xf]
      %v385 = vld [vmem:[%s4 + $0x8] sm:$0xf]
      %v386 = vld [vmem:[%s4 + $0xc] sm:$0xf]
      %v391 = vunpack.c.l.b16 %v383
      %v392 = vunpack.c.l.b16 %v384
      %v393 = vunpack.c.l.b16 %v385
      %v394 = vunpack.c.l.b16 %v386
      %v395 = vpack.c.b16 %v392, %v391
      %v396 = vpack.c.b16 %v394, %v393
      %vm399 = vcmask 261120
      %v401 = vsel %vm399, %v380, 0
      %403 = vmatpush.bf16.msra.mxu0 0
      %404 = vmatpush.bf16.msra.mxu0 0
      %405 = vmatpush.bf16.msra.mxu0 0
      %406 = vmatpush.bf16.msra.mxu0 0
      %407 = vmatpush.bf16.msra.mxu0 0
      %408 = vmatpush.bf16.msra.mxu0 0
      %409 = vmatpush.bf16.msra.mxu0 %v396
      %410 = vmatpush.bf16.msra.mxu0 %v395
      %411 = vmatmul.bf16.gmra.mxu0 %v401
      %v412 = vpop.f32.mrf.mxu0
      %v413 = vadd.f32 0.0, %v412
      %v414 = vpop.f32.mrf.mxu0
      %415 = vdwg.mxu0
      %v416 = vmul.f32 %v413, 0.5
      %v417 = vpack.c.bf16 %v416, %v416
      %s418 = scalar_lea.vmem %s4, 16
      %v419 = vld [vmem:[%s418] sm:$0xf]
      %v420 = vld [vmem:[%s418 + $0x4] sm:$0xf]
      %v421 = vld [vmem:[%s418 + $0x8] sm:$0xf]
      %v422 = vld [vmem:[%s418 + $0xc] sm:$0xf]
      %v427 = vunpack.c.l.b16 %v419
      %v428 = vunpack.c.l.b16 %v420
      %v429 = vunpack.c.l.b16 %v421
      %v430 = vunpack.c.l.b16 %v422
      %v431 = vpack.c.b16 %v428, %v427
      %v432 = vpack.c.b16 %v430, %v429
      %v436 = vsel %vm399, %v381, 0
      %438 = vmatpush.bf16.msra.mxu0 0
      %439 = vmatpush.bf16.msra.mxu0 0
      %440 = vmatpush.bf16.msra.mxu0 0
      %441 = vmatpush.bf16.msra.mxu0 0
      %442 = vmatpush.bf16.msra.mxu0 0
      %443 = vmatpush.bf16.msra.mxu0 0
      %444 = vmatpush.bf16.msra.mxu0 %v432
      %445 = vmatpush.bf16.msra.mxu0 %v431
      %446 = vmatmul.bf16.gmra.mxu0 %v436
      %v447 = vpop.f32.mrf.mxu0
      %v448 = vadd.f32 0.0, %v447
      %v449 = vpop.f32.mrf.mxu0
      %450 = vdwg.mxu0
      %v451 = vpack.c.bf16 %v448, %v448
      %s452 = scalar_lea.vmem %s4, 32
      %v453 = vld [vmem:[%s452] sm:$0xf]
      %v454 = vld [vmem:[%s452 + $0x4] sm:$0xf]
      %v455 = vld [vmem:[%s452 + $0x8] sm:$0xf]
      %v456 = vld [vmem:[%s452 + $0xc] sm:$0xf]
      %v461 = vunpack.c.l.b16 %v453
      %v462 = vunpack.c.l.b16 %v454
      %v463 = vunpack.c.l.b16 %v455
      %v464 = vunpack.c.l.b16 %v456
      %v465 = vpack.c.b16 %v462, %v461
      %v466 = vpack.c.b16 %v464, %v463
      %v470 = vsel %vm399, %v382, 0
      %472 = vmatpush.bf16.msra.mxu0 0
      %473 = vmatpush.bf16.msra.mxu0 0
      %474 = vmatpush.bf16.msra.mxu0 0
      %475 = vmatpush.bf16.msra.mxu0 0
      %476 = vmatpush.bf16.msra.mxu0 0
      %477 = vmatpush.bf16.msra.mxu0 0
      %478 = vmatpush.bf16.msra.mxu0 %v466
      %479 = vmatpush.bf16.msra.mxu0 %v465
      %480 = vmatmul.bf16.gmra.mxu0 %v470
      %v481 = vpop.f32.mrf.mxu0
      %v482 = vadd.f32 0.0, %v481
      %v483 = vpop.f32.mrf.mxu0
      %484 = vdwg.mxu0
      %v485 = vpack.c.bf16 %v482, %v482
      %vm486 = vcmask 31744
      %v488 = vsel %vm486, %v417, 0
      %v491 = vsel %vm486, %v451, 0
      %493 = vmatpush.bf16.xpose.msra.mxu0 0
      %494 = vmatpush.bf16.xpose.msra.mxu0 0
      %495 = vmatpush.bf16.xpose.msra.mxu0 0
      %496 = vmatpush.bf16.xpose.msra.mxu0 0
      %497 = vmatpush.bf16.xpose.msra.mxu0 0
      %498 = vmatpush.bf16.xpose.msra.mxu0 0
      %499 = vmatpush.bf16.xpose.msra.mxu0 0
      %500 = vmatpush.bf16.xpose.msra.mxu0 %v491
      %501 = vmatmul.bf16.gmra.mxu0 %v488
      %v502 = vpop.f32.mrf.mxu0
      %v503 = vadd.f32 0.0, %v502
      %v504 = vpop.f32.mrf.mxu0
      %505 = vdwg.mxu0
      %vm506 = vcmask 64512
      %v507 = vsel %vm506, %v503, -inf
      %508 = vmax.xlane.f32.xlu0 %v507
      %v509 = vpop.xlane.xlu0 %508
      %v510 = vsub.f32 %v503, %v509
      %v511 = vmul.f32 %v510, 1.442695
      %v512 = vpow.pop %v511
      %v513 = vsel %vm506, %v512, 0.0
      %514 = vadd.xlane.f32.xlu0 %v513
      %v515 = vpop.xlane.xlu0 %514
      %v516 = vrcp.pop %v515
      %v517 = vmul.f32 %v512, %v516
      %v518 = vpack.c.bf16 %v517, %v517
      %v520 = vsel %vm506, %v518, 0
      %vm522 = vcmask 1043456
      %v524 = vsel %vm522, %v485, 0
      %526 = vmatpush.bf16.msra.mxu0 0
      %527 = vmatpush.bf16.msra.mxu0 0
      %528 = vmatpush.bf16.msra.mxu0 0
      %529 = vmatpush.bf16.msra.mxu0 0
      %530 = vmatpush.bf16.msra.mxu0 0
      %531 = vmatpush.bf16.msra.mxu0 0
      %532 = vmatpush.bf16.msra.mxu0 0
      %533 = vmatpush.bf16.msra.mxu0 %v524
      %534 = vmatmul.bf16.gmra.mxu0 %v520
      %v535 = vpop.f32.mrf.mxu0
      %v536 = vadd.f32 0.0, %v535
      %v537 = vpop.f32.mrf.mxu0
      %538 = vdwg.mxu0
      %v539 = vpack.c.bf16 %v536, %v536
      %v540 = vld [vmem:[%s5] sm:$0x3]
      %v542 = vunpack.c.l.b16 %v417
      %v543 = vpack.c.b16 %v542, %v542
      %544 = vrot.lane.b32.xlu0 %v543, 124
      %v545 = vpop.permute.xlu0 %544
      %v547 = vunpack.c.l.b16 %v451
      %v548 = vpack.c.b16 %v547, %v547
      %549 = vrot.lane.b32.xlu0 %v548, 124
      %v550 = vpop.permute.xlu0 %549
      %v552 = vsel %vm486, %v545, 0
      %v555 = vsel %vm486, %v550, 0
      %557 = vmatpush.bf16.xpose.msra.mxu0 0
      %558 = vmatpush.bf16.xpose.msra.mxu0 0
      %559 = vmatpush.bf16.xpose.msra.mxu0 0
      %560 = vmatpush.bf16.xpose.msra.mxu0 0
      %561 = vmatpush.bf16.xpose.msra.mxu0 0
      %562 = vmatpush.bf16.xpose.msra.mxu0 0
      %563 = vmatpush.bf16.xpose.msra.mxu0 0
      %564 = vmatpush.bf16.xpose.msra.mxu0 %v555
      %565 = vmatmul.bf16.gmra.mxu0 %v552
      %v566 = vpop.f32.mrf.mxu0
      %v567 = vadd.f32 0.0, %v566
      %v568 = vpop.f32.mrf.mxu0
      %569 = vdwg.mxu0
      %v570 = vsel %vm506, %v567, -inf
      %571 = vmax.xlane.f32.xlu0 %v570
      %v572 = vpop.xlane.xlu0 %571
      %v573 = vsub.f32 %v567, %v572
      %v574 = vmul.f32 %v573, 1.442695
      %v575 = vpow.pop %v574
      %v576 = vsel %vm506, %v575, 0.0
      %577 = vadd.xlane.f32.xlu0 %v576
      %v578 = vpop.xlane.xlu0 %577
      %v579 = vrcp.pop %v578
      %v580 = vmul.f32 %v575, %v579
      %v581 = vpack.c.bf16 %v580, %v580
      %v583 = vunpack.c.l.b16 %v485
      %v584 = vpack.c.b16 %v583, %v583
      %585 = vrot.lane.b32.xlu0 %v584, 124
      %v586 = vpop.permute.xlu0 %585
      %v588 = vsel %vm506, %v581, 0
      %v591 = vsel %vm522, %v586, 0
      %593 = vmatpush.bf16.msra.mxu0 0
      %594 = vmatpush.bf16.msra.mxu0 0
      %595 = vmatpush.bf16.msra.mxu0 0
      %596 = vmatpush.bf16.msra.mxu0 0
      %597 = vmatpush.bf16.msra.mxu0 0
      %598 = vmatpush.bf16.msra.mxu0 0
      %599 = vmatpush.bf16.msra.mxu0 0
      %600 = vmatpush.bf16.msra.mxu0 %v591
      %601 = vmatmul.bf16.gmra.mxu0 %v588
      %v602 = vpop.f32.mrf.mxu0
      %v603 = vadd.f32 0.0, %v602
      %v604 = vpop.f32.mrf.mxu0
      %605 = vdwg.mxu0
      %v606 = vpack.c.bf16 %v603, %v603
      %s607 = scalar_lea.vmem %s5, 2
      %v608 = vld [vmem:[%s607] sm:$0x3]
      %v610 = vsel %vm486, %v606, 0
      %vm612 = vcmask 1041408
      %v614 = vsel %vm612, %v608, 0
      %616 = vmatpush.bf16.msra.mxu0 0
      %617 = vmatpush.bf16.msra.mxu0 0
      %618 = vmatpush.bf16.msra.mxu0 0
      %619 = vmatpush.bf16.msra.mxu0 0
      %620 = vmatpush.bf16.msra.mxu0 0
      %621 = vmatpush.bf16.msra.mxu0 0
      %622 = vmatpush.bf16.msra.mxu0 0
      %623 = vmatpush.bf16.msra.mxu0 %v614
      %624 = vmatmul.bf16.gmra.mxu0 %v610
      %v625 = vpop.f32.mrf.mxu0
      %v626 = vadd.f32 0.0, %v625
      %v627 = vpop.f32.mrf.mxu0
      %628 = vdwg.mxu0
      %v630 = vsel %vm486, %v539, 0
      %v633 = vsel %vm612, %v540, 0
      %635 = vmatpush.bf16.msra.mxu0 0
      %636 = vmatpush.bf16.msra.mxu0 0
      %637 = vmatpush.bf16.msra.mxu0 0
      %638 = vmatpush.bf16.msra.mxu0 0
      %639 = vmatpush.bf16.msra.mxu0 0
      %640 = vmatpush.bf16.msra.mxu0 0
      %641 = vmatpush.bf16.msra.mxu0 0
      %642 = vmatpush.bf16.msra.mxu0 %v633
      %643 = vmatmul.bf16.gmra.mxu0 %v630
      %v644 = vpop.f32.mrf.mxu0
      %v645 = vadd.f32 %v626, %v644
      %v646 = vpop.f32.mrf.mxu0
      %647 = vdwg.mxu0
      %648 = vrot.lane.b32.xlu0 %v543, 120
      %v649 = vpop.permute.xlu0 %648
      %650 = vrot.lane.b32.xlu0 %v548, 120
      %v651 = vpop.permute.xlu0 %650
      %v653 = vsel %vm486, %v649, 0
      %v656 = vsel %vm486, %v651, 0
      %658 = vmatpush.bf16.xpose.msra.mxu0 0
      %659 = vmatpush.bf16.xpose.msra.mxu0 0
      %660 = vmatpush.bf16.xpose.msra.mxu0 0
      %661 = vmatpush.bf16.xpose.msra.mxu0 0
      %662 = vmatpush.bf16.xpose.msra.mxu0 0
      %663 = vmatpush.bf16.xpose.msra.mxu0 0
      %664 = vmatpush.bf16.xpose.msra.mxu0 0
      %665 = vmatpush.bf16.xpose.msra.mxu0 %v656
      %666 = vmatmul.bf16.gmra.mxu0 %v653
      %v667 = vpop.f32.mrf.mxu0
      %v668 = vadd.f32 0.0, %v667
      %v669 = vpop.f32.mrf.mxu0
      %670 = vdwg.mxu0
      %v671 = vsel %vm506, %v668, -inf
      %672 = vmax.xlane.f32.xlu0 %v671
      %v673 = vpop.xlane.xlu0 %672
      %v674 = vsub.f32 %v668, %v673
      %v675 = vmul.f32 %v674, 1.442695
      %v676 = vpow.pop %v675
      %v677 = vsel %vm506, %v676, 0.0
      %678 = vadd.xlane.f32.xlu0 %v677
      %v679 = vpop.xlane.xlu0 %678
      %v680 = vrcp.pop %v679
      %v681 = vmul.f32 %v676, %v680
      %v682 = vpack.c.bf16 %v681, %v681
      %683 = vrot.lane.b32.xlu0 %v584, 120
      %v684 = vpop.permute.xlu0 %683
      %v686 = vsel %vm506, %v682, 0
      %v689 = vsel %vm522, %v684, 0
      %691 = vmatpush.bf16.msra.mxu0 0
      %692 = vmatpush.bf16.msra.mxu0 0
      %693 = vmatpush.bf16.msra.mxu0 0
      %694 = vmatpush.bf16.msra.mxu0 0
      %695 = vmatpush.bf16.msra.mxu0 0
      %696 = vmatpush.bf16.msra.mxu0 0
      %697 = vmatpush.bf16.msra.mxu0 0
      %698 = vmatpush.bf16.msra.mxu0 %v689
      %699 = vmatmul.bf16.gmra.mxu0 %v686
      %v700 = vpop.f32.mrf.mxu0
      %v701 = vadd.f32 0.0, %v700
      %v702 = vpop.f32.mrf.mxu0
      %703 = vdwg.mxu0
      %v704 = vpack.c.bf16 %v701, %v701
      %s705 = scalar_lea.vmem %s5, 4
      %v706 = vld [vmem:[%s705] sm:$0x3]
      %v708 = vsel %vm486, %v704, 0
      %v711 = vsel %vm612, %v706, 0
      %713 = vmatpush.bf16.msra.mxu0 0
      %714 = vmatpush.bf16.msra.mxu0 0
      %715 = vmatpush.bf16.msra.mxu0 0
      %716 = vmatpush.bf16.msra.mxu0 0
      %717 = vmatpush.bf16.msra.mxu0 0
      %718 = vmatpush.bf16.msra.mxu0 0
      %719 = vmatpush.bf16.msra.mxu0 0
      %720 = vmatpush.bf16.msra.mxu0 %v711
      %721 = vmatmul.bf16.gmra.mxu0 %v708
      %v722 = vpop.f32.mrf.mxu0
      %v723 = vadd.f32 0.0, %v722
      %v724 = vpop.f32.mrf.mxu0
      %725 = vdwg.mxu0
      %v726 = vadd.f32 %v645, %v723
      %727 = vrot.lane.b32.xlu0 %v543, 116
      %v728 = vpop.permute.xlu0 %727
      %729 = vrot.lane.b32.xlu0 %v548, 116
      %v730 = vpop.permute.xlu0 %729
      %v732 = vsel %vm486, %v728, 0
      %v735 = vsel %vm486, %v730, 0
      %737 = vmatpush.bf16.xpose.msra.mxu0 0
      %738 = vmatpush.bf16.xpose.msra.mxu0 0
      %739 = vmatpush.bf16.xpose.msra.mxu0 0
      %740 = vmatpush.bf16.xpose.msra.mxu0 0
      %741 = vmatpush.bf16.xpose.msra.mxu0 0
      %742 = vmatpush.bf16.xpose.msra.mxu0 0
      %743 = vmatpush.bf16.xpose.msra.mxu0 0
      %744 = vmatpush.bf16.xpose.msra.mxu0 %v735
      %745 = vmatmul.bf16.gmra.mxu0 %v732
      %v746 = vpop.f32.mrf.mxu0
      %v747 = vadd.f32 0.0, %v746
      %v748 = vpop.f32.mrf.mxu0
      %749 = vdwg.mxu0
      %v750 = vsel %vm506, %v747, -inf
      %751 = vmax.xlane.f32.xlu0 %v750
      %v752 = vpop.xlane.xlu0 %751
      %v753 = vsub.f32 %v747, %v752
      %v754 = vmul.f32 %v753, 1.442695
      %v755 = vpow.pop %v754
      %v756 = vsel %vm506, %v755, 0.0
      %757 = vadd.xlane.f32.xlu0 %v756
      %v758 = vpop.xlane.xlu0 %757
      %v759 = vrcp.pop %v758
      %v760 = vmul.f32 %v755, %v759
      %v761 = vpack.c.bf16 %v760, %v760
      %762 = vrot.lane.b32.xlu0 %v584, 116
      %v763 = vpop.permute.xlu0 %762
      %v765 = vsel %vm506, %v761, 0
      %v768 = vsel %vm522, %v763, 0
      %770 = vmatpush.bf16.msra.mxu0 0
      %771 = vmatpush.bf16.msra.mxu0 0
      %772 = vmatpush.bf16.msra.mxu0 0
      %773 = vmatpush.bf16.msra.mxu0 0
      %774 = vmatpush.bf16.msra.mxu0 0
      %775 = vmatpush.bf16.msra.mxu0 0
      %776 = vmatpush.bf16.msra.mxu0 0
      %777 = vmatpush.bf16.msra.mxu0 %v768
      %778 = vmatmul.bf16.gmra.mxu0 %v765
      %v779 = vpop.f32.mrf.mxu0
      %v780 = vadd.f32 0.0, %v779
      %v781 = vpop.f32.mrf.mxu0
      %782 = vdwg.mxu0
      %v783 = vpack.c.bf16 %v780, %v780
      %s784 = scalar_lea.vmem %s5, 6
      %v785 = vld [vmem:[%s784] sm:$0x3]
      %v787 = vsel %vm486, %v783, 0
      %v790 = vsel %vm612, %v785, 0
      %792 = vmatpush.bf16.msra.mxu0 0
      %793 = vmatpush.bf16.msra.mxu0 0
      %794 = vmatpush.bf16.msra.mxu0 0
      %795 = vmatpush.bf16.msra.mxu0 0
      %796 = vmatpush.bf16.msra.mxu0 0
      %797 = vmatpush.bf16.msra.mxu0 0
      %798 = vmatpush.bf16.msra.mxu0 0
      %799 = vmatpush.bf16.msra.mxu0 %v790
      %800 = vmatmul.bf16.gmra.mxu0 %v787
      %v801 = vpop.f32.mrf.mxu0
      %v802 = vadd.f32 0.0, %v801
      %v803 = vpop.f32.mrf.mxu0
      %804 = vdwg.mxu0
      %v805 = vadd.f32 %v726, %v802
      %806 = vrot.lane.b32.xlu0 %v543, 112
      %v807 = vpop.permute.xlu0 %806
      %808 = vrot.lane.b32.xlu0 %v548, 112
      %v809 = vpop.permute.xlu0 %808
      %v811 = vsel %vm486, %v807, 0
      %v814 = vsel %vm486, %v809, 0
      %816 = vmatpush.bf16.xpose.msra.mxu0 0
      %817 = vmatpush.bf16.xpose.msra.mxu0 0
      %818 = vmatpush.bf16.xpose.msra.mxu0 0
      %819 = vmatpush.bf16.xpose.msra.mxu0 0
      %820 = vmatpush.bf16.xpose.msra.mxu0 0
      %821 = vmatpush.bf16.xpose.msra.mxu0 0
      %822 = vmatpush.bf16.xpose.msra.mxu0 0
      %823 = vmatpush.bf16.xpose.msra.mxu0 %v814
      %824 = vmatmul.bf16.gmra.mxu0 %v811
      %v825 = vpop.f32.mrf.mxu0
      %v826 = vadd.f32 0.0, %v825
      %v827 = vpop.f32.mrf.mxu0
      %828 = vdwg.mxu0
      %v829 = vsel %vm506, %v826, -inf
      %830 = vmax.xlane.f32.xlu0 %v829
      %v831 = vpop.xlane.xlu0 %830
      %v832 = vsub.f32 %v826, %v831
      %v833 = vmul.f32 %v832, 1.442695
      %v834 = vpow.pop %v833
      %v835 = vsel %vm506, %v834, 0.0
      %836 = vadd.xlane.f32.xlu0 %v835
      %v837 = vpop.xlane.xlu0 %836
      %v838 = vrcp.pop %v837
      %v839 = vmul.f32 %v834, %v838
      %v840 = vpack.c.bf16 %v839, %v839
      %841 = vrot.lane.b32.xlu0 %v584, 112
      %v842 = vpop.permute.xlu0 %841
      %v844 = vsel %vm506, %v840, 0
      %v847 = vsel %vm522, %v842, 0
      %849 = vmatpush.bf16.msra.mxu0 0
      %850 = vmatpush.bf16.msra.mxu0 0
      %851 = vmatpush.bf16.msra.mxu0 0
      %852 = vmatpush.bf16.msra.mxu0 0
      %853 = vmatpush.bf16.msra.mxu0 0
      %854 = vmatpush.bf16.msra.mxu0 0
      %855 = vmatpush.bf16.msra.mxu0 0
      %856 = vmatpush.bf16.msra.mxu0 %v847
      %857 = vmatmul.bf16.gmra.mxu0 %v844
      %v858 = vpop.f32.mrf.mxu0
      %v859 = vadd.f32 0.0, %v858
      %v860 = vpop.f32.mrf.mxu0
      %861 = vdwg.mxu0
      %v862 = vpack.c.bf16 %v859, %v859
      %s863 = scalar_lea.vmem %s5, 8
      %v864 = vld [vmem:[%s863] sm:$0x3]
      %v866 = vsel %vm486, %v862, 0
      %v869 = vsel %vm612, %v864, 0
      %871 = vmatpush.bf16.msra.mxu0 0
      %872 = vmatpush.bf16.msra.mxu0 0
      %873 = vmatpush.bf16.msra.mxu0 0
      %874 = vmatpush.bf16.msra.mxu0 0
      %875 = vmatpush.bf16.msra.mxu0 0
      %876 = vmatpush.bf16.msra.mxu0 0
      %877 = vmatpush.bf16.msra.mxu0 0
      %878 = vmatpush.bf16.msra.mxu0 %v869
      %879 = vmatmul.bf16.gmra.mxu0 %v866
      %v880 = vpop.f32.mrf.mxu0
      %v881 = vadd.f32 0.0, %v880
      %v882 = vpop.f32.mrf.mxu0
      %883 = vdwg.mxu0
      %v884 = vadd.f32 %v805, %v881
      %885 = vrot.lane.b32.xlu0 %v543, 108
      %v886 = vpop.permute.xlu0 %885
      %887 = vrot.lane.b32.xlu0 %v548, 108
      %v888 = vpop.permute.xlu0 %887
      %v890 = vsel %vm486, %v886, 0
      %v893 = vsel %vm486, %v888, 0
      %895 = vmatpush.bf16.xpose.msra.mxu0 0
      %896 = vmatpush.bf16.xpose.msra.mxu0 0
      %897 = vmatpush.bf16.xpose.msra.mxu0 0
      %898 = vmatpush.bf16.xpose.msra.mxu0 0
      %899 = vmatpush.bf16.xpose.msra.mxu0 0
      %900 = vmatpush.bf16.xpose.msra.mxu0 0
      %901 = vmatpush.bf16.xpose.msra.mxu0 0
      %902 = vmatpush.bf16.xpose.msra.mxu0 %v893
      %903 = vmatmul.bf16.gmra.mxu0 %v890
      %v904 = vpop.f32.mrf.mxu0
      %v905 = vadd.f32 0.0, %v904
      %v906 = vpop.f32.mrf.mxu0
      %907 = vdwg.mxu0
      %v908 = vsel %vm506, %v905, -inf
      %909 = vmax.xlane.f32.xlu0 %v908
      %v910 = vpop.xlane.xlu0 %909
      %v911 = vsub.f32 %v905, %v910
      %v912 = vmul.f32 %v911, 1.442695
      %v913 = vpow.pop %v912
      %v914 = vsel %vm506, %v913, 0.0
      %915 = vadd.xlane.f32.xlu0 %v914
      %v916 = vpop.xlane.xlu0 %915
      %v917 = vrcp.pop %v916
      %v918 = vmul.f32 %v913, %v917
      %v919 = vpack.c.bf16 %v918, %v918
      %920 = vrot.lane.b32.xlu0 %v584, 108
      %v921 = vpop.permute.xlu0 %920
      %v923 = vsel %vm506, %v919, 0
      %v926 = vsel %vm522, %v921, 0
      %928 = vmatpush.bf16.msra.mxu0 0
      %929 = vmatpush.bf16.msra.mxu0 0
      %930 = vmatpush.bf16.msra.mxu0 0
      %931 = vmatpush.bf16.msra.mxu0 0
      %932 = vmatpush.bf16.msra.mxu0 0
      %933 = vmatpush.bf16.msra.mxu0 0
      %934 = vmatpush.bf16.msra.mxu0 0
      %935 = vmatpush.bf16.msra.mxu0 %v926
      %936 = vmatmul.bf16.gmra.mxu0 %v923
      %v937 = vpop.f32.mrf.mxu0
      %v938 = vadd.f32 0.0, %v937
      %v939 = vpop.f32.mrf.mxu0
      %940 = vdwg.mxu0
      %v941 = vpack.c.bf16 %v938, %v938
      %s942 = scalar_lea.vmem %s5, 10
      %v943 = vld [vmem:[%s942] sm:$0x3]
      %v945 = vsel %vm486, %v941, 0
      %v948 = vsel %vm612, %v943, 0
      %950 = vmatpush.bf16.msra.mxu0 0
      %951 = vmatpush.bf16.msra.mxu0 0
      %952 = vmatpush.bf16.msra.mxu0 0
      %953 = vmatpush.bf16.msra.mxu0 0
      %954 = vmatpush.bf16.msra.mxu0 0
      %955 = vmatpush.bf16.msra.mxu0 0
      %956 = vmatpush.bf16.msra.mxu0 0
      %957 = vmatpush.bf16.msra.mxu0 %v948
      %958 = vmatmul.bf16.gmra.mxu0 %v945
      %v959 = vpop.f32.mrf.mxu0
      %v960 = vadd.f32 0.0, %v959
      %v961 = vpop.f32.mrf.mxu0
      %962 = vdwg.mxu0
      %v963 = vadd.f32 %v884, %v960
      %964 = vrot.lane.b32.xlu0 %v543, 104
      %v965 = vpop.permute.xlu0 %964
      %966 = vrot.lane.b32.xlu0 %v548, 104
      %v967 = vpop.permute.xlu0 %966
      %v969 = vsel %vm486, %v965, 0
      %v972 = vsel %vm486, %v967, 0
      %974 = vmatpush.bf16.xpose.msra.mxu0 0
      %975 = vmatpush.bf16.xpose.msra.mxu0 0
      %976 = vmatpush.bf16.xpose.msra.mxu0 0
      %977 = vmatpush.bf16.xpose.msra.mxu0 0
      %978 = vmatpush.bf16.xpose.msra.mxu0 0
      %979 = vmatpush.bf16.xpose.msra.mxu0 0
      %980 = vmatpush.bf16.xpose.msra.mxu0 0
      %981 = vmatpush.bf16.xpose.msra.mxu0 %v972
      %982 = vmatmul.bf16.gmra.mxu0 %v969
      %v983 = vpop.f32.mrf.mxu0
      %v984 = vadd.f32 0.0, %v983
      %v985 = vpop.f32.mrf.mxu0
      %986 = vdwg.mxu0
      %v987 = vsel %vm506, %v984, -inf
      %988 = vmax.xlane.f32.xlu0 %v987
      %v989 = vpop.xlane.xlu0 %988
      %v990 = vsub.f32 %v984, %v989
      %v991 = vmul.f32 %v990, 1.442695
      %v992 = vpow.pop %v991
      %v993 = vsel %vm506, %v992, 0.0
      %994 = vadd.xlane.f32.xlu0 %v993
      %v995 = vpop.xlane.xlu0 %994
      %v996 = vrcp.pop %v995
      %v997 = vmul.f32 %v992, %v996
      %v998 = vpack.c.bf16 %v997, %v997
      %999 = vrot.lane.b32.xlu0 %v584, 104
      %v1000 = vpop.permute.xlu0 %999
      %v1002 = vsel %vm506, %v998, 0
      %v1005 = vsel %vm522, %v1000, 0
      %1007 = vmatpush.bf16.msra.mxu0 0
      %1008 = vmatpush.bf16.msra.mxu0 0
      %1009 = vmatpush.bf16.msra.mxu0 0
      %1010 = vmatpush.bf16.msra.mxu0 0
      %1011 = vmatpush.bf16.msra.mxu0 0
      %1012 = vmatpush.bf16.msra.mxu0 0
      %1013 = vmatpush.bf16.msra.mxu0 0
      %1014 = vmatpush.bf16.msra.mxu0 %v1005
      %1015 = vmatmul.bf16.gmra.mxu0 %v1002
      %v1016 = vpop.f32.mrf.mxu0
      %v1017 = vadd.f32 0.0, %v1016
      %v1018 = vpop.f32.mrf.mxu0
      %1019 = vdwg.mxu0
      %v1020 = vpack.c.bf16 %v1017, %v1017
      %s1021 = scalar_lea.vmem %s5, 12
      %v1022 = vld [vmem:[%s1021] sm:$0x3]
      %v1024 = vsel %vm486, %v1020, 0
      %v1027 = vsel %vm612, %v1022, 0
      %1029 = vmatpush.bf16.msra.mxu0 0
      %1030 = vmatpush.bf16.msra.mxu0 0
      %1031 = vmatpush.bf16.msra.mxu0 0
      %1032 = vmatpush.bf16.msra.mxu0 0
      %1033 = vmatpush.bf16.msra.mxu0 0
      %1034 = vmatpush.bf16.msra.mxu0 0
      %1035 = vmatpush.bf16.msra.mxu0 0
      %1036 = vmatpush.bf16.msra.mxu0 %v1027
      %1037 = vmatmul.bf16.gmra.mxu0 %v1024
      %v1038 = vpop.f32.mrf.mxu0
      %v1039 = vadd.f32 0.0, %v1038
      %v1040 = vpop.f32.mrf.mxu0
      %1041 = vdwg.mxu0
      %v1042 = vadd.f32 %v963, %v1039
      %1043 = vrot.lane.b32.xlu0 %v543, 100
      %v1044 = vpop.permute.xlu0 %1043
      %1045 = vrot.lane.b32.xlu0 %v548, 100
      %v1046 = vpop.permute.xlu0 %1045
      %v1048 = vsel %vm486, %v1044, 0
      %v1051 = vsel %vm486, %v1046, 0
      %1053 = vmatpush.bf16.xpose.msra.mxu0 0
      %1054 = vmatpush.bf16.xpose.msra.mxu0 0
      %1055 = vmatpush.bf16.xpose.msra.mxu0 0
      %1056 = vmatpush.bf16.xpose.msra.mxu0 0
      %1057 = vmatpush.bf16.xpose.msra.mxu0 0
      %1058 = vmatpush.bf16.xpose.msra.mxu0 0
      %1059 = vmatpush.bf16.xpose.msra.mxu0 0
      %1060 = vmatpush.bf16.xpose.msra.mxu0 %v1051
      %1061 = vmatmul.bf16.gmra.mxu0 %v1048
      %v1062 = vpop.f32.mrf.mxu0
      %v1063 = vadd.f32 0.0, %v1062
      %v1064 = vpop.f32.mrf.mxu0
      %1065 = vdwg.mxu0
      %v1066 = vsel %vm506, %v1063, -inf
      %1067 = vmax.xlane.f32.xlu0 %v1066
      %v1068 = vpop.xlane.xlu0 %1067
      %v1069 = vsub.f32 %v1063, %v1068
      %v1070 = vmul.f32 %v1069, 1.442695
      %v1071 = vpow.pop %v1070
      %v1072 = vsel %vm506, %v1071, 0.0
      %1073 = vadd.xlane.f32.xlu0 %v1072
      %v1074 = vpop.xlane.xlu0 %1073
      %v1075 = vrcp.pop %v1074
      %v1076 = vmul.f32 %v1071, %v1075
      %v1077 = vpack.c.bf16 %v1076, %v1076
      %1078 = vrot.lane.b32.xlu0 %v584, 100
      %v1079 = vpop.permute.xlu0 %1078
      %v1081 = vsel %vm506, %v1077, 0
      %v1084 = vsel %vm522, %v1079, 0
      %1086 = vmatpush.bf16.msra.mxu0 0
      %1087 = vmatpush.bf16.msra.mxu0 0
      %1088 = vmatpush.bf16.msra.mxu0 0
      %1089 = vmatpush.bf16.msra.mxu0 0
      %1090 = vmatpush.bf16.msra.mxu0 0
      %1091 = vmatpush.bf16.msra.mxu0 0
      %1092 = vmatpush.bf16.msra.mxu0 0
      %1093 = vmatpush.bf16.msra.mxu0 %v1084
      %1094 = vmatmul.bf16.gmra.mxu0 %v1081
      %v1095 = vpop.f32.mrf.mxu0
      %v1096 = vadd.f32 0.0, %v1095
      %v1097 = vpop.f32.mrf.mxu0
      %1098 = vdwg.mxu0
      %v1099 = vpack.c.bf16 %v1096, %v1096
      %s1100 = scalar_lea.vmem %s5, 14
      %v1101 = vld [vmem:[%s1100] sm:$0x3]
      %v1103 = vsel %vm486, %v1099, 0
      %v1106 = vsel %vm612, %v1101, 0
      %1108 = vmatpush.bf16.msra.mxu0 0
      %1109 = vmatpush.bf16.msra.mxu0 0
      %1110 = vmatpush.bf16.msra.mxu0 0
      %1111 = vmatpush.bf16.msra.mxu0 0
      %1112 = vmatpush.bf16.msra.mxu0 0
      %1113 = vmatpush.bf16.msra.mxu0 0
      %1114 = vmatpush.bf16.msra.mxu0 0
      %1115 = vmatpush.bf16.msra.mxu0 %v1106
      %1116 = vmatmul.bf16.gmra.mxu0 %v1103
      %v1117 = vpop.f32.mrf.mxu0
      %v1118 = vadd.f32 0.0, %v1117
      %v1119 = vpop.f32.mrf.mxu0
      %1120 = vdwg.mxu0
      %v1121 = vadd.f32 %v1042, %v1118
      %v1122 = vld [vmem:[%s6] sm:$0x1]
      %v1124 = vperm.slane %v1122, 0
      %v1126 = vadd.f32 %v1121, %v1124
      %v1127 = vld [vmem:[%s374] sm:$0xf]
      %v1128 = vunpack.c.l.bf16 %v1127
      %v1129 = vadd.f32 %v1126, %v1128
      %v1130 = vsel %vm399, %v1129, 0.0
      %1131 = vadd.xlane.f32.xlu0 %v1130
      %v1132 = vpop.xlane.xlu0 %1131
      %v1133 = vrcp.pop 32.0
      %v1134 = vmul.f32 32.0, %v1133
      %v1135 = vsub.f32 1.0, %v1134
      %v1136 = vmul.f32 %v1133, %v1135
      %v1137 = vadd.f32 %v1133, %v1136
      %vm1138 = vweird.f32 %v1133
      %v1139 = vsel %vm1138, %v1133, %v1137
      %v1140 = vmul.f32 %v1132, %v1139
      %v1141 = vsub.f32 %v1129, %v1140
      %v1142 = vmul.f32 %v1141, %v1141
      %v1143 = vsel %vm399, %v1142, 0.0
      %1144 = vadd.xlane.f32.xlu0 %v1143
      %v1145 = vpop.xlane.xlu0 %1144
      %v1146 = vmul.f32 %v1145, %v1139
      %v1147 = vadd.f32 %v1146, 1e-05
      %v1148 = vrsqrt.pop %v1147
      %v1149 = vmul.f32 %v1148, %v1147
      %v1150 = vmul.f32 %v1149, %v1148
      %v1151 = vmul.f32 0.5, %v1150
      %v1152 = vsub.f32 1.5, %v1151
      %v1153 = vmul.f32 %v1148, %v1152
      %vm1154 = vweird.f32 %v1147
      %vm1155 = vweird.f32 %v1148
      %vm1156 = vmor %vm1154, %vm1155
      %v1157 = vsel %vm1156, %v1148, %v1153
      %v1158 = vmul.f32 %v1141, %v1157
      %v1159 = vld [vmem:[%s7] sm:$0x1]
      %v1161 = vperm.slane %v1159, 0
      %v1163 = vmul.f32 %v1158, %v1161
      %v1164 = vld [vmem:[%s8] sm:$0x1]
      %v1166 = vperm.slane %v1164, 0
      %v1168 = vadd.f32 %v1163, %v1166
      %v1169 = vpack.c.bf16 %v1168, %v1168
      %vm1170 = vcmask 257024
      %1171 = vst.msk [vmem:[%s378] sm:$0xf] %vm1170, %v1169
      %p1172 = scmp.lt.s32.totalorder %s20, 1
      %s1173 = scalar_select %p1172, %s20, 1
      %s1174 = smul.addr %s1173, 4
      %s1175 = scalar_lea.vmem %s9, %s1174
      // Predicated region
      $region57: #{transformer_decoder.10} parent=55 // pred_check
        %p1176 = pneg %p247
      $region58: #{transformer_decoder.10} parent=55 // pred_check_branch
        %1178 = sbr.rel (%p1176) target = $region60
      $region59: #{transformer_decoder.10} parent=55 // pred_region
        _
      $region60: #{transformer_decoder.10} parent=55 // pred_fallthru
        _
    $region56: #{transformer_decoder.10} parent=5 // pred_fallthru
      _
    %p1179 = scmp.le.s32.totalorder 2, %s15
    // Predicated region
    $region61: #{transformer_decoder.10} parent=5 // pred_check
      %p1180 = pneg %p1179
    $region62: #{transformer_decoder.10} parent=5 // pred_check_branch
      %1182 = sbr.rel (%p1180) target = $region64
    $region63: #{transformer_decoder.10} parent=5 // pred_region
      %s1183 = ssub.s32 %s15, 2
      // Predicated region
      $region65: #{transformer_decoder.10} parent=63 // pred_check
        %p1184 = pneg %p253
      $region66: #{transformer_decoder.10} parent=63 // pred_check_branch
        %1186 = sbr.rel (%p1184) target = $region68
      $region67: #{transformer_decoder.10} parent=63 // pred_region
        %p1187 = scmp.lt.s32.totalorder %s21, 1
        %s1188 = scalar_select %p1187, %s21, 1
        %s1189 = smul.addr %s1188, 4
        %s1190 = scalar_lea.vmem %s9, %s1189
      $region68: #{transformer_decoder.10} parent=63 // pred_fallthru
        _
    $region64: #{transformer_decoder.10} parent=5 // pred_fallthru
      _
  $region6: #{transformer_decoder.10} parent=0 // loop_footer
    %s19 = sadd.s32 1, %s15
  $region7: #{transformer_decoder.10} parent=0 // loop_footer_branch
    %14 = sbr.rel target = $region3
  $region8: #{transformer_decoder.10} parent=0 // loop_exit
    _

// kernel: transformer_decoder.9
$region0: #{transformer_decoder.9}
  #allocation0 [shape = 'u32[]', space=smem, size = 0x4, offset = 0x4, fixed_abs, tag = 'smem constant byte address 0x4 - core index']
  #allocation1 [shape = 'u32[72,128]{1,0:T(1,128)}', space=vmem, size = 0x9000, scoped, tag = 'internal scratch']
  %s0 = inlined_call_operand.vmem [shape: bf16[2,8,32], index: 0, kind: input, shape index: {}, may-alias: {0,1,2,3}]
  %s1 = inlined_call_operand.vmem [shape: bf16[2,8,32], index: 1, kind: input, shape index: {}, may-alias: {0,1,2,3}]
  %s2 = inlined_call_operand.vmem [shape: bf16[2,8,32], index: 2, kind: input, shape index: {}, may-alias: {0,1,2,3}]
  %s3 = inlined_call_operand.vmem [shape: bf16[2,8,32], index: 3, kind: input, shape index: {}, may-alias: {0,1,2,3}]
  %s4 = inlined_call_operand.vmem [shape: bf16[3,32,32], index: 4, kind: input, shape index: {}]
  %s5 = inlined_call_operand.vmem [shape: bf16[8,4,32], index: 5, kind: input, shape index: {}]
  %s6 = inlined_call_operand.vmem [shape: f32[1,32], index: 6, kind: input, shape index: {}]
  %s7 = inlined_call_operand.vmem [shape: f32[1,32], index: 7, kind: input, shape index: {}]
  %s8 = inlined_call_operand.vmem [shape: f32[1,32], index: 8, kind: input, shape index: {}]
  %s9 = inlined_call_operand.vmem [shape: f32[1,1,8,8], index: 9, kind: input, shape index: {}]
  %s10 = inlined_call_operand.vmem [shape: bf16[2,8,32], index: 10, kind: output, shape index: {}]
  %s11 = sld [smem:[#allocation0]]
  $region73: #{transformer_decoder.9} parent=0
    _
  %s13 = ssub.s32 1, %s11
  %s14 = scalar_select 0, %s13, %s11
  loop: start=0, step=1, limit=4
  $region2: #{transformer_decoder.9} parent=0 // loop_pre_header
    _
  $region3: #{transformer_decoder.9} parent=0 // loop_header
    %s16 = sphi 0, %s20
    %p17 = scmp.ge.s32.totalorder %s16, 4
    %s26 = sphi 0, %s28
    %s29 = sphi 0, %s26
    %s30 = sphi 0, %s29
    %s46 = sphi 0, %s30
    %s52 = sphi 0, %s54
    %s55 = sphi 0, %s52
    %s56 = sphi 0, %s55
    %s72 = sphi 0, %s56
    %s78 = sphi 0, %s80
    %s81 = sphi 0, %s78
    %s82 = sphi 0, %s81
    %s98 = sphi 0, %s82
    %s104 = sphi 0, %s106
    %s107 = sphi 0, %s104
    %s108 = sphi 0, %s107
    %s124 = sphi 0, %s108
    %s128 = sphi 0, %s128
    %s130 = sphi 0, %s128
    %s131 = sphi 0, %s130
    %s145 = sphi 0, %s131
    %s149 = sphi 0, %s149
    %s151 = sphi 0, %s149
    %s152 = sphi 0, %s151
    %s166 = sphi 0, %s152
    %s170 = sphi 0, %s170
    %s172 = sphi 0, %s170
    %s173 = sphi 0, %s172
    %s187 = sphi 0, %s173
    %s191 = sphi 0, %s191
    %s193 = sphi 0, %s191
    %s194 = sphi 0, %s193
    %s208 = sphi 0, %s194
    %s212 = sphi 0, %s212
    %s214 = sphi 0, %s212
    %s215 = sphi 0, %s214
    %s229 = sphi 0, %s215
    %s233 = sphi 0, %s233
    %s235 = sphi 0, %s233
    %s236 = sphi 0, %s235
    %s250 = sphi 0, %s236
    %s256 = sphi 0, %s258
    %s259 = sphi 0, %s256
    %s260 = sphi 0, %s259
    %s276 = sphi 0, %s260
  $region4: #{transformer_decoder.9} parent=0 // loop_header_branch
    %19 = sbr.rel (%p17) target = $region8
  $region5: #{transformer_decoder.9} parent=0 // loop_body
    %s21 = ssub.s32 %s16, 1
    %s22 = ssub.s32 %s16, 2
    %s23 = sadd.s32 %s16, 1
    %s24 = ssub.s32 %s16, %s23
    %p25 = scmp.eq.s32.totalorder %s24, 0
    %s27 = sadd.s32 %s26, 1
    %s28 = scalar_select %p25, %s26, %s27
    %p31 = pneg %p25
    %p32 = scmp.eq.s32.totalorder %s16, 1
    %p33 = por %p31, %p32
    %p34 = scmp.ne.s32.totalorder %s26, %s29
    %p35 = scmp.eq.s32.totalorder %s16, 0
    %p36 = por %p34, %p35
    %p37 = scmp.ne.s32.totalorder %s26, %s29
    %p38 = scmp.eq.s32.totalorder %s21, 1
    %p39 = por %p37, %p38
    %p40 = scmp.ne.s32.totalorder %s29, %s30
    %p41 = scmp.eq.s32.totalorder %s21, 0
    %p42 = por %p40, %p41
    %p43 = scmp.ne.s32.totalorder %s29, %s30
    %p44 = scmp.eq.s32.totalorder %s22, 1
    %p45 = por %p43, %p44
    %p47 = scmp.ne.s32.totalorder %s30, %s46
    %p48 = scmp.eq.s32.totalorder %s22, 0
    %p49 = por %p47, %p48
    %s50 = ssub.s32 %s16, %s23
    %p51 = scmp.eq.s32.totalorder %s50, 0
    %s53 = sadd.s32 %s52, 1
    %s54 = scalar_select %p51, %s52, %s53
    %p57 = pneg %p51
    %p58 = scmp.eq.s32.totalorder %s16, 1
    %p59 = por %p57, %p58
    %p60 = scmp.ne.s32.totalorder %s52, %s55
    %p61 = scmp.eq.s32.totalorder %s16, 0
    %p62 = por %p60, %p61
    %p63 = scmp.ne.s32.totalorder %s52, %s55
    %p64 = scmp.eq.s32.totalorder %s21, 1
    %p65 = por %p63, %p64
    %p66 = scmp.ne.s32.totalorder %s55, %s56
    %p67 = scmp.eq.s32.totalorder %s21, 0
    %p68 = por %p66, %p67
    %p69 = scmp.ne.s32.totalorder %s55, %s56
    %p70 = scmp.eq.s32.totalorder %s22, 1
    %p71 = por %p69, %p70
    %p73 = scmp.ne.s32.totalorder %s56, %s72
    %p74 = scmp.eq.s32.totalorder %s22, 0
    %p75 = por %p73, %p74
    %s76 = ssub.s32 %s16, %s23
    %p77 = scmp.eq.s32.totalorder %s76, 0
    %s79 = sadd.s32 %s78, 1
    %s80 = scalar_select %p77, %s78, %s79
    %p83 = pneg %p77
    %p84 = scmp.eq.s32.totalorder %s16, 1
    %p85 = por %p83, %p84
    %p86 = scmp.ne.s32.totalorder %s78, %s81
    %p87 = scmp.eq.s32.totalorder %s16, 0
    %p88 = por %p86, %p87
    %p89 = scmp.ne.s32.totalorder %s78, %s81
    %p90 = scmp.eq.s32.totalorder %s21, 1
    %p91 = por %p89, %p90
    %p92 = scmp.ne.s32.totalorder %s81, %s82
    %p93 = scmp.eq.s32.totalorder %s21, 0
    %p94 = por %p92, %p93
    %p95 = scmp.ne.s32.totalorder %s81, %s82
    %p96 = scmp.eq.s32.totalorder %s22, 1
    %p97 = por %p95, %p96
    %p99 = scmp.ne.s32.totalorder %s82, %s98
    %p100 = scmp.eq.s32.totalorder %s22, 0
    %p101 = por %p99, %p100
    %s102 = ssub.s32 %s16, %s23
    %p103 = scmp.eq.s32.totalorder %s102, 0
    %s105 = sadd.s32 %s104, 1
    %s106 = scalar_select %p103, %s104, %s105
    %p109 = pneg %p103
    %p110 = scmp.eq.s32.totalorder %s16, 1
    %p111 = por %p109, %p110
    %p112 = scmp.ne.s32.totalorder %s104, %s107
    %p113 = scmp.eq.s32.totalorder %s16, 0
    %p114 = por %p112, %p113
    %p115 = scmp.ne.s32.totalorder %s104, %s107
    %p116 = scmp.eq.s32.totalorder %s21, 1
    %p117 = por %p115, %p116
    %p118 = scmp.ne.s32.totalorder %s107, %s108
    %p119 = scmp.eq.s32.totalorder %s21, 0
    %p120 = por %p118, %p119
    %p121 = scmp.ne.s32.totalorder %s107, %s108
    %p122 = scmp.eq.s32.totalorder %s22, 1
    %p123 = por %p121, %p122
    %p125 = scmp.ne.s32.totalorder %s108, %s124
    %p126 = scmp.eq.s32.totalorder %s22, 0
    %p127 = por %p125, %p126
    %s129 = sadd.s32 %s128, 1
    %p132 = scmp.eq.s32.totalorder %s16, 1
    %p133 = scmp.ne.s32.totalorder %s128, %s130
    %p134 = scmp.eq.s32.totalorder %s16, 0
    %p135 = por %p133, %p134
    %p136 = scmp.ne.s32.totalorder %s128, %s130
    %p137 = scmp.eq.s32.totalorder %s21, 1
    %p138 = por %p136, %p137
    %p139 = scmp.ne.s32.totalorder %s130, %s131
    %p140 = scmp.eq.s32.totalorder %s21, 0
    %p141 = por %p139, %p140
    %p142 = scmp.ne.s32.totalorder %s130, %s131
    %p143 = scmp.eq.s32.totalorder %s22, 1
    %p144 = por %p142, %p143
    %p146 = scmp.ne.s32.totalorder %s131, %s145
    %p147 = scmp.eq.s32.totalorder %s22, 0
    %p148 = por %p146, %p147
    %s150 = sadd.s32 %s149, 1
    %p153 = scmp.eq.s32.totalorder %s16, 1
    %p154 = scmp.ne.s32.totalorder %s149, %s151
    %p155 = scmp.eq.s32.totalorder %s16, 0
    %p156 = por %p154, %p155
    %p157 = scmp.ne.s32.totalorder %s149, %s151
    %p158 = scmp.eq.s32.totalorder %s21, 1
    %p159 = por %p157, %p158
    %p160 = scmp.ne.s32.totalorder %s151, %s152
    %p161 = scmp.eq.s32.totalorder %s21, 0
    %p162 = por %p160, %p161
    %p163 = scmp.ne.s32.totalorder %s151, %s152
    %p164 = scmp.eq.s32.totalorder %s22, 1
    %p165 = por %p163, %p164
    %p167 = scmp.ne.s32.totalorder %s152, %s166
    %p168 = scmp.eq.s32.totalorder %s22, 0
    %p169 = por %p167, %p168
    %s171 = sadd.s32 %s170, 1
    %p174 = scmp.eq.s32.totalorder %s16, 1
    %p175 = scmp.ne.s32.totalorder %s170, %s172
    %p176 = scmp.eq.s32.totalorder %s16, 0
    %p177 = por %p175, %p176
    %p178 = scmp.ne.s32.totalorder %s170, %s172
    %p179 = scmp.eq.s32.totalorder %s21, 1
    %p180 = por %p178, %p179
    %p181 = scmp.ne.s32.totalorder %s172, %s173
    %p182 = scmp.eq.s32.totalorder %s21, 0
    %p183 = por %p181, %p182
    %p184 = scmp.ne.s32.totalorder %s172, %s173
    %p185 = scmp.eq.s32.totalorder %s22, 1
    %p186 = por %p184, %p185
    %p188 = scmp.ne.s32.totalorder %s173, %s187
    %p189 = scmp.eq.s32.totalorder %s22, 0
    %p190 = por %p188, %p189
    %s192 = sadd.s32 %s191, 1
    %p195 = scmp.eq.s32.totalorder %s16, 1
    %p196 = scmp.ne.s32.totalorder %s191, %s193
    %p197 = scmp.eq.s32.totalorder %s16, 0
    %p198 = por %p196, %p197
    %p199 = scmp.ne.s32.totalorder %s191, %s193
    %p200 = scmp.eq.s32.totalorder %s21, 1
    %p201 = por %p199, %p200
    %p202 = scmp.ne.s32.totalorder %s193, %s194
    %p203 = scmp.eq.s32.totalorder %s21, 0
    %p204 = por %p202, %p203
    %p205 = scmp.ne.s32.totalorder %s193, %s194
    %p206 = scmp.eq.s32.totalorder %s22, 1
    %p207 = por %p205, %p206
    %p209 = scmp.ne.s32.totalorder %s194, %s208
    %p210 = scmp.eq.s32.totalorder %s22, 0
    %p211 = por %p209, %p210
    %s213 = sadd.s32 %s212, 1
    %p216 = scmp.eq.s32.totalorder %s16, 1
    %p217 = scmp.ne.s32.totalorder %s212, %s214
    %p218 = scmp.eq.s32.totalorder %s16, 0
    %p219 = por %p217, %p218
    %p220 = scmp.ne.s32.totalorder %s212, %s214
    %p221 = scmp.eq.s32.totalorder %s21, 1
    %p222 = por %p220, %p221
    %p223 = scmp.ne.s32.totalorder %s214, %s215
    %p224 = scmp.eq.s32.totalorder %s21, 0
    %p225 = por %p223, %p224
    %p226 = scmp.ne.s32.totalorder %s214, %s215
    %p227 = scmp.eq.s32.totalorder %s22, 1
    %p228 = por %p226, %p227
    %p230 = scmp.ne.s32.totalorder %s215, %s229
    %p231 = scmp.eq.s32.totalorder %s22, 0
    %p232 = por %p230, %p231
    %s234 = sadd.s32 %s233, 1
    %p237 = scmp.eq.s32.totalorder %s16, 1
    %p238 = scmp.ne.s32.totalorder %s233, %s235
    %p239 = scmp.eq.s32.totalorder %s16, 0
    %p240 = por %p238, %p239
    %p241 = scmp.ne.s32.totalorder %s233, %s235
    %p242 = scmp.eq.s32.totalorder %s21, 1
    %p243 = por %p241, %p242
    %p244 = scmp.ne.s32.totalorder %s235, %s236
    %p245 = scmp.eq.s32.totalorder %s21, 0
    %p246 = por %p244, %p245
    %p247 = scmp.ne.s32.totalorder %s235, %s236
    %p248 = scmp.eq.s32.totalorder %s22, 1
    %p249 = por %p247, %p248
    %p251 = scmp.ne.s32.totalorder %s236, %s250
    %p252 = scmp.eq.s32.totalorder %s22, 0
    %p253 = por %p251, %p252
    %s254 = ssub.s32 %s16, %s23
    %p255 = scmp.eq.s32.totalorder %s254, 0
    %s257 = sadd.s32 %s256, 1
    %s258 = scalar_select %p255, %s256, %s257
    %p261 = pneg %p255
    %p262 = scmp.eq.s32.totalorder %s16, 1
    %p263 = por %p261, %p262
    %p264 = scmp.ne.s32.totalorder %s256, %s259
    %p265 = scmp.eq.s32.totalorder %s16, 0
    %p266 = por %p264, %p265
    %p267 = scmp.ne.s32.totalorder %s256, %s259
    %p268 = scmp.eq.s32.totalorder %s21, 1
    %p269 = por %p267, %p268
    %p270 = scmp.ne.s32.totalorder %s259, %s260
    %p271 = scmp.eq.s32.totalorder %s21, 0
    %p272 = por %p270, %p271
    %p273 = scmp.ne.s32.totalorder %s259, %s260
    %p274 = scmp.eq.s32.totalorder %s22, 1
    %p275 = por %p273, %p274
    %p277 = scmp.ne.s32.totalorder %s260, %s276
    %p278 = scmp.eq.s32.totalorder %s22, 0
    %p279 = por %p277, %p278
    %p280 = scmp.le.s32.totalorder 1, %s16
    %p281 = scmp.lt.s32.totalorder %s16, 3
    %p282 = pnand %p280, %p281
    %p283 = pneg %p282
    // Predicated region
    $region9: #{transformer_decoder.9} parent=5 // pred_check
      _
    $region10: #{transformer_decoder.9} parent=5 // pred_check_branch
      %285 = sbr.rel (%p282) target = $region12
    $region11: #{transformer_decoder.9} parent=5 // pred_region
      %s286 = ssub.s32 %s16, 1
      // Predicated region
      $region13: #{transformer_decoder.9} parent=11 // pred_check
        %p287 = pneg %p141
      $region14: #{transformer_decoder.9} parent=11 // pred_check_branch
        %289 = sbr.rel (%p287) target = $region16
      $region15: #{transformer_decoder.9} parent=11 // pred_region
        _
      $region16: #{transformer_decoder.9} parent=11 // pred_fallthru
        _
      // Predicated region
      $region17: #{transformer_decoder.9} parent=11 // pred_check
        %p290 = pneg %p162
      $region18: #{transformer_decoder.9} parent=11 // pred_check_branch
        %292 = sbr.rel (%p290) target = $region20
      $region19: #{transformer_decoder.9} parent=11 // pred_region
        _
      $region20: #{transformer_decoder.9} parent=11 // pred_fallthru
        _
      // Predicated region
      $region21: #{transformer_decoder.9} parent=11 // pred_check
        %p293 = pneg %p183
      $region22: #{transformer_decoder.9} parent=11 // pred_check_branch
        %295 = sbr.rel (%p293) target = $region24
      $region23: #{transformer_decoder.9} parent=11 // pred_region
        _
      $region24: #{transformer_decoder.9} parent=11 // pred_fallthru
        _
      // Predicated region
      $region25: #{transformer_decoder.9} parent=11 // pred_check
        %p296 = pneg %p204
      $region26: #{transformer_decoder.9} parent=11 // pred_check_branch
        %298 = sbr.rel (%p296) target = $region28
      $region27: #{transformer_decoder.9} parent=11 // pred_region
        _
      $region28: #{transformer_decoder.9} parent=11 // pred_fallthru
        _
      // Predicated region
      $region29: #{transformer_decoder.9} parent=11 // pred_check
        %p299 = pneg %p225
      $region30: #{transformer_decoder.9} parent=11 // pred_check_branch
        %301 = sbr.rel (%p299) target = $region32
      $region31: #{transformer_decoder.9} parent=11 // pred_region
        _
      $region32: #{transformer_decoder.9} parent=11 // pred_fallthru
        _
      // Predicated region
      $region33: #{transformer_decoder.9} parent=11 // pred_check
        %p302 = pneg %p246
      $region34: #{transformer_decoder.9} parent=11 // pred_check_branch
        %304 = sbr.rel (%p302) target = $region36
      $region35: #{transformer_decoder.9} parent=11 // pred_region
        _
      $region36: #{transformer_decoder.9} parent=11 // pred_fallthru
        _
    $region12: #{transformer_decoder.9} parent=5 // pred_fallthru
      _
    %p305 = scmp.lt.s32.totalorder %s16, 2
    // Predicated region
    $region37: #{transformer_decoder.9} parent=5 // pred_check
      %p306 = pneg %p305
    $region38: #{transformer_decoder.9} parent=5 // pred_check_branch
      %308 = sbr.rel (%p306) target = $region40
    $region39: #{transformer_decoder.9} parent=5 // pred_region
      // Predicated region
      $region41: #{transformer_decoder.9} parent=39 // pred_check
        %p309 = pneg %p36
      $region42: #{transformer_decoder.9} parent=39 // pred_check_branch
        %311 = sbr.rel (%p309) target = $region44
      $region43: #{transformer_decoder.9} parent=39 // pred_region
        %p312 = scmp.lt.s32.totalorder %s16, 1
        %s313 = scalar_select %p312, %s16, 1
        %s314 = smul.addr %s313, 4
        %s315 = scalar_lea.vmem %s0, %s314
      $region44: #{transformer_decoder.9} parent=39 // pred_fallthru
        _
      // Predicated region
      $region45: #{transformer_decoder.9} parent=39 // pred_check
        %p316 = pneg %p62
      $region46: #{transformer_decoder.9} parent=39 // pred_check_branch
        %318 = sbr.rel (%p316) target = $region48
      $region47: #{transformer_decoder.9} parent=39 // pred_region
        %p319 = scmp.lt.s32.totalorder %s16, 1
        %s320 = scalar_select %p319, %s16, 1
        %s321 = smul.addr %s320, 4
        %s322 = scalar_lea.vmem %s1, %s321
      $region48: #{transformer_decoder.9} parent=39 // pred_fallthru
        _
      // Predicated region
      $region49: #{transformer_decoder.9} parent=39 // pred_check
        %p323 = pneg %p88
      $region50: #{transformer_decoder.9} parent=39 // pred_check_branch
        %325 = sbr.rel (%p323) target = $region52
      $region51: #{transformer_decoder.9} parent=39 // pred_region
        %p326 = scmp.lt.s32.totalorder %s16, 1
        %s327 = scalar_select %p326, %s16, 1
        %s328 = smul.addr %s327, 4
        %s329 = scalar_lea.vmem %s2, %s328
      $region52: #{transformer_decoder.9} parent=39 // pred_fallthru
        _
      // Predicated region
      $region53: #{transformer_decoder.9} parent=39 // pred_check
        %p330 = pneg %p114
      $region54: #{transformer_decoder.9} parent=39 // pred_check_branch
        %332 = sbr.rel (%p330) target = $region56
      $region55: #{transformer_decoder.9} parent=39 // pred_region
        %p333 = scmp.lt.s32.totalorder %s16, 1
        %s334 = scalar_select %p333, %s16, 1
        %s335 = smul.addr %s334, 4
        %s336 = scalar_lea.vmem %s3, %s335
      $region56: #{transformer_decoder.9} parent=39 // pred_fallthru
        _
    $region40: #{transformer_decoder.9} parent=5 // pred_fallthru
      _
    %p337 = scmp.le.s32.totalorder 1, %s16
    %p338 = scmp.lt.s32.totalorder %s16, 3
    %p339 = pnand %p337, %p338
    %p340 = pneg %p339
    // Predicated region
    $region57: #{transformer_decoder.9} parent=5 // pred_check
      _
    $region58: #{transformer_decoder.9} parent=5 // pred_check_branch
      %342 = sbr.rel (%p339) target = $region60
    $region59: #{transformer_decoder.9} parent=5 // pred_region
      %s343 = ssub.s32 %s16, 1
      %p344 = scmp.lt.s32.totalorder %s21, 1
      %s345 = scalar_select %p344, %s21, 1
      %s346 = smul.addr %s345, 4
      %s347 = scalar_lea.vmem %s0, %s346
      %p348 = pneg %p42
      %p349 = pneg %p39
      %p350 = scmp.lt.s32.totalorder %s21, 1
      %s351 = scalar_select %p350, %s21, 1
      %s352 = smul.addr %s351, 4
      %s353 = scalar_lea.vmem %s1, %s352
      %p354 = pneg %p68
      %p355 = pneg %p65
      %p356 = scmp.lt.s32.totalorder %s21, 1
      %s357 = scalar_select %p356, %s21, 1
      %s358 = smul.addr %s357, 4
      %s359 = scalar_lea.vmem %s2, %s358
      %p360 = pneg %p94
      %p361 = pneg %p91
      %p362 = scmp.lt.s32.totalorder %s21, 1
      %s363 = scalar_select %p362, %s21, 1
      %s364 = smul.addr %s363, 4
      %s365 = scalar_lea.vmem %s3, %s364
      %p366 = pneg %p120
      %p367 = pneg %p117
      %p368 = pneg %p141
      %p369 = pneg %p138
      %p370 = pneg %p162
      %p371 = pneg %p159
      %p372 = pneg %p183
      %p373 = pneg %p180
      %p374 = pneg %p204
      %p375 = pneg %p201
      %p376 = pneg %p225
      %p377 = pneg %p222
      %p378 = pneg %p246
      %p379 = pneg %p243
      %p380 = pneg %p272
      %p381 = pneg %p269
      %p382 = scmp.lt.s32.totalorder %s21, 1
      %s383 = scalar_select %p382, %s21, 1
      %s384 = smul.addr %s383, 4
      %s385 = scalar_lea.vmem %s10, %s384
      %p386 = scmp.lt.s32.totalorder %s21, 1
      %s387 = scalar_select %p386, %s21, 1
      %s388 = smul.addr %s387, 4
      %s389 = scalar_lea.vmem %s0, %s388
      %p390 = scmp.lt.s32.totalorder %s21, 1
      %s391 = scalar_select %p390, %s21, 1
      %s392 = smul.addr %s391, 4
      %s393 = scalar_lea.vmem %s1, %s392
      %p394 = scmp.lt.s32.totalorder %s21, 1
      %s395 = scalar_select %p394, %s21, 1
      %s396 = smul.addr %s395, 4
      %s397 = scalar_lea.vmem %s2, %s396
      %p398 = scmp.lt.s32.totalorder %s21, 1
      %s399 = scalar_select %p398, %s21, 1
      %s400 = smul.addr %s399, 4
      %s401 = scalar_lea.vmem %s3, %s400
      %p402 = scmp.lt.s32.totalorder %s21, 1
      %s403 = scalar_select %p402, %s21, 1
      %s404 = smul.addr %s403, 4
      %s405 = scalar_lea.vmem %s10, %s404
      %v407 = vld [vmem:[%s389] sm:$0xf]
      %v408 = vld [vmem:[%s393] sm:$0xf]
      %v409 = vld [vmem:[%s397] sm:$0xf]
      %v410 = vld [vmem:[%s4] sm:$0xf]
      %v411 = vld [vmem:[%s4 + $0x4] sm:$0xf]
      %v412 = vld [vmem:[%s4 + $0x8] sm:$0xf]
      %v413 = vld [vmem:[%s4 + $0xc] sm:$0xf]
      %v418 = vunpack.c.l.b16 %v410
      %v419 = vunpack.c.l.b16 %v411
      %v420 = vunpack.c.l.b16 %v412
      %v421 = vunpack.c.l.b16 %v413
      %v422 = vpack.c.b16 %v419, %v418
      %v423 = vpack.c.b16 %v421, %v420
      %vm426 = vcmask 261120
      %v428 = vsel %vm426, %v407, 0
      %430 = vmatpush.bf16.msra.mxu0 0
      %431 = vmatpush.bf16.msra.mxu0 0
      %432 = vmatpush.bf16.msra.mxu0 0
      %433 = vmatpush.bf16.msra.mxu0 0
      %434 = vmatpush.bf16.msra.mxu0 0
      %435 = vmatpush.bf16.msra.mxu0 0
      %436 = vmatpush.bf16.msra.mxu0 %v423
      %437 = vmatpush.bf16.msra.mxu0 %v422
      %438 = vmatmul.bf16.gmra.mxu0 %v428
      %v439 = vpop.f32.mrf.mxu0
      %v440 = vadd.f32 0.0, %v439
      %v441 = vpop.f32.mrf.mxu0
      %442 = vdwg.mxu0
      %v443 = vmul.f32 %v440, 0.5
      %v444 = vpack.c.bf16 %v443, %v443
      %s445 = scalar_lea.vmem %s4, 16
      %v446 = vld [vmem:[%s445] sm:$0xf]
      %v447 = vld [vmem:[%s445 + $0x4] sm:$0xf]
      %v448 = vld [vmem:[%s445 + $0x8] sm:$0xf]
      %v449 = vld [vmem:[%s445 + $0xc] sm:$0xf]
      %v454 = vunpack.c.l.b16 %v446
      %v455 = vunpack.c.l.b16 %v447
      %v456 = vunpack.c.l.b16 %v448
      %v457 = vunpack.c.l.b16 %v449
      %v458 = vpack.c.b16 %v455, %v454
      %v459 = vpack.c.b16 %v457, %v456
      %v463 = vsel %vm426, %v408, 0
      %465 = vmatpush.bf16.msra.mxu0 0
      %466 = vmatpush.bf16.msra.mxu0 0
      %467 = vmatpush.bf16.msra.mxu0 0
      %468 = vmatpush.bf16.msra.mxu0 0
      %469 = vmatpush.bf16.msra.mxu0 0
      %470 = vmatpush.bf16.msra.mxu0 0
      %471 = vmatpush.bf16.msra.mxu0 %v459
      %472 = vmatpush.bf16.msra.mxu0 %v458
      %473 = vmatmul.bf16.gmra.mxu0 %v463
      %v474 = vpop.f32.mrf.mxu0
      %v475 = vadd.f32 0.0, %v474
      %v476 = vpop.f32.mrf.mxu0
      %477 = vdwg.mxu0
      %v478 = vpack.c.bf16 %v475, %v475
      %s479 = scalar_lea.vmem %s4, 32
      %v480 = vld [vmem:[%s479] sm:$0xf]
      %v481 = vld [vmem:[%s479 + $0x4] sm:$0xf]
      %v482 = vld [vmem:[%s479 + $0x8] sm:$0xf]
      %v483 = vld [vmem:[%s479 + $0xc] sm:$0xf]
      %v488 = vunpack.c.l.b16 %v480
      %v489 = vunpack.c.l.b16 %v481
      %v490 = vunpack.c.l.b16 %v482
      %v491 = vunpack.c.l.b16 %v483
      %v492 = vpack.c.b16 %v489, %v488
      %v493 = vpack.c.b16 %v491, %v490
      %v497 = vsel %vm426, %v409, 0
      %499 = vmatpush.bf16.msra.mxu0 0
      %500 = vmatpush.bf16.msra.mxu0 0
      %501 = vmatpush.bf16.msra.mxu0 0
      %502 = vmatpush.bf16.msra.mxu0 0
      %503 = vmatpush.bf16.msra.mxu0 0
      %504 = vmatpush.bf16.msra.mxu0 0
      %505 = vmatpush.bf16.msra.mxu0 %v493
      %506 = vmatpush.bf16.msra.mxu0 %v492
      %507 = vmatmul.bf16.gmra.mxu0 %v497
      %v508 = vpop.f32.mrf.mxu0
      %v509 = vadd.f32 0.0, %v508
      %v510 = vpop.f32.mrf.mxu0
      %511 = vdwg.mxu0
      %v512 = vpack.c.bf16 %v509, %v509
      %v513 = vld [vmem:[%s9] sm:$0xff]
      %vm514 = vcmask 31744
      %v516 = vsel %vm514, %v444, 0
      %v519 = vsel %vm514, %v478, 0
      %521 = vmatpush.bf16.xpose.msra.mxu0 0
      %522 = vmatpush.bf16.xpose.msra.mxu0 0
      %523 = vmatpush.bf16.xpose.msra.mxu0 0
      %524 = vmatpush.bf16.xpose.msra.mxu0 0
      %525 = vmatpush.bf16.xpose.msra.mxu0 0
      %526 = vmatpush.bf16.xpose.msra.mxu0 0
      %527 = vmatpush.bf16.xpose.msra.mxu0 0
      %528 = vmatpush.bf16.xpose.msra.mxu0 %v519
      %529 = vmatmul.bf16.gmra.mxu0 %v516
      %v530 = vpop.f32.mrf.mxu0
      %v531 = vadd.f32 0.0, %v530
      %v532 = vpop.f32.mrf.mxu0
      %533 = vdwg.mxu0
      %vm534 = vcmp.eq.f32.partialorder %v513, 0.0
      %v535 = vsel %vm534, -5e+19, %v531
      %vm536 = vcmask 64512
      %v537 = vsel %vm536, %v535, -inf
      %538 = vmax.xlane.f32.xlu0 %v537
      %v539 = vpop.xlane.xlu0 %538
      %v540 = vsub.f32 %v535, %v539
      %v541 = vmul.f32 %v540, 1.442695
      %v542 = vpow.pop %v541
      %v543 = vsel %vm536, %v542, 0.0
      %544 = vadd.xlane.f32.xlu0 %v543
      %v545 = vpop.xlane.xlu0 %544
      %v546 = vrcp.pop %v545
      %v547 = vmul.f32 %v542, %v546
      %v548 = vpack.c.bf16 %v547, %v547
      %v550 = vsel %vm536, %v548, 0
      %vm552 = vcmask 1043456
      %v554 = vsel %vm552, %v512, 0
      %556 = vmatpush.bf16.msra.mxu0 0
      %557 = vmatpush.bf16.msra.mxu0 0
      %558 = vmatpush.bf16.msra.mxu0 0
      %559 = vmatpush.bf16.msra.mxu0 0
      %560 = vmatpush.bf16.msra.mxu0 0
      %561 = vmatpush.bf16.msra.mxu0 0
      %562 = vmatpush.bf16.msra.mxu0 0
      %563 = vmatpush.bf16.msra.mxu0 %v554
      %564 = vmatmul.bf16.gmra.mxu0 %v550
      %v565 = vpop.f32.mrf.mxu0
      %v566 = vadd.f32 0.0, %v565
      %v567 = vpop.f32.mrf.mxu0
      %568 = vdwg.mxu0
      %v569 = vpack.c.bf16 %v566, %v566
      %v570 = vld [vmem:[%s5] sm:$0x3]
      %v572 = vunpack.c.l.b16 %v444
      %v573 = vpack.c.b16 %v572, %v572
      %574 = vrot.lane.b32.xlu0 %v573, 124
      %v575 = vpop.permute.xlu0 %574
      %v577 = vunpack.c.l.b16 %v478
      %v578 = vpack.c.b16 %v577, %v577
      %579 = vrot.lane.b32.xlu0 %v578, 124
      %v580 = vpop.permute.xlu0 %579
      %v582 = vsel %vm514, %v575, 0
      %v585 = vsel %vm514, %v580, 0
      %587 = vmatpush.bf16.xpose.msra.mxu0 0
      %588 = vmatpush.bf16.xpose.msra.mxu0 0
      %589 = vmatpush.bf16.xpose.msra.mxu0 0
      %590 = vmatpush.bf16.xpose.msra.mxu0 0
      %591 = vmatpush.bf16.xpose.msra.mxu0 0
      %592 = vmatpush.bf16.xpose.msra.mxu0 0
      %593 = vmatpush.bf16.xpose.msra.mxu0 0
      %594 = vmatpush.bf16.xpose.msra.mxu0 %v585
      %595 = vmatmul.bf16.gmra.mxu0 %v582
      %v596 = vpop.f32.mrf.mxu0
      %v597 = vadd.f32 0.0, %v596
      %v598 = vpop.f32.mrf.mxu0
      %599 = vdwg.mxu0
      %v600 = vsel %vm534, -5e+19, %v597
      %v601 = vsel %vm536, %v600, -inf
      %602 = vmax.xlane.f32.xlu0 %v601
      %v603 = vpop.xlane.xlu0 %602
      %v604 = vsub.f32 %v600, %v603
      %v605 = vmul.f32 %v604, 1.442695
      %v606 = vpow.pop %v605
      %v607 = vsel %vm536, %v606, 0.0
      %608 = vadd.xlane.f32.xlu0 %v607
      %v609 = vpop.xlane.xlu0 %608
      %v610 = vrcp.pop %v609
      %v611 = vmul.f32 %v606, %v610
      %v612 = vpack.c.bf16 %v611, %v611
      %v614 = vunpack.c.l.b16 %v512
      %v615 = vpack.c.b16 %v614, %v614
      %616 = vrot.lane.b32.xlu0 %v615, 124
      %v617 = vpop.permute.xlu0 %616
      %v619 = vsel %vm536, %v612, 0
      %v622 = vsel %vm552, %v617, 0
      %624 = vmatpush.bf16.msra.mxu0 0
      %625 = vmatpush.bf16.msra.mxu0 0
      %626 = vmatpush.bf16.msra.mxu0 0
      %627 = vmatpush.bf16.msra.mxu0 0
      %628 = vmatpush.bf16.msra.mxu0 0
      %629 = vmatpush.bf16.msra.mxu0 0
      %630 = vmatpush.bf16.msra.mxu0 0
      %631 = vmatpush.bf16.msra.mxu0 %v622
      %632 = vmatmul.bf16.gmra.mxu0 %v619
      %v633 = vpop.f32.mrf.mxu0
      %v634 = vadd.f32 0.0, %v633
      %v635 = vpop.f32.mrf.mxu0
      %636 = vdwg.mxu0
      %v637 = vpack.c.bf16 %v634, %v634
      %s638 = scalar_lea.vmem %s5, 2
      %v639 = vld [vmem:[%s638] sm:$0x3]
      %v641 = vsel %vm514, %v637, 0
      %vm643 = vcmask 1041408
      %v645 = vsel %vm643, %v639, 0
      %647 = vmatpush.bf16.msra.mxu0 0
      %648 = vmatpush.bf16.msra.mxu0 0
      %649 = vmatpush.bf16.msra.mxu0 0
      %650 = vmatpush.bf16.msra.mxu0 0
      %651 = vmatpush.bf16.msra.mxu0 0
      %652 = vmatpush.bf16.msra.mxu0 0
      %653 = vmatpush.bf16.msra.mxu0 0
      %654 = vmatpush.bf16.msra.mxu0 %v645
      %655 = vmatmul.bf16.gmra.mxu0 %v641
      %v656 = vpop.f32.mrf.mxu0
      %v657 = vadd.f32 0.0, %v656
      %v658 = vpop.f32.mrf.mxu0
      %659 = vdwg.mxu0
      %v661 = vsel %vm514, %v569, 0
      %v664 = vsel %vm643, %v570, 0
      %666 = vmatpush.bf16.msra.mxu0 0
      %667 = vmatpush.bf16.msra.mxu0 0
      %668 = vmatpush.bf16.msra.mxu0 0
      %669 = vmatpush.bf16.msra.mxu0 0
      %670 = vmatpush.bf16.msra.mxu0 0
      %671 = vmatpush.bf16.msra.mxu0 0
      %672 = vmatpush.bf16.msra.mxu0 0
      %673 = vmatpush.bf16.msra.mxu0 %v664
      %674 = vmatmul.bf16.gmra.mxu0 %v661
      %v675 = vpop.f32.mrf.mxu0
      %v676 = vadd.f32 %v657, %v675
      %v677 = vpop.f32.mrf.mxu0
      %678 = vdwg.mxu0
      %679 = vrot.lane.b32.xlu0 %v573, 120
      %v680 = vpop.permute.xlu0 %679
      %681 = vrot.lane.b32.xlu0 %v578, 120
      %v682 = vpop.permute.xlu0 %681
      %v684 = vsel %vm514, %v680, 0
      %v687 = vsel %vm514, %v682, 0
      %689 = vmatpush.bf16.xpose.msra.mxu0 0
      %690 = vmatpush.bf16.xpose.msra.mxu0 0
      %691 = vmatpush.bf16.xpose.msra.mxu0 0
      %692 = vmatpush.bf16.xpose.msra.mxu0 0
      %693 = vmatpush.bf16.xpose.msra.mxu0 0
      %694 = vmatpush.bf16.xpose.msra.mxu0 0
      %695 = vmatpush.bf16.xpose.msra.mxu0 0
      %696 = vmatpush.bf16.xpose.msra.mxu0 %v687
      %697 = vmatmul.bf16.gmra.mxu0 %v684
      %v698 = vpop.f32.mrf.mxu0
      %v699 = vadd.f32 0.0, %v698
      %v700 = vpop.f32.mrf.mxu0
      %701 = vdwg.mxu0
      %v702 = vsel %vm534, -5e+19, %v699
      %v703 = vsel %vm536, %v702, -inf
      %704 = vmax.xlane.f32.xlu0 %v703
      %v705 = vpop.xlane.xlu0 %704
      %v706 = vsub.f32 %v702, %v705
      %v707 = vmul.f32 %v706, 1.442695
      %v708 = vpow.pop %v707
      %v709 = vsel %vm536, %v708, 0.0
      %710 = vadd.xlane.f32.xlu0 %v709
      %v711 = vpop.xlane.xlu0 %710
      %v712 = vrcp.pop %v711
      %v713 = vmul.f32 %v708, %v712
      %v714 = vpack.c.bf16 %v713, %v713
      %715 = vrot.lane.b32.xlu0 %v615, 120
      %v716 = vpop.permute.xlu0 %715
      %v718 = vsel %vm536, %v714, 0
      %v721 = vsel %vm552, %v716, 0
      %723 = vmatpush.bf16.msra.mxu0 0
      %724 = vmatpush.bf16.msra.mxu0 0
      %725 = vmatpush.bf16.msra.mxu0 0
      %726 = vmatpush.bf16.msra.mxu0 0
      %727 = vmatpush.bf16.msra.mxu0 0
      %728 = vmatpush.bf16.msra.mxu0 0
      %729 = vmatpush.bf16.msra.mxu0 0
      %730 = vmatpush.bf16.msra.mxu0 %v721
      %731 = vmatmul.bf16.gmra.mxu0 %v718
      %v732 = vpop.f32.mrf.mxu0
      %v733 = vadd.f32 0.0, %v732
      %v734 = vpop.f32.mrf.mxu0
      %735 = vdwg.mxu0
      %v736 = vpack.c.bf16 %v733, %v733
      %s737 = scalar_lea.vmem %s5, 4
      %v738 = vld [vmem:[%s737] sm:$0x3]
      %v740 = vsel %vm514, %v736, 0
      %v743 = vsel %vm643, %v738, 0
      %745 = vmatpush.bf16.msra.mxu0 0
      %746 = vmatpush.bf16.msra.mxu0 0
      %747 = vmatpush.bf16.msra.mxu0 0
      %748 = vmatpush.bf16.msra.mxu0 0
      %749 = vmatpush.bf16.msra.mxu0 0
      %750 = vmatpush.bf16.msra.mxu0 0
      %751 = vmatpush.bf16.msra.mxu0 0
      %752 = vmatpush.bf16.msra.mxu0 %v743
      %753 = vmatmul.bf16.gmra.mxu0 %v740
      %v754 = vpop.f32.mrf.mxu0
      %v755 = vadd.f32 0.0, %v754
      %v756 = vpop.f32.mrf.mxu0
      %757 = vdwg.mxu0
      %v758 = vadd.f32 %v676, %v755
      %759 = vrot.lane.b32.xlu0 %v573, 116
      %v760 = vpop.permute.xlu0 %759
      %761 = vrot.lane.b32.xlu0 %v578, 116
      %v762 = vpop.permute.xlu0 %761
      %v764 = vsel %vm514, %v760, 0
      %v767 = vsel %vm514, %v762, 0
      %769 = vmatpush.bf16.xpose.msra.mxu0 0
      %770 = vmatpush.bf16.xpose.msra.mxu0 0
      %771 = vmatpush.bf16.xpose.msra.mxu0 0
      %772 = vmatpush.bf16.xpose.msra.mxu0 0
      %773 = vmatpush.bf16.xpose.msra.mxu0 0
      %774 = vmatpush.bf16.xpose.msra.mxu0 0
      %775 = vmatpush.bf16.xpose.msra.mxu0 0
      %776 = vmatpush.bf16.xpose.msra.mxu0 %v767
      %777 = vmatmul.bf16.gmra.mxu0 %v764
      %v778 = vpop.f32.mrf.mxu0
      %v779 = vadd.f32 0.0, %v778
      %v780 = vpop.f32.mrf.mxu0
      %781 = vdwg.mxu0
      %v782 = vsel %vm534, -5e+19, %v779
      %v783 = vsel %vm536, %v782, -inf
      %784 = vmax.xlane.f32.xlu0 %v783
      %v785 = vpop.xlane.xlu0 %784
      %v786 = vsub.f32 %v782, %v785
      %v787 = vmul.f32 %v786, 1.442695
      %v788 = vpow.pop %v787
      %v789 = vsel %vm536, %v788, 0.0
      %790 = vadd.xlane.f32.xlu0 %v789
      %v791 = vpop.xlane.xlu0 %790
      %v792 = vrcp.pop %v791
      %v793 = vmul.f32 %v788, %v792
      %v794 = vpack.c.bf16 %v793, %v793
      %795 = vrot.lane.b32.xlu0 %v615, 116
      %v796 = vpop.permute.xlu0 %795
      %v798 = vsel %vm536, %v794, 0
      %v801 = vsel %vm552, %v796, 0
      %803 = vmatpush.bf16.msra.mxu0 0
      %804 = vmatpush.bf16.msra.mxu0 0
      %805 = vmatpush.bf16.msra.mxu0 0
      %806 = vmatpush.bf16.msra.mxu0 0
      %807 = vmatpush.bf16.msra.mxu0 0
      %808 = vmatpush.bf16.msra.mxu0 0
      %809 = vmatpush.bf16.msra.mxu0 0
      %810 = vmatpush.bf16.msra.mxu0 %v801
      %811 = vmatmul.bf16.gmra.mxu0 %v798
      %v812 = vpop.f32.mrf.mxu0
      %v813 = vadd.f32 0.0, %v812
      %v814 = vpop.f32.mrf.mxu0
      %815 = vdwg.mxu0
      %v816 = vpack.c.bf16 %v813, %v813
      %s817 = scalar_lea.vmem %s5, 6
      %v818 = vld [vmem:[%s817] sm:$0x3]
      %v820 = vsel %vm514, %v816, 0
      %v823 = vsel %vm643, %v818, 0
      %825 = vmatpush.bf16.msra.mxu0 0
      %826 = vmatpush.bf16.msra.mxu0 0
      %827 = vmatpush.bf16.msra.mxu0 0
      %828 = vmatpush.bf16.msra.mxu0 0
      %829 = vmatpush.bf16.msra.mxu0 0
      %830 = vmatpush.bf16.msra.mxu0 0
      %831 = vmatpush.bf16.msra.mxu0 0
      %832 = vmatpush.bf16.msra.mxu0 %v823
      %833 = vmatmul.bf16.gmra.mxu0 %v820
      %v834 = vpop.f32.mrf.mxu0
      %v835 = vadd.f32 0.0, %v834
      %v836 = vpop.f32.mrf.mxu0
      %837 = vdwg.mxu0
      %v838 = vadd.f32 %v758, %v835
      %839 = vrot.lane.b32.xlu0 %v573, 112
      %v840 = vpop.permute.xlu0 %839
      %841 = vrot.lane.b32.xlu0 %v578, 112
      %v842 = vpop.permute.xlu0 %841
      %v844 = vsel %vm514, %v840, 0
      %v847 = vsel %vm514, %v842, 0
      %849 = vmatpush.bf16.xpose.msra.mxu0 0
      %850 = vmatpush.bf16.xpose.msra.mxu0 0
      %851 = vmatpush.bf16.xpose.msra.mxu0 0
      %852 = vmatpush.bf16.xpose.msra.mxu0 0
      %853 = vmatpush.bf16.xpose.msra.mxu0 0
      %854 = vmatpush.bf16.xpose.msra.mxu0 0
      %855 = vmatpush.bf16.xpose.msra.mxu0 0
      %856 = vmatpush.bf16.xpose.msra.mxu0 %v847
      %857 = vmatmul.bf16.gmra.mxu0 %v844
      %v858 = vpop.f32.mrf.mxu0
      %v859 = vadd.f32 0.0, %v858
      %v860 = vpop.f32.mrf.mxu0
      %861 = vdwg.mxu0
      %v862 = vsel %vm534, -5e+19, %v859
      %v863 = vsel %vm536, %v862, -inf
      %864 = vmax.xlane.f32.xlu0 %v863
      %v865 = vpop.xlane.xlu0 %864
      %v866 = vsub.f32 %v862, %v865
      %v867 = vmul.f32 %v866, 1.442695
      %v868 = vpow.pop %v867
      %v869 = vsel %vm536, %v868, 0.0
      %870 = vadd.xlane.f32.xlu0 %v869
      %v871 = vpop.xlane.xlu0 %870
      %v872 = vrcp.pop %v871
      %v873 = vmul.f32 %v868, %v872
      %v874 = vpack.c.bf16 %v873, %v873
      %875 = vrot.lane.b32.xlu0 %v615, 112
      %v876 = vpop.permute.xlu0 %875
      %v878 = vsel %vm536, %v874, 0
      %v881 = vsel %vm552, %v876, 0
      %883 = vmatpush.bf16.msra.mxu0 0
      %884 = vmatpush.bf16.msra.mxu0 0
      %885 = vmatpush.bf16.msra.mxu0 0
      %886 = vmatpush.bf16.msra.mxu0 0
      %887 = vmatpush.bf16.msra.mxu0 0
      %888 = vmatpush.bf16.msra.mxu0 0
      %889 = vmatpush.bf16.msra.mxu0 0
      %890 = vmatpush.bf16.msra.mxu0 %v881
      %891 = vmatmul.bf16.gmra.mxu0 %v878
      %v892 = vpop.f32.mrf.mxu0
      %v893 = vadd.f32 0.0, %v892
      %v894 = vpop.f32.mrf.mxu0
      %895 = vdwg.mxu0
      %v896 = vpack.c.bf16 %v893, %v893
      %s897 = scalar_lea.vmem %s5, 8
      %v898 = vld [vmem:[%s897] sm:$0x3]
      %v900 = vsel %vm514, %v896, 0
      %v903 = vsel %vm643, %v898, 0
      %905 = vmatpush.bf16.msra.mxu0 0
      %906 = vmatpush.bf16.msra.mxu0 0
      %907 = vmatpush.bf16.msra.mxu0 0
      %908 = vmatpush.bf16.msra.mxu0 0
      %909 = vmatpush.bf16.msra.mxu0 0
      %910 = vmatpush.bf16.msra.mxu0 0
      %911 = vmatpush.bf16.msra.mxu0 0
      %912 = vmatpush.bf16.msra.mxu0 %v903
      %913 = vmatmul.bf16.gmra.mxu0 %v900
      %v914 = vpop.f32.mrf.mxu0
      %v915 = vadd.f32 0.0, %v914
      %v916 = vpop.f32.mrf.mxu0
      %917 = vdwg.mxu0
      %v918 = vadd.f32 %v838, %v915
      %919 = vrot.lane.b32.xlu0 %v573, 108
      %v920 = vpop.permute.xlu0 %919
      %921 = vrot.lane.b32.xlu0 %v578, 108
      %v922 = vpop.permute.xlu0 %921
      %v924 = vsel %vm514, %v920, 0
      %v927 = vsel %vm514, %v922, 0
      %929 = vmatpush.bf16.xpose.msra.mxu0 0
      %930 = vmatpush.bf16.xpose.msra.mxu0 0
      %931 = vmatpush.bf16.xpose.msra.mxu0 0
      %932 = vmatpush.bf16.xpose.msra.mxu0 0
      %933 = vmatpush.bf16.xpose.msra.mxu0 0
      %934 = vmatpush.bf16.xpose.msra.mxu0 0
      %935 = vmatpush.bf16.xpose.msra.mxu0 0
      %936 = vmatpush.bf16.xpose.msra.mxu0 %v927
      %937 = vmatmul.bf16.gmra.mxu0 %v924
      %v938 = vpop.f32.mrf.mxu0
      %v939 = vadd.f32 0.0, %v938
      %v940 = vpop.f32.mrf.mxu0
      %941 = vdwg.mxu0
      %v942 = vsel %vm534, -5e+19, %v939
      %v943 = vsel %vm536, %v942, -inf
      %944 = vmax.xlane.f32.xlu0 %v943
      %v945 = vpop.xlane.xlu0 %944
      %v946 = vsub.f32 %v942, %v945
      %v947 = vmul.f32 %v946, 1.442695
      %v948 = vpow.pop %v947
      %v949 = vsel %vm536, %v948, 0.0
      %950 = vadd.xlane.f32.xlu0 %v949
      %v951 = vpop.xlane.xlu0 %950
      %v952 = vrcp.pop %v951
      %v953 = vmul.f32 %v948, %v952
      %v954 = vpack.c.bf16 %v953, %v953
      %955 = vrot.lane.b32.xlu0 %v615, 108
      %v956 = vpop.permute.xlu0 %955
      %v958 = vsel %vm536, %v954, 0
      %v961 = vsel %vm552, %v956, 0
      %963 = vmatpush.bf16.msra.mxu0 0
      %964 = vmatpush.bf16.msra.mxu0 0
      %965 = vmatpush.bf16.msra.mxu0 0
      %966 = vmatpush.bf16.msra.mxu0 0
      %967 = vmatpush.bf16.msra.mxu0 0
      %968 = vmatpush.bf16.msra.mxu0 0
      %969 = vmatpush.bf16.msra.mxu0 0
      %970 = vmatpush.bf16.msra.mxu0 %v961
      %971 = vmatmul.bf16.gmra.mxu0 %v958
      %v972 = vpop.f32.mrf.mxu0
      %v973 = vadd.f32 0.0, %v972
      %v974 = vpop.f32.mrf.mxu0
      %975 = vdwg.mxu0
      %v976 = vpack.c.bf16 %v973, %v973
      %s977 = scalar_lea.vmem %s5, 10
      %v978 = vld [vmem:[%s977] sm:$0x3]
      %v980 = vsel %vm514, %v976, 0
      %v983 = vsel %vm643, %v978, 0
      %985 = vmatpush.bf16.msra.mxu0 0
      %986 = vmatpush.bf16.msra.mxu0 0
      %987 = vmatpush.bf16.msra.mxu0 0
      %988 = vmatpush.bf16.msra.mxu0 0
      %989 = vmatpush.bf16.msra.mxu0 0
      %990 = vmatpush.bf16.msra.mxu0 0
      %991 = vmatpush.bf16.msra.mxu0 0
      %992 = vmatpush.bf16.msra.mxu0 %v983
      %993 = vmatmul.bf16.gmra.mxu0 %v980
      %v994 = vpop.f32.mrf.mxu0
      %v995 = vadd.f32 0.0, %v994
      %v996 = vpop.f32.mrf.mxu0
      %997 = vdwg.mxu0
      %v998 = vadd.f32 %v918, %v995
      %999 = vrot.lane.b32.xlu0 %v573, 104
      %v1000 = vpop.permute.xlu0 %999
      %1001 = vrot.lane.b32.xlu0 %v578, 104
      %v1002 = vpop.permute.xlu0 %1001
      %v1004 = vsel %vm514, %v1000, 0
      %v1007 = vsel %vm514, %v1002, 0
      %1009 = vmatpush.bf16.xpose.msra.mxu0 0
      %1010 = vmatpush.bf16.xpose.msra.mxu0 0
      %1011 = vmatpush.bf16.xpose.msra.mxu0 0
      %1012 = vmatpush.bf16.xpose.msra.mxu0 0
      %1013 = vmatpush.bf16.xpose.msra.mxu0 0
      %1014 = vmatpush.bf16.xpose.msra.mxu0 0
      %1015 = vmatpush.bf16.xpose.msra.mxu0 0
      %1016 = vmatpush.bf16.xpose.msra.mxu0 %v1007
      %1017 = vmatmul.bf16.gmra.mxu0 %v1004
      %v1018 = vpop.f32.mrf.mxu0
      %v1019 = vadd.f32 0.0, %v1018
      %v1020 = vpop.f32.mrf.mxu0
      %1021 = vdwg.mxu0
      %v1022 = vsel %vm534, -5e+19, %v1019
      %v1023 = vsel %vm536, %v1022, -inf
      %1024 = vmax.xlane.f32.xlu0 %v1023
      %v1025 = vpop.xlane.xlu0 %1024
      %v1026 = vsub.f32 %v1022, %v1025
      %v1027 = vmul.f32 %v1026, 1.442695
      %v1028 = vpow.pop %v1027
      %v1029 = vsel %vm536, %v1028, 0.0
      %1030 = vadd.xlane.f32.xlu0 %v1029
      %v1031 = vpop.xlane.xlu0 %1030
      %v1032 = vrcp.pop %v1031
      %v1033 = vmul.f32 %v1028, %v1032
      %v1034 = vpack.c.bf16 %v1033, %v1033
      %1035 = vrot.lane.b32.xlu0 %v615, 104
      %v1036 = vpop.permute.xlu0 %1035
      %v1038 = vsel %vm536, %v1034, 0
      %v1041 = vsel %vm552, %v1036, 0
      %1043 = vmatpush.bf16.msra.mxu0 0
      %1044 = vmatpush.bf16.msra.mxu0 0
      %1045 = vmatpush.bf16.msra.mxu0 0
      %1046 = vmatpush.bf16.msra.mxu0 0
      %1047 = vmatpush.bf16.msra.mxu0 0
      %1048 = vmatpush.bf16.msra.mxu0 0
      %1049 = vmatpush.bf16.msra.mxu0 0
      %1050 = vmatpush.bf16.msra.mxu0 %v1041
      %1051 = vmatmul.bf16.gmra.mxu0 %v1038
      %v1052 = vpop.f32.mrf.mxu0
      %v1053 = vadd.f32 0.0, %v1052
      %v1054 = vpop.f32.mrf.mxu0
      %1055 = vdwg.mxu0
      %v1056 = vpack.c.bf16 %v1053, %v1053
      %s1057 = scalar_lea.vmem %s5, 12
      %v1058 = vld [vmem:[%s1057] sm:$0x3]
      %v1060 = vsel %vm514, %v1056, 0
      %v1063 = vsel %vm643, %v1058, 0
      %1065 = vmatpush.bf16.msra.mxu0 0
      %1066 = vmatpush.bf16.msra.mxu0 0
      %1067 = vmatpush.bf16.msra.mxu0 0
      %1068 = vmatpush.bf16.msra.mxu0 0
      %1069 = vmatpush.bf16.msra.mxu0 0
      %1070 = vmatpush.bf16.msra.mxu0 0
      %1071 = vmatpush.bf16.msra.mxu0 0
      %1072 = vmatpush.bf16.msra.mxu0 %v1063
      %1073 = vmatmul.bf16.gmra.mxu0 %v1060
      %v1074 = vpop.f32.mrf.mxu0
      %v1075 = vadd.f32 0.0, %v1074
      %v1076 = vpop.f32.mrf.mxu0
      %1077 = vdwg.mxu0
      %v1078 = vadd.f32 %v998, %v1075
      %1079 = vrot.lane.b32.xlu0 %v573, 100
      %v1080 = vpop.permute.xlu0 %1079
      %1081 = vrot.lane.b32.xlu0 %v578, 100
      %v1082 = vpop.permute.xlu0 %1081
      %v1084 = vsel %vm514, %v1080, 0
      %v1087 = vsel %vm514, %v1082, 0
      %1089 = vmatpush.bf16.xpose.msra.mxu0 0
      %1090 = vmatpush.bf16.xpose.msra.mxu0 0
      %1091 = vmatpush.bf16.xpose.msra.mxu0 0
      %1092 = vmatpush.bf16.xpose.msra.mxu0 0
      %1093 = vmatpush.bf16.xpose.msra.mxu0 0
      %1094 = vmatpush.bf16.xpose.msra.mxu0 0
      %1095 = vmatpush.bf16.xpose.msra.mxu0 0
      %1096 = vmatpush.bf16.xpose.msra.mxu0 %v1087
      %1097 = vmatmul.bf16.gmra.mxu0 %v1084
      %v1098 = vpop.f32.mrf.mxu0
      %v1099 = vadd.f32 0.0, %v1098
      %v1100 = vpop.f32.mrf.mxu0
      %1101 = vdwg.mxu0
      %v1102 = vsel %vm534, -5e+19, %v1099
      %v1103 = vsel %vm536, %v1102, -inf
      %1104 = vmax.xlane.f32.xlu0 %v1103
      %v1105 = vpop.xlane.xlu0 %1104
      %v1106 = vsub.f32 %v1102, %v1105
      %v1107 = vmul.f32 %v1106, 1.442695
      %v1108 = vpow.pop %v1107
      %v1109 = vsel %vm536, %v1108, 0.0
      %1110 = vadd.xlane.f32.xlu0 %v1109
      %v1111 = vpop.xlane.xlu0 %1110
      %v1112 = vrcp.pop %v1111
      %v1113 = vmul.f32 %v1108, %v1112
      %v1114 = vpack.c.bf16 %v1113, %v1113
      %1115 = vrot.lane.b32.xlu0 %v615, 100
      %v1116 = vpop.permute.xlu0 %1115
      %v1118 = vsel %vm536, %v1114, 0
      %v1121 = vsel %vm552, %v1116, 0
      %1123 = vmatpush.bf16.msra.mxu0 0
      %1124 = vmatpush.bf16.msra.mxu0 0
      %1125 = vmatpush.bf16.msra.mxu0 0
      %1126 = vmatpush.bf16.msra.mxu0 0
      %1127 = vmatpush.bf16.msra.mxu0 0
      %1128 = vmatpush.bf16.msra.mxu0 0
      %1129 = vmatpush.bf16.msra.mxu0 0
      %1130 = vmatpush.bf16.msra.mxu0 %v1121
      %1131 = vmatmul.bf16.gmra.mxu0 %v1118
      %v1132 = vpop.f32.mrf.mxu0
      %v1133 = vadd.f32 0.0, %v1132
      %v1134 = vpop.f32.mrf.mxu0
      %1135 = vdwg.mxu0
      %v1136 = vpack.c.bf16 %v1133, %v1133
      %s1137 = scalar_lea.vmem %s5, 14
      %v1138 = vld [vmem:[%s1137] sm:$0x3]
      %v1140 = vsel %vm514, %v1136, 0
      %v1143 = vsel %vm643, %v1138, 0
      %1145 = vmatpush.bf16.msra.mxu0 0
      %1146 = vmatpush.bf16.msra.mxu0 0
      %1147 = vmatpush.bf16.msra.mxu0 0
      %1148 = vmatpush.bf16.msra.mxu0 0
      %1149 = vmatpush.bf16.msra.mxu0 0
      %1150 = vmatpush.bf16.msra.mxu0 0
      %1151 = vmatpush.bf16.msra.mxu0 0
      %1152 = vmatpush.bf16.msra.mxu0 %v1143
      %1153 = vmatmul.bf16.gmra.mxu0 %v1140
      %v1154 = vpop.f32.mrf.mxu0
      %v1155 = vadd.f32 0.0, %v1154
      %v1156 = vpop.f32.mrf.mxu0
      %1157 = vdwg.mxu0
      %v1158 = vadd.f32 %v1078, %v1155
      %v1159 = vld [vmem:[%s6] sm:$0x1]
      %v1161 = vperm.slane %v1159, 0
      %v1163 = vadd.f32 %v1158, %v1161
      %v1164 = vld [vmem:[%s401] sm:$0xf]
      %v1165 = vunpack.c.l.bf16 %v1164
      %v1166 = vadd.f32 %v1163, %v1165
      %v1167 = vsel %vm426, %v1166, 0.0
      %1168 = vadd.xlane.f32.xlu0 %v1167
      %v1169 = vpop.xlane.xlu0 %1168
      %v1170 = vrcp.pop 32.0
      %v1171 = vmul.f32 32.0, %v1170
      %v1172 = vsub.f32 1.0, %v1171
      %v1173 = vmul.f32 %v1170, %v1172
      %v1174 = vadd.f32 %v1170, %v1173
      %vm1175 = vweird.f32 %v1170
      %v1176 = vsel %vm1175, %v1170, %v1174
      %v1177 = vmul.f32 %v1169, %v1176
      %v1178 = vsub.f32 %v1166, %v1177
      %v1179 = vmul.f32 %v1178, %v1178
      %v1180 = vsel %vm426, %v1179, 0.0
      %1181 = vadd.xlane.f32.xlu0 %v1180
      %v1182 = vpop.xlane.xlu0 %1181
      %v1183 = vmul.f32 %v1182, %v1176
      %v1184 = vadd.f32 %v1183, 1e-05
      %v1185 = vrsqrt.pop %v1184
      %v1186 = vmul.f32 %v1185, %v1184
      %v1187 = vmul.f32 %v1186, %v1185
      %v1188 = vmul.f32 0.5, %v1187
      %v1189 = vsub.f32 1.5, %v1188
      %v1190 = vmul.f32 %v1185, %v1189
      %vm1191 = vweird.f32 %v1184
      %vm1192 = vweird.f32 %v1185
      %vm1193 = vmor %vm1191, %vm1192
      %v1194 = vsel %vm1193, %v1185, %v1190
      %v1195 = vmul.f32 %v1178, %v1194
      %v1196 = vld [vmem:[%s7] sm:$0x1]
      %v1198 = vperm.slane %v1196, 0
      %v1200 = vmul.f32 %v1195, %v1198
      %v1201 = vld [vmem:[%s8] sm:$0x1]
      %v1203 = vperm.slane %v1201, 0
      %v1205 = vadd.f32 %v1200, %v1203
      %v1206 = vpack.c.bf16 %v1205, %v1205
      %vm1207 = vcmask 257024
      %1208 = vst.msk [vmem:[%s405] sm:$0xf] %vm1207, %v1206
      %p1209 = scmp.lt.s32.totalorder %s21, 1
      %s1210 = scalar_select %p1209, %s21, 1
      %s1211 = smul.addr %s1210, 4
      %s1212 = scalar_lea.vmem %s10, %s1211
      // Predicated region
      $region61: #{transformer_decoder.9} parent=59 // pred_check
        %p1213 = pneg %p269
      $region62: #{transformer_decoder.9} parent=59 // pred_check_branch
        %1215 = sbr.rel (%p1213) target = $region64
      $region63: #{transformer_decoder.9} parent=59 // pred_region
        _
      $region64: #{transformer_decoder.9} parent=59 // pred_fallthru
        _
    $region60: #{transformer_decoder.9} parent=5 // pred_fallthru
      _
    %p1216 = scmp.le.s32.totalorder 2, %s16
    // Predicated region
    $region65: #{transformer_decoder.9} parent=5 // pred_check
      %p1217 = pneg %p1216
    $region66: #{transformer_decoder.9} parent=5 // pred_check_branch
      %1219 = sbr.rel (%p1217) target = $region68
    $region67: #{transformer_decoder.9} parent=5 // pred_region
      %s1220 = ssub.s32 %s16, 2
      // Predicated region
      $region69: #{transformer_decoder.9} parent=67 // pred_check
        %p1221 = pneg %p275
      $region70: #{transformer_decoder.9} parent=67 // pred_check_branch
        %1223 = sbr.rel (%p1221) target = $region72
      $region71: #{transformer_decoder.9} parent=67 // pred_region
        %p1224 = scmp.lt.s32.totalorder %s22, 1
        %s1225 = scalar_select %p1224, %s22, 1
        %s1226 = smul.addr %s1225, 4
        %s1227 = scalar_lea.vmem %s10, %s1226
      $region72: #{transformer_decoder.9} parent=67 // pred_fallthru
        _
    $region68: #{transformer_decoder.9} parent=5 // pred_fallthru
      _
  $region6: #{transformer_decoder.9} parent=0 // loop_footer
    %s20 = sadd.s32 1, %s16
  $region7: #{transformer_decoder.9} parent=0 // loop_footer_branch
    %15 = sbr.rel target = $region3
  $region8: #{transformer_decoder.9} parent=0 // loop_exit
    _

// kernel: transformer_decoder.17
$region0: #{transformer_decoder.17}
  #allocation0 [shape = 'u32[]', space=smem, size = 0x4, offset = 0x4, fixed_abs, tag = 'smem constant byte address 0x4 - core index']
  #allocation1 [shape = 'u32[72,128]{1,0:T(1,128)}', space=vmem, size = 0x9000, scoped, tag = 'internal scratch']
  #allocation2 [shape = 'f32[16,64]{1,0:T(8,128)}', space=vmem, size = 0x2000, scoped, tag = 'scratch operand']
  %s0 = inlined_call_operand.vmem [shape: bf16[16,32], index: 0, kind: input, shape index: {}]
  %s1 = inlined_call_operand.vmem [shape: bf16[32,64], index: 1, kind: input, shape index: {}]
  %s2 = inlined_call_operand.vmem [shape: f32[1,64], index: 2, kind: input, shape index: {}]
  %s3 = inlined_call_operand.hbm [shape: f32[16,64], index: 3, kind: output, shape index: {}]
  %s4 = sld [smem:[#allocation0]]
  $region30: #{transformer_decoder.17} parent=0
    _
  %s6 = ssub.s32 1, %s4
  %s7 = scalar_select 0, %s6, %s4
  $region1: #{transformer_decoder.17} parent=0
    #allocation3 [shape = 'u8[8192]{0}', space=vmem, size = 0x2000, scoped, tag = 'output window, operand 0, single buffered']
    #allocation4 [shape = 's32[1]{0}', space=sflag, size = 0x4, scoped, tag = 'scoped memory for transformer_decoder.17']
    %8 = vsyncpa [#allocation4], 0
    // Predicated region
    $region2: #{transformer_decoder.17} parent=1 // pred_check
      _
    $region3: #{transformer_decoder.17} parent=1 // pred_check_branch
      %10 = sbr.rel (0) target = $region5
    $region4: #{transformer_decoder.17} parent=1 // pred_region
      _
    $region5: #{transformer_decoder.17} parent=1 // pred_fallthru
      _
    // Predicated region
    $region6: #{transformer_decoder.17} parent=1 // pred_check
      _
    $region7: #{transformer_decoder.17} parent=1 // pred_check_branch
      %12 = sbr.rel (0) target = $region9
    $region8: #{transformer_decoder.17} parent=1 // pred_region
      _
    $region9: #{transformer_decoder.17} parent=1 // pred_fallthru
      _
    // Predicated region
    $region10: #{transformer_decoder.17} parent=1 // pred_check
      _
    $region11: #{transformer_decoder.17} parent=1 // pred_check_branch
      %14 = sbr.rel (0) target = $region13
    $region12: #{transformer_decoder.17} parent=1 // pred_region
      _
    $region13: #{transformer_decoder.17} parent=1 // pred_fallthru
      _
    %p16 = scmp.eq.s32.totalorder 0, 0
    // Predicated region
    $region14: #{transformer_decoder.17} parent=1 // pred_check
      %p17 = pneg %p16
    $region15: #{transformer_decoder.17} parent=1 // pred_check_branch
      %19 = sbr.rel (%p17) target = $region17
    $region16: #{transformer_decoder.17} parent=1 // pred_region
      %vm20 = vcmask 523264
      %21 = vst.msk [vmem:[#allocation2] sm:$0xff] %vm20, 0.0
      %22 = vst.msk [vmem:[#allocation2 + $0x8] sm:$0xff] %vm20, 0.0
    $region17: #{transformer_decoder.17} parent=1 // pred_fallthru
      _
    %v23 = vld [vmem:[#allocation2] sm:$0xff]
    %v24 = vld [vmem:[#allocation2 + $0x8] sm:$0xff]
    %v25 = vld [vmem:[%s0] sm:$0xf]
    %v26 = vld [vmem:[%s0 + $0x4] sm:$0xf]
    %v27 = vld [vmem:[%s1] sm:$0xf]
    %v28 = vld [vmem:[%s1 + $0x4] sm:$0xf]
    %v29 = vld [vmem:[%s1 + $0x8] sm:$0xf]
    %v30 = vld [vmem:[%s1 + $0xc] sm:$0xf]
    %v33 = vunpack.c.l.b16 %v25
    %v34 = vunpack.c.l.b16 %v26
    %v35 = vpack.c.b16 %v34, %v33
    %v40 = vunpack.c.l.b16 %v27
    %v41 = vunpack.c.l.b16 %v28
    %v42 = vunpack.c.l.b16 %v29
    %v43 = vunpack.c.l.b16 %v30
    %v44 = vpack.c.b16 %v41, %v40
    %v45 = vpack.c.b16 %v43, %v42
    %vm48 = vcmask 261120
    %v50 = vsel %vm48, %v35, 0
    %52 = vmatpush.bf16.msra.mxu0 0
    %53 = vmatpush.bf16.msra.mxu0 0
    %54 = vmatpush.bf16.msra.mxu0 0
    %55 = vmatpush.bf16.msra.mxu0 0
    %56 = vmatpush.bf16.msra.mxu0 0
    %57 = vmatpush.bf16.msra.mxu0 0
    %58 = vmatpush.bf16.msra.mxu0 %v45
    %59 = vmatpush.bf16.msra.mxu0 %v44
    %60 = vmatmul.bf16.gmra.mxu0 %v50
    %v61 = vpop.f32.mrf.mxu0
    %v62 = vadd.f32 0.0, %v61
    %v63 = vpop.f32.mrf.mxu0
    %v64 = vadd.f32 0.0, %v63
    %65 = vdwg.mxu0
    %v66 = vadd.f32 %v23, %v62
    %v67 = vadd.f32 %v24, %v64
    %vm68 = vcmask 523264
    %69 = vst.msk [vmem:[#allocation2] sm:$0xff] %vm68, %v66
    %70 = vst.msk [vmem:[#allocation2 + $0x8] sm:$0xff] %vm68, %v67
    // Predicated region
    $region18: #{transformer_decoder.17} parent=1 // pred_check
      %p71 = pneg %p16
    $region19: #{transformer_decoder.17} parent=1 // pred_check_branch
      %73 = sbr.rel (%p71) target = $region21
    $region20: #{transformer_decoder.17} parent=1 // pred_region
      %v74 = vld [vmem:[#allocation2] sm:$0xff]
      %v75 = vld [vmem:[#allocation2 + $0x8] sm:$0xff]
      %v76 = vld [vmem:[%s2] sm:$0x1]
      %v78 = vperm.slane %v76, 0
      %v80 = vadd.f32 %v74, %v78
      %v81 = vadd.f32 %v75, %v78
      %82 = vst.msk [vmem:[#allocation3] sm:$0xff] %vm68, %v80
      %83 = vst.msk [vmem:[#allocation3 + $0x8] sm:$0xff] %vm68, %v81
    $region21: #{transformer_decoder.17} parent=1 // pred_fallthru
      _
    // Predicated region
    $region22: #{transformer_decoder.17} parent=1 // pred_check
      _
    $region23: #{transformer_decoder.17} parent=1 // pred_check_branch
      %85 = sbr.rel (0) target = $region25
    $region24: #{transformer_decoder.17} parent=1 // pred_region
      %87 = vsyncadd [#allocation4], 0
      %s88 = sshll.u32 [#allocation3], 4
      %s89 = int_to_ptr.vmem [resolvable:$true] %s88
      %s90 = sshll.u32 %s3, 4
      %s91 = int_to_ptr.hbm [resolvable:$true] %s90
      %96 = dma.vmem_to_hbm [thread:$0]  %s89, 256, %s91, [#allocation4], 128, 128, 8
    $region25: #{transformer_decoder.17} parent=1 // pred_fallthru
      _
    // Predicated region
    $region26: #{transformer_decoder.17} parent=1 // pred_check
      _
    $region27: #{transformer_decoder.17} parent=1 // pred_check_branch
      %98 = sbr.rel (0) target = $region29
    $region28: #{transformer_decoder.17} parent=1 // pred_region
      %100 = dma.done [#allocation4], 256
    $region29: #{transformer_decoder.17} parent=1 // pred_fallthru
      _
    %101 = vsyncpa [#allocation4], 1

</llo_original>
